<compile_context>
chip_gen: v5e
topology: v5e:2x2
jax: 0.10.0
libtpu: 0.0.40
codegen_flags: <defaults>
</compile_context>

<pallas_src>
import functools

import numpy as np
import jax
import jax.numpy as jnp
from jax.experimental import pallas as pl
from jax.experimental.pallas import tpu as pltpu

LANE = 128            # lane width (feature padding target)
SUB = 8               # sublane multiple (row padding target)

EMB = 20              # location embedding width
SEQ_FEAT = 100        # hist features occupy lanes [0, 100)
VEC_FEAT_START = 100  # vec features occupy lanes [100, 120)
H1 = 20               # layer-1 output width per branch
H2 = 10               # layer-2 output width
HIST_ONE_LANE = 120   # constant-1 input lane for hist rows (drives b1s row)
VEC_ONE_LANE = 121    # constant-1 input lane for vec rows  (drives b1v row)
SEQ_MARK_LANE = 126   # layer-1 output marker (=1 for hist rows, drives b2s)
VEC_MARK_LANE = 127   # layer-1 output marker (=1 for vec rows,  drives b2v)


def _round_up(n, m):
    return ((n + m - 1) // m) * m


def _bucket_rows(n):
    """Next power of two >= max(n, SUB): avoids a recompile per sample count."""
    n = max(int(n), SUB)
    return 1 << (n - 1).bit_length()


# ----------------------------------------------------------------------------
# One-time parameter packing (hoisted out of the forward path).
#
#   W1 (128,128): rows 0..99   -> w1s into lanes 0..19
#                 rows 100..119-> w1v into lanes 20..39
#                 row 120      -> b1s into lanes 0..19, +1.0 into lane 126
#                 row 121      -> b1v into lanes 20..39, +1.0 into lane 127
#   W2 (128,128): rows 0..19   -> w2s into lanes 0..9
#                 rows 20..39  -> w2v into lanes 0..9
#                 row 126      -> b2s into lanes 0..9
#                 row 127      -> b2v into lanes 0..9
# ----------------------------------------------------------------------------
def prepare_params(params):
    (w1s, b1s, w2s, b2s, w1v, b1v, w2v, b2v) = params

    w1 = np.zeros((LANE, LANE), np.float32)
    w1[0:SEQ_FEAT, 0:H1] = np.asarray(w1s)
    w1[VEC_FEAT_START:VEC_FEAT_START + EMB, H1:2 * H1] = np.asarray(w1v)
    w1[HIST_ONE_LANE, 0:H1] = np.asarray(b1s)
    w1[HIST_ONE_LANE, SEQ_MARK_LANE] = 1.0
    w1[VEC_ONE_LANE, H1:2 * H1] = np.asarray(b1v)
    w1[VEC_ONE_LANE, VEC_MARK_LANE] = 1.0

    w2 = np.zeros((LANE, LANE), np.float32)
    w2[0:H1, 0:H2] = np.asarray(w2s)
    w2[H1:2 * H1, 0:H2] = np.asarray(w2v)
    w2[SEQ_MARK_LANE, 0:H2] = np.asarray(b2s)
    w2[VEC_MARK_LANE, 0:H2] = np.asarray(b2v)

    return jnp.asarray(np.stack([w1, w2], axis=0), jnp.bfloat16)  # (2,128,128)


# ----------------------------------------------------------------------------
# Fused kernel:
#   out  = relu(x_packed @ W1) @ W2    (one pass over hist rows + vec rows,
#                                       per-group biases via marker lanes)
#   pos/neg/self rows gathered with ONE one-hot matmul over the stacked rows
#   loss = -mean(logsigmoid(||neg-self|| - ||pos-self||))  (runtime row mask)
# ----------------------------------------------------------------------------
def _fused_forward_kernel(ns_ref, x_ref, w_ref, idx_ref, loss_ref):
    f32 = jnp.float32

    r = x_ref.shape[0]            # padded hist rows + padded vec rows
    m3 = idx_ref.shape[0]         # 3 * padded sample count
    m_pad = m3 // 3

    # --- packed MLP: one layer-1 matmul, relu, one layer-2 matmul
    h = jnp.dot(x_ref[...], w_ref[0], preferred_element_type=f32)
    h = jnp.maximum(h, 0.0)                       # markers (+1.0) survive relu
    out = jnp.dot(h.astype(jnp.bfloat16), w_ref[1], preferred_element_type=f32)
    # out: hist rows -> seq embedding in lanes 0..9; vec rows -> vec embedding
    # in lanes 0..9; all other lanes exactly 0.

    # --- fused pos/neg/self row gather via one exact one-hot matmul (f32)
    iota_r = jax.lax.broadcasted_iota(jnp.int32, (m3, r), 1)
    one_hot = (iota_r == idx_ref[...]).astype(f32)
    gathered = jnp.dot(one_hot, out, preferred_element_type=f32)   # (3M,128)

    pos_out = gathered[0:m_pad]
    neg_out = gathered[m_pad:2 * m_pad]
    self_out = gathered[2 * m_pad:3 * m_pad]

    # --- ranking loss (padded lanes are zero -> do not affect the L2 norms)
    dp = pos_out - self_out
    dn = neg_out - self_out
    # TODO(synk): add an eps inside sqrt if a backward pass is ever added.
    d_pos = jnp.sqrt(jnp.sum(dp * dp, axis=-1, keepdims=True))
    d_neg = jnp.sqrt(jnp.sum(dn * dn, axis=-1, keepdims=True))
    z = d_neg - d_pos
    # numerically-stable logsigmoid(z)
    logsig = jnp.minimum(z, 0.0) - jnp.log1p(jnp.exp(-jnp.abs(z)))

    ns = ns_ref[0, 0]                                   # runtime sample count
    row_ids = jax.lax.broadcasted_iota(jnp.int32, (m_pad, 1), 0)
    mask = (row_ids < ns).astype(f32)
    total = jnp.sum(logsig * mask, axis=0, keepdims=True)          # (1, 1)
    count_f = (jnp.zeros((1, 1), jnp.int32) + ns).astype(f32)      # (1, 1)
    loss_vec = -(total / count_f)                                  # mean+negate
    loss_ref[0, 0] = loss_vec[0, 0]                                # -> SMEM


def fused_forward(x_packed, w_stacked, stacked_idx, num_samples_arr):
    r = x_packed.shape[0]
    m3 = stacked_idx.shape[0]
    flops = 2 * r * LANE * LANE * 2 + 2 * m3 * r * LANE
    bytes_accessed = (x_packed.size * 2 + w_stacked.size * 2
                      + stacked_idx.size * 4 + 4 + 4)
    out = pl.pallas_call(
        _fused_forward_kernel,
        out_shape=jax.ShapeDtypeStruct((1, 1), jnp.float32),
        in_specs=[
            pl.BlockSpec(memory_space=pltpu.MemorySpace.SMEM),   # num_samples
            pl.BlockSpec(memory_space=pltpu.MemorySpace.VMEM),   # x_packed
            pl.BlockSpec(memory_space=pltpu.MemorySpace.VMEM),   # weights
            pl.BlockSpec(memory_space=pltpu.MemorySpace.VMEM),   # indices
        ],
        out_specs=pl.BlockSpec(memory_space=pltpu.MemorySpace.SMEM),
        cost_estimate=pl.CostEstimate(flops=flops,
                                      transcendentals=2 * (m3 // 3),
                                      bytes_accessed=bytes_accessed),
    )(num_samples_arr, x_packed, w_stacked, stacked_idx)
    return out[0, 0]


# ----------------------------------------------------------------------------
# Device graph (jitted end-to-end, NO static args): embedding gather,
# shifted-history concat, packed-tile construction (bf16), fused kernel.
# ----------------------------------------------------------------------------
@jax.jit
def dygraph_device(w_stacked, vecs_use, x, stacked_idx, num_samples_arr):
    seq_len, user_len = x.shape
    emb_dim = vecs_use.shape[1]

    x_emb = vecs_use[x.reshape(-1)].reshape(seq_len, user_len, emb_dim)

    def shifted(k_):
        return jnp.concatenate([x_emb[0:k_], x_emb[0:seq_len - k_]],
                               axis=0).reshape(-1, emb_dim)

    hist = jnp.concatenate(
        [shifted(4), shifted(3), shifted(2), shifted(1),
         x_emb.reshape(-1, emb_dim)], axis=-1)               # (seq*user, 100)

    n = hist.shape[0]
    s = vecs_use.shape[0]
    n_pad = _round_up(n, SUB)
    s_pad = _round_up(s, SUB)

    # hist rows: features in lanes 0..99, +1 marker in lane 120
    x_hist = jnp.zeros((n_pad, LANE), jnp.float32)
    x_hist = x_hist.at[:n, :SEQ_FEAT].set(hist)
    x_hist = x_hist.at[:n, HIST_ONE_LANE].set(1.0)
    # vec rows: features in lanes 100..119, +1 marker in lane 121
    x_vec = jnp.zeros((s_pad, LANE), jnp.float32)
    x_vec = x_vec.at[:s, VEC_FEAT_START:VEC_FEAT_START + emb_dim].set(vecs_use)
    x_vec = x_vec.at[:s, VEC_ONE_LANE].set(1.0)

    x_packed = jnp.concatenate([x_hist, x_vec], axis=0).astype(jnp.bfloat16)
    return fused_forward(x_packed, w_stacked, stacked_idx, num_samples_arr)


# ----------------------------------------------------------------------------
# Host-side sampling glue (synthetic, deterministic replacement for the
# faiss / numpy rejection-sampling loop in the PyTorch forward).  Runs before
# any device work so it never sits between device kernels.
# ----------------------------------------------------------------------------
def build_samples(x_np, y_np, I_np, counts, rng):
    x_view = x_np.reshape(-1)
    y_view = y_np.reshape(-1)
    idx_cent = I_np[x_view].squeeze()          # centroid id per history entry
    num_cent = counts.shape[0]
    index_of = [[] for _ in range(num_cent)]
    for i in range(x_view.shape[0]):
        index_of[int(idx_cent[i])].append(i)

    pos_s, neg_s, self_s = [], [], []
    I_flat = I_np.squeeze()
    for c, line in enumerate(index_of):
        if len(line) == 0:
            continue
        k = min(int(counts[c]), 10)            # stands in for faiss index.ntotal
        line_arr = np.asarray(line)
        self_s.append(np.repeat(line_arr[:, None], k, axis=1).reshape(-1))
        pos_line = y_view[line]
        pos_s.append(np.repeat(pos_line[:, None], k, axis=1).reshape(-1))
        # TODO(synk): original code uses rejection sampling against I_array;
        # here we sample directly from the complement (same distribution).
        candidates = np.where(I_flat != c)[0]
        neg = rng.choice(candidates, size=k * len(line), replace=True)
        neg_s.append(neg)
    return (np.concatenate(pos_s).astype(np.int32),
            np.concatenate(neg_s).astype(np.int32),
            np.concatenate(self_s).astype(np.int32))


def build_index_operand(pos_i, neg_i, self_i, n_pad, m_pad):
    """Stack pos/neg/self indices into one (3*m_pad, 1) int32 operand.

    pos/neg indices are pre-offset by n_pad so they address the vec-row region
    of the packed activation tensor; self indices address the hist-row region.
    """
    m = int(pos_i.shape[0])
    out = np.zeros((3 * m_pad, 1), np.int32)
    out[0:m, 0] = pos_i + n_pad
    out[m_pad:m_pad + m, 0] = neg_i + n_pad
    out[2 * m_pad:2 * m_pad + m, 0] = self_i
    return jnp.asarray(out)


# ----------------------------------------------------------------------------
# Pure-JAX f32 reference (matches the PyTorch forward given the same samples).
# ----------------------------------------------------------------------------
def reference_loss(params, vecs_use, x, pos_i, neg_i, self_i):
    (w1s, b1s, w2s, b2s, w1v, b1v, w2v, b2v) = params
    seq_len, user_len = x.shape
    emb_dim = vecs_use.shape[1]
    x_emb = vecs_use[x.reshape(-1)].reshape(seq_len, user_len, emb_dim)

    def shifted(k_):
        return jnp.concatenate([x_emb[0:k_], x_emb[0:seq_len - k_]],
                               axis=0).reshape(-1, emb_dim)

    hist = jnp.concatenate(
        [shifted(4), shifted(3), shifted(2), shifted(1),
         x_emb.reshape(-1, emb_dim)], axis=-1)
    seq_out = jnp.maximum(hist @ w1s + b1s, 0.0) @ w2s + b2s
    vec_out = jnp.maximum(vecs_use @ w1v + b1v, 0.0) @ w2v + b2v
    pos = vec_out[pos_i]
    neg = vec_out[neg_i]
    slf = seq_out[self_i]
    d_pos = jnp.sqrt(jnp.sum((pos - slf) ** 2, axis=-1))
    d_neg = jnp.sqrt(jnp.sum((neg - slf) ** 2, axis=-1))
    z = d_neg - d_pos
    logsig = jnp.minimum(z, 0.0) - jnp.log1p(jnp.exp(-jnp.abs(z)))
    return -jnp.mean(logsig)


if __name__ == "__main__":
    key = jax.random.PRNGKey(0)
    input_size = 64        # number of locations (rows of vecs_use)
    emb_dim = 20           # fixed by the module (reshape(-1, 20))
    seq_len, user_len = 8, 4
    num_centroids = 4

    ks = jax.random.split(key, 8)
    vecs_use = jax.random.normal(ks[0], (input_size, emb_dim), jnp.float32)

    def linear_params(k, fan_in, fan_out):
        kw, kb = jax.random.split(k)
        bound = 1.0 / np.sqrt(fan_in)
        w = jax.random.uniform(kw, (fan_in, fan_out), jnp.float32, -bound, bound)
        b = jax.random.uniform(kb, (fan_out,), jnp.float32, -bound, bound)
        return w, b

    w1s, b1s = linear_params(ks[1], 20 * 5, 20)   # seq_embedding_layer1
    w2s, b2s = linear_params(ks[2], 20, 10)       # seq_embedding_layer2
    w1v, b1v = linear_params(ks[3], 20, 20)       # vec_embedding_layer1
    w2v, b2v = linear_params(ks[4], 20, 10)       # vec_embedding_layer2
    params = (w1s, b1s, w2s, b2s, w1v, b1v, w2v, b2v)

    x = jax.random.randint(ks[5], (seq_len, user_len), 0, input_size, jnp.int32)
    y = jax.random.randint(ks[6], (seq_len, user_len), 0, input_size, jnp.int32)

    # synthetic, deterministic stand-ins for WORK/I.npy and the faiss indices
    I_np = (np.arange(input_size) % num_centroids).astype(np.int64)[:, None]
    counts = np.bincount(I_np.squeeze(), minlength=num_centroids)
    np_rng = np.random.default_rng(0)

    # one-time packed-weight construction (biases folded in, bf16)
    w_stacked = prepare_params(params)

    # host sampling first, off the device critical path
    pos_i, neg_i, self_i = build_samples(
        np.asarray(x), np.asarray(y), I_np, counts, np_rng)
    num_samples = int(pos_i.shape[0])
    n_pad = _round_up(seq_len * user_len, SUB)
    m_pad = _bucket_rows(num_samples)          # power-of-two bucket: no retrace
    stacked_idx = build_index_operand(pos_i, neg_i, self_i, n_pad, m_pad)
    ns_arr = jnp.full((1, 1), num_samples, jnp.int32)   # runtime, not static

    loss = dygraph_device(w_stacked, vecs_use, x, stacked_idx, ns_arr)
    loss = float(jax.block_until_ready(loss))

    ref = float(jax.block_until_ready(
        reference_loss(params, vecs_use, x,
                       jnp.asarray(pos_i), jnp.asarray(neg_i),
                       jnp.asarray(self_i))))

    assert np.isfinite(loss)
    np.testing.assert_allclose(loss, ref, rtol=5e-2, atol=1e-3)
    print("KERNEL_OK")
</pallas_src>

<mosaic_0001>
module attributes {stable_mosaic.version = 11 : i64} {
  func.func @_fused_forward_kernel(%arg0: memref<1x1xi32, #tpu.memory_space<smem>>, %arg1: memref<96x128xbf16, #tpu.memory_space<vmem>>, %arg2: memref<2x128x128xbf16, #tpu.memory_space<vmem>>, %arg3: memref<1536x1xi32, #tpu.memory_space<vmem>>, %arg4: memref<1x1xf32, #tpu.memory_space<smem>>) attributes {dimension_semantics = [], scalar_prefetch = 0 : i64, scratch_operands = 0 : i64, tpu.core_type = #tpu.core_type<tc>} {
    %c0 = arith.constant 0 : index
    %c0_0 = arith.constant 0 : index
    %0 = vector.load %arg1[%c0, %c0_0] : memref<96x128xbf16, #tpu.memory_space<vmem>>, vector<96x128xbf16>
    %c0_1 = arith.constant 0 : index
    %c0_2 = arith.constant 0 : index
    %c0_3 = arith.constant 0 : index
    %1 = vector.load %arg2[%c0_1, %c0_2, %c0_3] : memref<2x128x128xbf16, #tpu.memory_space<vmem>>, vector<1x128x128xbf16>
    %2 = vector.shape_cast %1 : vector<1x128x128xbf16> to vector<128x128xbf16>
    %cst = arith.constant dense<0.000000e+00> : vector<96x128xf32>
    %3 = tpu.matmul %0, %2, %cst {dimension_numbers = #tpu.dot_dimension_numbers<[1], [0], [0], [1], [0, 0, 1, 1], [], []>} : vector<96x128xbf16>, vector<128x128xbf16>, vector<96x128xf32> -> vector<96x128xf32>
    %cst_4 = arith.constant 0.000000e+00 : f32
    %4 = vector.broadcast %cst_4 : f32 to vector<96x128xf32>
    %5 = arith.maximumf %3, %4 : vector<96x128xf32>
    %6 = arith.truncf %5 : vector<96x128xf32> to vector<96x128xbf16>
    %c1 = arith.constant 1 : index
    %c0_5 = arith.constant 0 : index
    %c0_6 = arith.constant 0 : index
    %7 = vector.load %arg2[%c1, %c0_5, %c0_6] : memref<2x128x128xbf16, #tpu.memory_space<vmem>>, vector<1x128x128xbf16>
    %8 = vector.shape_cast %7 : vector<1x128x128xbf16> to vector<128x128xbf16>
    %cst_7 = arith.constant dense<0.000000e+00> : vector<96x128xf32>
    %9 = tpu.matmul %6, %8, %cst_7 {dimension_numbers = #tpu.dot_dimension_numbers<[1], [0], [0], [1], [0, 0, 1, 1], [], []>} : vector<96x128xbf16>, vector<128x128xbf16>, vector<96x128xf32> -> vector<96x128xf32>
    %10 = tpu.iota {dimensions = array<i32: 1>} : vector<1536x96xi32>
    %c0_8 = arith.constant 0 : index
    %c0_9 = arith.constant 0 : index
    %11 = vector.load %arg3[%c0_8, %c0_9] : memref<1536x1xi32, #tpu.memory_space<vmem>>, vector<1536x1xi32>
    %12 = vector.broadcast %11 : vector<1536x1xi32> to vector<1536x96xi32>
    %13 = arith.cmpi eq, %10, %12 : vector<1536x96xi32>
    %14 = arith.extui %13 : vector<1536x96xi1> to vector<1536x96xi32>
    %15 = arith.sitofp %14 : vector<1536x96xi32> to vector<1536x96xf32>
    %cst_10 = arith.constant dense<0.000000e+00> : vector<1536x128xf32>
    %16 = tpu.matmul %15, %9, %cst_10 {dimension_numbers = #tpu.dot_dimension_numbers<[1], [0], [0], [1], [0, 0, 1, 1], [], []>} : vector<1536x96xf32>, vector<96x128xf32>, vector<1536x128xf32> -> vector<1536x128xf32>
    %17 = vector.extract_strided_slice %16 {offsets = [0, 0], sizes = [512, 128], strides = [1, 1]} : vector<1536x128xf32> to vector<512x128xf32>
    %18 = vector.extract_strided_slice %16 {offsets = [512, 0], sizes = [512, 128], strides = [1, 1]} : vector<1536x128xf32> to vector<512x128xf32>
    %19 = vector.extract_strided_slice %16 {offsets = [1024, 0], sizes = [512, 128], strides = [1, 1]} : vector<1536x128xf32> to vector<512x128xf32>
    %20 = arith.subf %17, %19 : vector<512x128xf32>
    %21 = arith.subf %18, %19 : vector<512x128xf32>
    %22 = arith.mulf %20, %20 : vector<512x128xf32>
    %cst_11 = arith.constant dense<0.000000e+00> : vector<512xf32>
    %23 = vector.multi_reduction <add>, %22, %cst_11 [1] : vector<512x128xf32> to vector<512xf32>
    %24 = vector.shape_cast %23 : vector<512xf32> to vector<512x1xf32>
    %25 = math.sqrt %24 : vector<512x1xf32>
    %26 = arith.mulf %21, %21 : vector<512x128xf32>
    %cst_12 = arith.constant dense<0.000000e+00> : vector<512xf32>
    %27 = vector.multi_reduction <add>, %26, %cst_12 [1] : vector<512x128xf32> to vector<512xf32>
    %28 = vector.shape_cast %27 : vector<512xf32> to vector<512x1xf32>
    %29 = math.sqrt %28 : vector<512x1xf32>
    %30 = arith.subf %29, %25 : vector<512x1xf32>
    %cst_13 = arith.constant 0.000000e+00 : f32
    %31 = vector.broadcast %cst_13 : f32 to vector<512x1xf32>
    %32 = arith.minimumf %30, %31 : vector<512x1xf32>
    %33 = math.absf %30 : vector<512x1xf32>
    %cst_14 = arith.constant 0.000000e+00 : f32
    %34 = vector.broadcast %cst_14 : f32 to vector<512x1xf32>
    %35 = arith.subf %34, %33 : vector<512x1xf32>
    %36 = math.exp %35 : vector<512x1xf32>
    %37 = math.log1p %36 : vector<512x1xf32>
    %38 = arith.subf %32, %37 : vector<512x1xf32>
    %c0_15 = arith.constant 0 : index
    %c0_16 = arith.constant 0 : index
    %39 = memref.load %arg0[%c0_15, %c0_16] : memref<1x1xi32, #tpu.memory_space<smem>>
    %40 = tpu.iota {dimensions = array<i32: 0>} : vector<512x1xi32>
    %41 = vector.broadcast %39 : i32 to vector<512x1xi32>
    %42 = arith.cmpi slt, %40, %41 : vector<512x1xi32>
    %43 = arith.extui %42 : vector<512x1xi1> to vector<512x1xi32>
    %44 = arith.sitofp %43 : vector<512x1xi32> to vector<512x1xf32>
    %45 = arith.mulf %38, %44 : vector<512x1xf32>
    %cst_17 = arith.constant dense<0.000000e+00> : vector<1xf32>
    %46 = vector.multi_reduction <add>, %45, %cst_17 [0] : vector<512x1xf32> to vector<1xf32>
    %47 = vector.shape_cast %46 : vector<1xf32> to vector<1x1xf32>
    %c0_i32 = arith.constant 0 : i32
    %48 = vector.broadcast %c0_i32 : i32 to vector<1x1xi32>
    %49 = vector.broadcast %39 : i32 to vector<1x1xi32>
    %50 = arith.addi %48, %49 : vector<1x1xi32>
    %51 = arith.sitofp %50 : vector<1x1xi32> to vector<1x1xf32>
    %52 = arith.divf %47, %51 : vector<1x1xf32>
    %cst_18 = arith.constant 0.000000e+00 : f32
    %53 = vector.broadcast %cst_18 : f32 to vector<1x1xf32>
    %54 = arith.subf %53, %52 : vector<1x1xf32>
    %55 = vector.extract %54[0, 0] : f32 from vector<1x1xf32>
    %c0_19 = arith.constant 0 : index
    %c0_20 = arith.constant 0 : index
    %56 = memref.load %arg4[%c0_19, %c0_20] : memref<1x1xf32, #tpu.memory_space<smem>>
    memref.store %55, %arg4[%c0_19, %c0_20] : memref<1x1xf32, #tpu.memory_space<smem>>
    return
  }
}

</mosaic_0001>

<llo_original>
// kernel: dygraph_device.1
$region0: #{dygraph_device.1}
  #allocation0 [shape = 'u32[]', space=smem, size = 0x4, offset = 0x4, fixed_abs, tag = 'smem constant byte address 0x4 - core index']
  #allocation1 [shape = 'u32[72,128]{1,0:T(1,128)}', space=vmem, size = 0x9000, scoped, tag = 'internal scratch']
  #allocation2 [shape = 's32[1,1]{1,0:T(1,128)S(6)}', space=smem, size = 0x200, scoped, tag = 'scoped memory for dygraph_device.1']
  %s0 = inlined_call_operand.<no memory space> [shape: s32[1,1], index: 0, kind: input, shape index: {}]
  %s1 = inlined_call_operand.vmem [shape: bf16[96,128], index: 1, kind: input, shape index: {}]
  %s2 = inlined_call_operand.vmem [shape: bf16[2,128,128], index: 2, kind: input, shape index: {}]
  %s3 = inlined_call_operand.vmem [shape: s32[1536,1], index: 3, kind: input, shape index: {}]
  %s4 = inlined_call_operand.hbm [shape: f32[1,1], index: 4, kind: output, shape index: {}]
  %s5 = sld [smem:[#allocation0]]
  $region26: #{dygraph_device.1} parent=0
    _
  %s7 = ssub.s32 1, %s5
  %s8 = scalar_select 0, %s7, %s5
  %9 = sst [smem:[#allocation2]] %s0
  $region1: #{dygraph_device.1} parent=0
    #allocation3 [shape = 'u8[512]{0}', space=smem, size = 0x200, scoped, tag = 'output window, operand 0, single buffered']
    #allocation4 [shape = 's32[1]{0}', space=sflag, size = 0x4, scoped, tag = 'scoped memory for dygraph_device.1']
    %10 = vsyncpa [#allocation4], 0
    // Predicated region
    $region2: #{dygraph_device.1} parent=1 // pred_check
      _
    $region3: #{dygraph_device.1} parent=1 // pred_check_branch
      %12 = sbr.rel (0) target = $region5
    $region4: #{dygraph_device.1} parent=1 // pred_region
      _
    $region5: #{dygraph_device.1} parent=1 // pred_fallthru
      _
    // Predicated region
    $region6: #{dygraph_device.1} parent=1 // pred_check
      _
    $region7: #{dygraph_device.1} parent=1 // pred_check_branch
      %14 = sbr.rel (0) target = $region9
    $region8: #{dygraph_device.1} parent=1 // pred_region
      _
    $region9: #{dygraph_device.1} parent=1 // pred_fallthru
      _
    // Predicated region
    $region10: #{dygraph_device.1} parent=1 // pred_check
      _
    $region11: #{dygraph_device.1} parent=1 // pred_check_branch
      %16 = sbr.rel (0) target = $region13
    $region12: #{dygraph_device.1} parent=1 // pred_region
      _
    $region13: #{dygraph_device.1} parent=1 // pred_fallthru
      _
    // Predicated region
    $region14: #{dygraph_device.1} parent=1 // pred_check
      _
    $region15: #{dygraph_device.1} parent=1 // pred_check_branch
      %18 = sbr.rel (0) target = $region17
    $region16: #{dygraph_device.1} parent=1 // pred_region
      _
    $region17: #{dygraph_device.1} parent=1 // pred_fallthru
      _
    %v19 = vld [vmem:[%s1] sm:$0xf]
    %v20 = vld [vmem:[%s1 + $0x4] sm:$0xf]
    %v21 = vld [vmem:[%s1 + $0x8] sm:$0xf]
    %v22 = vld [vmem:[%s1 + $0xc] sm:$0xf]
    %v23 = vld [vmem:[%s1 + $0x10] sm:$0xf]
    %v24 = vld [vmem:[%s1 + $0x14] sm:$0xf]
    %v25 = vld [vmem:[%s1 + $0x18] sm:$0xf]
    %v26 = vld [vmem:[%s1 + $0x1c] sm:$0xf]
    %v27 = vld [vmem:[%s1 + $0x20] sm:$0xf]
    %v28 = vld [vmem:[%s1 + $0x24] sm:$0xf]
    %v29 = vld [vmem:[%s1 + $0x28] sm:$0xf]
    %v30 = vld [vmem:[%s1 + $0x2c] sm:$0xf]
    %v31 = vld [vmem:[%s2] sm:$0xf]
    %v32 = vld [vmem:[%s2 + $0x4] sm:$0xf]
    %v33 = vld [vmem:[%s2 + $0x8] sm:$0xf]
    %v34 = vld [vmem:[%s2 + $0xc] sm:$0xf]
    %v35 = vld [vmem:[%s2 + $0x10] sm:$0xf]
    %v36 = vld [vmem:[%s2 + $0x14] sm:$0xf]
    %v37 = vld [vmem:[%s2 + $0x18] sm:$0xf]
    %v38 = vld [vmem:[%s2 + $0x1c] sm:$0xf]
    %v39 = vld [vmem:[%s2 + $0x20] sm:$0xf]
    %v40 = vld [vmem:[%s2 + $0x24] sm:$0xf]
    %v41 = vld [vmem:[%s2 + $0x28] sm:$0xf]
    %v42 = vld [vmem:[%s2 + $0x2c] sm:$0xf]
    %v43 = vld [vmem:[%s2 + $0x30] sm:$0xf]
    %v44 = vld [vmem:[%s2 + $0x34] sm:$0xf]
    %v45 = vld [vmem:[%s2 + $0x38] sm:$0xf]
    %v46 = vld [vmem:[%s2 + $0x3c] sm:$0xf]
    %v59 = vunpack.c.l.b16 %v19
    %v60 = vunpack.c.l.b16 %v20
    %v61 = vunpack.c.l.b16 %v21
    %v62 = vunpack.c.l.b16 %v22
    %v63 = vunpack.c.l.b16 %v23
    %v64 = vunpack.c.l.b16 %v24
    %v65 = vunpack.c.l.b16 %v25
    %v66 = vunpack.c.l.b16 %v26
    %v67 = vunpack.c.l.b16 %v27
    %v68 = vunpack.c.l.b16 %v28
    %v69 = vunpack.c.l.b16 %v29
    %v70 = vunpack.c.l.b16 %v30
    %v71 = vpack.c.b16 %v60, %v59
    %v72 = vpack.c.b16 %v62, %v61
    %v73 = vpack.c.b16 %v64, %v63
    %v74 = vpack.c.b16 %v66, %v65
    %v75 = vpack.c.b16 %v68, %v67
    %v76 = vpack.c.b16 %v70, %v69
    %v99 = vunpack.c.l.b16 %v31
    %v100 = vunpack.c.l.b16 %v32
    %v101 = vunpack.c.l.b16 %v33
    %v102 = vunpack.c.l.b16 %v34
    %v103 = vunpack.c.l.b16 %v35
    %v104 = vunpack.c.l.b16 %v36
    %v105 = vunpack.c.l.b16 %v37
    %v106 = vunpack.c.l.b16 %v38
    %v107 = vunpack.c.l.b16 %v39
    %v108 = vunpack.c.l.b16 %v40
    %v109 = vunpack.c.l.b16 %v41
    %v110 = vunpack.c.l.b16 %v42
    %v111 = vunpack.c.l.b16 %v43
    %v112 = vunpack.c.l.b16 %v44
    %v113 = vunpack.c.l.b16 %v45
    %v114 = vunpack.c.l.b16 %v46
    %v115 = vpack.c.b16 %v100, %v99
    %v116 = vpack.c.b16 %v102, %v101
    %v117 = vpack.c.b16 %v104, %v103
    %v118 = vpack.c.b16 %v106, %v105
    %v119 = vpack.c.b16 %v108, %v107
    %v120 = vpack.c.b16 %v110, %v109
    %v121 = vpack.c.b16 %v112, %v111
    %v122 = vpack.c.b16 %v114, %v113
    %131 = vmatpush.bf16.msra.mxu0 %v122
    %132 = vmatpush.bf16.msra.mxu0 %v121
    %133 = vmatpush.bf16.msra.mxu0 %v120
    %134 = vmatpush.bf16.msra.mxu0 %v119
    %135 = vmatpush.bf16.msra.mxu0 %v118
    %136 = vmatpush.bf16.msra.mxu0 %v117
    %137 = vmatpush.bf16.msra.mxu0 %v116
    %138 = vmatpush.bf16.msra.mxu0 %v115
    %139 = vmatmul.bf16.gmra.mxu0 %v71
    %v140 = vpop.f32.mrf.mxu0
    %v141 = vadd.f32 0.0, %v140
    %v142 = vpop.f32.mrf.mxu0
    %v143 = vadd.f32 0.0, %v142
    %144 = vmatmul.bf16.gmra.mxu0 %v72
    %v145 = vpop.f32.mrf.mxu0
    %v146 = vadd.f32 0.0, %v145
    %v147 = vpop.f32.mrf.mxu0
    %v148 = vadd.f32 0.0, %v147
    %149 = vmatmul.bf16.gmra.mxu0 %v73
    %v150 = vpop.f32.mrf.mxu0
    %v151 = vadd.f32 0.0, %v150
    %v152 = vpop.f32.mrf.mxu0
    %v153 = vadd.f32 0.0, %v152
    %154 = vmatmul.bf16.gmra.mxu0 %v74
    %v155 = vpop.f32.mrf.mxu0
    %v156 = vadd.f32 0.0, %v155
    %v157 = vpop.f32.mrf.mxu0
    %v158 = vadd.f32 0.0, %v157
    %159 = vmatmul.bf16.gmra.mxu0 %v75
    %v160 = vpop.f32.mrf.mxu0
    %v161 = vadd.f32 0.0, %v160
    %v162 = vpop.f32.mrf.mxu0
    %v163 = vadd.f32 0.0, %v162
    %164 = vmatmul.bf16.gmra.mxu0 %v76
    %v165 = vpop.f32.mrf.mxu0
    %v166 = vadd.f32 0.0, %v165
    %v167 = vpop.f32.mrf.mxu0
    %v168 = vadd.f32 0.0, %v167
    %169 = vdwg.mxu0
    %v170 = vmax.f32 %v141, 0.0
    %v171 = vmax.f32 %v143, 0.0
    %v172 = vmax.f32 %v146, 0.0
    %v173 = vmax.f32 %v148, 0.0
    %v174 = vmax.f32 %v151, 0.0
    %v175 = vmax.f32 %v153, 0.0
    %v176 = vmax.f32 %v156, 0.0
    %v177 = vmax.f32 %v158, 0.0
    %v178 = vmax.f32 %v161, 0.0
    %v179 = vmax.f32 %v163, 0.0
    %v180 = vmax.f32 %v166, 0.0
    %v181 = vmax.f32 %v168, 0.0
    %v182 = vpack.c.bf16 %v171, %v170
    %v183 = vpack.c.bf16 %v173, %v172
    %v184 = vpack.c.bf16 %v175, %v174
    %v185 = vpack.c.bf16 %v177, %v176
    %v186 = vpack.c.bf16 %v179, %v178
    %v187 = vpack.c.bf16 %v181, %v180
    %s188 = scalar_lea.vmem %s2, 64
    %v189 = vld [vmem:[%s188] sm:$0xf]
    %v190 = vld [vmem:[%s188 + $0x4] sm:$0xf]
    %v191 = vld [vmem:[%s188 + $0x8] sm:$0xf]
    %v192 = vld [vmem:[%s188 + $0xc] sm:$0xf]
    %v193 = vld [vmem:[%s188 + $0x10] sm:$0xf]
    %v194 = vld [vmem:[%s188 + $0x14] sm:$0xf]
    %v195 = vld [vmem:[%s188 + $0x18] sm:$0xf]
    %v196 = vld [vmem:[%s188 + $0x1c] sm:$0xf]
    %v197 = vld [vmem:[%s188 + $0x20] sm:$0xf]
    %v198 = vld [vmem:[%s188 + $0x24] sm:$0xf]
    %v199 = vld [vmem:[%s188 + $0x28] sm:$0xf]
    %v200 = vld [vmem:[%s188 + $0x2c] sm:$0xf]
    %v201 = vld [vmem:[%s188 + $0x30] sm:$0xf]
    %v202 = vld [vmem:[%s188 + $0x34] sm:$0xf]
    %v203 = vld [vmem:[%s188 + $0x38] sm:$0xf]
    %v204 = vld [vmem:[%s188 + $0x3c] sm:$0xf]
    %v221 = vunpack.c.l.b16 %v189
    %v222 = vunpack.c.l.b16 %v190
    %v223 = vunpack.c.l.b16 %v191
    %v224 = vunpack.c.l.b16 %v192
    %v225 = vunpack.c.l.b16 %v193
    %v226 = vunpack.c.l.b16 %v194
    %v227 = vunpack.c.l.b16 %v195
    %v228 = vunpack.c.l.b16 %v196
    %v229 = vunpack.c.l.b16 %v197
    %v230 = vunpack.c.l.b16 %v198
    %v231 = vunpack.c.l.b16 %v199
    %v232 = vunpack.c.l.b16 %v200
    %v233 = vunpack.c.l.b16 %v201
    %v234 = vunpack.c.l.b16 %v202
    %v235 = vunpack.c.l.b16 %v203
    %v236 = vunpack.c.l.b16 %v204
    %v237 = vpack.c.b16 %v222, %v221
    %v238 = vpack.c.b16 %v224, %v223
    %v239 = vpack.c.b16 %v226, %v225
    %v240 = vpack.c.b16 %v228, %v227
    %v241 = vpack.c.b16 %v230, %v229
    %v242 = vpack.c.b16 %v232, %v231
    %v243 = vpack.c.b16 %v234, %v233
    %v244 = vpack.c.b16 %v236, %v235
    %253 = vmatpush.bf16.msra.mxu0 %v244
    %254 = vmatpush.bf16.msra.mxu0 %v243
    %255 = vmatpush.bf16.msra.mxu0 %v242
    %256 = vmatpush.bf16.msra.mxu0 %v241
    %257 = vmatpush.bf16.msra.mxu0 %v240
    %258 = vmatpush.bf16.msra.mxu0 %v239
    %259 = vmatpush.bf16.msra.mxu0 %v238
    %260 = vmatpush.bf16.msra.mxu0 %v237
    %261 = vmatmul.bf16.gmra.mxu0 %v182
    %v262 = vpop.f32.mrf.mxu0
    %v263 = vadd.f32 0.0, %v262
    %v264 = vpop.f32.mrf.mxu0
    %v265 = vadd.f32 0.0, %v264
    %266 = vmatmul.bf16.gmra.mxu0 %v183
    %v267 = vpop.f32.mrf.mxu0
    %v268 = vadd.f32 0.0, %v267
    %v269 = vpop.f32.mrf.mxu0
    %v270 = vadd.f32 0.0, %v269
    %271 = vmatmul.bf16.gmra.mxu0 %v184
    %v272 = vpop.f32.mrf.mxu0
    %v273 = vadd.f32 0.0, %v272
    %v274 = vpop.f32.mrf.mxu0
    %v275 = vadd.f32 0.0, %v274
    %276 = vmatmul.bf16.gmra.mxu0 %v185
    %v277 = vpop.f32.mrf.mxu0
    %v278 = vadd.f32 0.0, %v277
    %v279 = vpop.f32.mrf.mxu0
    %v280 = vadd.f32 0.0, %v279
    %281 = vmatmul.bf16.gmra.mxu0 %v186
    %v282 = vpop.f32.mrf.mxu0
    %v283 = vadd.f32 0.0, %v282
    %v284 = vpop.f32.mrf.mxu0
    %v285 = vadd.f32 0.0, %v284
    %286 = vmatmul.bf16.gmra.mxu0 %v187
    %v287 = vpop.f32.mrf.mxu0
    %v288 = vadd.f32 0.0, %v287
    %v289 = vpop.f32.mrf.mxu0
    %v290 = vadd.f32 0.0, %v289
    %291 = vdwg.mxu0
    %v292 = vlaneseq
    %v293 = vand.u32 %v292, 127
    %v294 = vld [vmem:[%s3] sm:$0xff]
    %v295 = vld [vmem:[%s3 + $0x8] sm:$0xff]
    %v296 = vld [vmem:[%s3 + $0x10] sm:$0xff]
    %v297 = vld [vmem:[%s3 + $0x18] sm:$0xff]
    %v298 = vld [vmem:[%s3 + $0x20] sm:$0xff]
    %v299 = vld [vmem:[%s3 + $0x28] sm:$0xff]
    %v300 = vld [vmem:[%s3 + $0x30] sm:$0xff]
    %v301 = vld [vmem:[%s3 + $0x38] sm:$0xff]
    %v302 = vld [vmem:[%s3 + $0x40] sm:$0xff]
    %v303 = vld [vmem:[%s3 + $0x48] sm:$0xff]
    %v304 = vld [vmem:[%s3 + $0x50] sm:$0xff]
    %v305 = vld [vmem:[%s3 + $0x58] sm:$0xff]
    %v306 = vld [vmem:[%s3 + $0x60] sm:$0xff]
    %v307 = vld [vmem:[%s3 + $0x68] sm:$0xff]
    %v308 = vld [vmem:[%s3 + $0x70] sm:$0xff]
    %v309 = vld [vmem:[%s3 + $0x78] sm:$0xff]
    %v310 = vld [vmem:[%s3 + $0x80] sm:$0xff]
    %v311 = vld [vmem:[%s3 + $0x88] sm:$0xff]
    %v312 = vld [vmem:[%s3 + $0x90] sm:$0xff]
    %v313 = vld [vmem:[%s3 + $0x98] sm:$0xff]
    %v314 = vld [vmem:[%s3 + $0xa0] sm:$0xff]
    %v315 = vld [vmem:[%s3 + $0xa8] sm:$0xff]
    %v316 = vld [vmem:[%s3 + $0xb0] sm:$0xff]
    %v317 = vld [vmem:[%s3 + $0xb8] sm:$0xff]
    %v318 = vld [vmem:[%s3 + $0xc0] sm:$0xff]
    %v319 = vld [vmem:[%s3 + $0xc8] sm:$0xff]
    %v320 = vld [vmem:[%s3 + $0xd0] sm:$0xff]
    %v321 = vld [vmem:[%s3 + $0xd8] sm:$0xff]
    %v322 = vld [vmem:[%s3 + $0xe0] sm:$0xff]
    %v323 = vld [vmem:[%s3 + $0xe8] sm:$0xff]
    %v324 = vld [vmem:[%s3 + $0xf0] sm:$0xff]
    %v325 = vld [vmem:[%s3 + $0xf8] sm:$0xff]
    %v326 = vld [vmem:[%s3 + $0x100] sm:$0xff]
    %v327 = vld [vmem:[%s3 + $0x108] sm:$0xff]
    %v328 = vld [vmem:[%s3 + $0x110] sm:$0xff]
    %v329 = vld [vmem:[%s3 + $0x118] sm:$0xff]
    %v330 = vld [vmem:[%s3 + $0x120] sm:$0xff]
    %v331 = vld [vmem:[%s3 + $0x128] sm:$0xff]
    %v332 = vld [vmem:[%s3 + $0x130] sm:$0xff]
    %v333 = vld [vmem:[%s3 + $0x138] sm:$0xff]
    %v334 = vld [vmem:[%s3 + $0x140] sm:$0xff]
    %v335 = vld [vmem:[%s3 + $0x148] sm:$0xff]
    %v336 = vld [vmem:[%s3 + $0x150] sm:$0xff]
    %v337 = vld [vmem:[%s3 + $0x158] sm:$0xff]
    %v338 = vld [vmem:[%s3 + $0x160] sm:$0xff]
    %v339 = vld [vmem:[%s3 + $0x168] sm:$0xff]
    %v340 = vld [vmem:[%s3 + $0x170] sm:$0xff]
    %v341 = vld [vmem:[%s3 + $0x178] sm:$0xff]
    %v342 = vld [vmem:[%s3 + $0x180] sm:$0xff]
    %v343 = vld [vmem:[%s3 + $0x188] sm:$0xff]
    %v344 = vld [vmem:[%s3 + $0x190] sm:$0xff]
    %v345 = vld [vmem:[%s3 + $0x198] sm:$0xff]
    %v346 = vld [vmem:[%s3 + $0x1a0] sm:$0xff]
    %v347 = vld [vmem:[%s3 + $0x1a8] sm:$0xff]
    %v348 = vld [vmem:[%s3 + $0x1b0] sm:$0xff]
    %v349 = vld [vmem:[%s3 + $0x1b8] sm:$0xff]
    %v350 = vld [vmem:[%s3 + $0x1c0] sm:$0xff]
    %v351 = vld [vmem:[%s3 + $0x1c8] sm:$0xff]
    %v352 = vld [vmem:[%s3 + $0x1d0] sm:$0xff]
    %v353 = vld [vmem:[%s3 + $0x1d8] sm:$0xff]
    %v354 = vld [vmem:[%s3 + $0x1e0] sm:$0xff]
    %v355 = vld [vmem:[%s3 + $0x1e8] sm:$0xff]
    %v356 = vld [vmem:[%s3 + $0x1f0] sm:$0xff]
    %v357 = vld [vmem:[%s3 + $0x1f8] sm:$0xff]
    %v358 = vld [vmem:[%s3 + $0x200] sm:$0xff]
    %v359 = vld [vmem:[%s3 + $0x208] sm:$0xff]
    %v360 = vld [vmem:[%s3 + $0x210] sm:$0xff]
    %v361 = vld [vmem:[%s3 + $0x218] sm:$0xff]
    %v362 = vld [vmem:[%s3 + $0x220] sm:$0xff]
    %v363 = vld [vmem:[%s3 + $0x228] sm:$0xff]
    %v364 = vld [vmem:[%s3 + $0x230] sm:$0xff]
    %v365 = vld [vmem:[%s3 + $0x238] sm:$0xff]
    %v366 = vld [vmem:[%s3 + $0x240] sm:$0xff]
    %v367 = vld [vmem:[%s3 + $0x248] sm:$0xff]
    %v368 = vld [vmem:[%s3 + $0x250] sm:$0xff]
    %v369 = vld [vmem:[%s3 + $0x258] sm:$0xff]
    %v370 = vld [vmem:[%s3 + $0x260] sm:$0xff]
    %v371 = vld [vmem:[%s3 + $0x268] sm:$0xff]
    %v372 = vld [vmem:[%s3 + $0x270] sm:$0xff]
    %v373 = vld [vmem:[%s3 + $0x278] sm:$0xff]
    %v374 = vld [vmem:[%s3 + $0x280] sm:$0xff]
    %v375 = vld [vmem:[%s3 + $0x288] sm:$0xff]
    %v376 = vld [vmem:[%s3 + $0x290] sm:$0xff]
    %v377 = vld [vmem:[%s3 + $0x298] sm:$0xff]
    %v378 = vld [vmem:[%s3 + $0x2a0] sm:$0xff]
    %v379 = vld [vmem:[%s3 + $0x2a8] sm:$0xff]
    %v380 = vld [vmem:[%s3 + $0x2b0] sm:$0xff]
    %v381 = vld [vmem:[%s3 + $0x2b8] sm:$0xff]
    %v382 = vld [vmem:[%s3 + $0x2c0] sm:$0xff]
    %v383 = vld [vmem:[%s3 + $0x2c8] sm:$0xff]
    %v384 = vld [vmem:[%s3 + $0x2d0] sm:$0xff]
    %v385 = vld [vmem:[%s3 + $0x2d8] sm:$0xff]
    %v386 = vld [vmem:[%s3 + $0x2e0] sm:$0xff]
    %v387 = vld [vmem:[%s3 + $0x2e8] sm:$0xff]
    %v388 = vld [vmem:[%s3 + $0x2f0] sm:$0xff]
    %v389 = vld [vmem:[%s3 + $0x2f8] sm:$0xff]
    %v390 = vld [vmem:[%s3 + $0x300] sm:$0xff]
    %v391 = vld [vmem:[%s3 + $0x308] sm:$0xff]
    %v392 = vld [vmem:[%s3 + $0x310] sm:$0xff]
    %v393 = vld [vmem:[%s3 + $0x318] sm:$0xff]
    %v394 = vld [vmem:[%s3 + $0x320] sm:$0xff]
    %v395 = vld [vmem:[%s3 + $0x328] sm:$0xff]
    %v396 = vld [vmem:[%s3 + $0x330] sm:$0xff]
    %v397 = vld [vmem:[%s3 + $0x338] sm:$0xff]
    %v398 = vld [vmem:[%s3 + $0x340] sm:$0xff]
    %v399 = vld [vmem:[%s3 + $0x348] sm:$0xff]
    %v400 = vld [vmem:[%s3 + $0x350] sm:$0xff]
    %v401 = vld [vmem:[%s3 + $0x358] sm:$0xff]
    %v402 = vld [vmem:[%s3 + $0x360] sm:$0xff]
    %v403 = vld [vmem:[%s3 + $0x368] sm:$0xff]
    %v404 = vld [vmem:[%s3 + $0x370] sm:$0xff]
    %v405 = vld [vmem:[%s3 + $0x378] sm:$0xff]
    %v406 = vld [vmem:[%s3 + $0x380] sm:$0xff]
    %v407 = vld [vmem:[%s3 + $0x388] sm:$0xff]
    %v408 = vld [vmem:[%s3 + $0x390] sm:$0xff]
    %v409 = vld [vmem:[%s3 + $0x398] sm:$0xff]
    %v410 = vld [vmem:[%s3 + $0x3a0] sm:$0xff]
    %v411 = vld [vmem:[%s3 + $0x3a8] sm:$0xff]
    %v412 = vld [vmem:[%s3 + $0x3b0] sm:$0xff]
    %v413 = vld [vmem:[%s3 + $0x3b8] sm:$0xff]
    %v414 = vld [vmem:[%s3 + $0x3c0] sm:$0xff]
    %v415 = vld [vmem:[%s3 + $0x3c8] sm:$0xff]
    %v416 = vld [vmem:[%s3 + $0x3d0] sm:$0xff]
    %v417 = vld [vmem:[%s3 + $0x3d8] sm:$0xff]
    %v418 = vld [vmem:[%s3 + $0x3e0] sm:$0xff]
    %v419 = vld [vmem:[%s3 + $0x3e8] sm:$0xff]
    %v420 = vld [vmem:[%s3 + $0x3f0] sm:$0xff]
    %v421 = vld [vmem:[%s3 + $0x3f8] sm:$0xff]
    %v422 = vld [vmem:[%s3 + $0x400] sm:$0xff]
    %v423 = vld [vmem:[%s3 + $0x408] sm:$0xff]
    %v424 = vld [vmem:[%s3 + $0x410] sm:$0xff]
    %v425 = vld [vmem:[%s3 + $0x418] sm:$0xff]
    %v426 = vld [vmem:[%s3 + $0x420] sm:$0xff]
    %v427 = vld [vmem:[%s3 + $0x428] sm:$0xff]
    %v428 = vld [vmem:[%s3 + $0x430] sm:$0xff]
    %v429 = vld [vmem:[%s3 + $0x438] sm:$0xff]
    %v430 = vld [vmem:[%s3 + $0x440] sm:$0xff]
    %v431 = vld [vmem:[%s3 + $0x448] sm:$0xff]
    %v432 = vld [vmem:[%s3 + $0x450] sm:$0xff]
    %v433 = vld [vmem:[%s3 + $0x458] sm:$0xff]
    %v434 = vld [vmem:[%s3 + $0x460] sm:$0xff]
    %v435 = vld [vmem:[%s3 + $0x468] sm:$0xff]
    %v436 = vld [vmem:[%s3 + $0x470] sm:$0xff]
    %v437 = vld [vmem:[%s3 + $0x478] sm:$0xff]
    %v438 = vld [vmem:[%s3 + $0x480] sm:$0xff]
    %v439 = vld [vmem:[%s3 + $0x488] sm:$0xff]
    %v440 = vld [vmem:[%s3 + $0x490] sm:$0xff]
    %v441 = vld [vmem:[%s3 + $0x498] sm:$0xff]
    %v442 = vld [vmem:[%s3 + $0x4a0] sm:$0xff]
    %v443 = vld [vmem:[%s3 + $0x4a8] sm:$0xff]
    %v444 = vld [vmem:[%s3 + $0x4b0] sm:$0xff]
    %v445 = vld [vmem:[%s3 + $0x4b8] sm:$0xff]
    %v446 = vld [vmem:[%s3 + $0x4c0] sm:$0xff]
    %v447 = vld [vmem:[%s3 + $0x4c8] sm:$0xff]
    %v448 = vld [vmem:[%s3 + $0x4d0] sm:$0xff]
    %v449 = vld [vmem:[%s3 + $0x4d8] sm:$0xff]
    %v450 = vld [vmem:[%s3 + $0x4e0] sm:$0xff]
    %v451 = vld [vmem:[%s3 + $0x4e8] sm:$0xff]
    %v452 = vld [vmem:[%s3 + $0x4f0] sm:$0xff]
    %v453 = vld [vmem:[%s3 + $0x4f8] sm:$0xff]
    %v454 = vld [vmem:[%s3 + $0x500] sm:$0xff]
    %v455 = vld [vmem:[%s3 + $0x508] sm:$0xff]
    %v456 = vld [vmem:[%s3 + $0x510] sm:$0xff]
    %v457 = vld [vmem:[%s3 + $0x518] sm:$0xff]
    %v458 = vld [vmem:[%s3 + $0x520] sm:$0xff]
    %v459 = vld [vmem:[%s3 + $0x528] sm:$0xff]
    %v460 = vld [vmem:[%s3 + $0x530] sm:$0xff]
    %v461 = vld [vmem:[%s3 + $0x538] sm:$0xff]
    %v462 = vld [vmem:[%s3 + $0x540] sm:$0xff]
    %v463 = vld [vmem:[%s3 + $0x548] sm:$0xff]
    %v464 = vld [vmem:[%s3 + $0x550] sm:$0xff]
    %v465 = vld [vmem:[%s3 + $0x558] sm:$0xff]
    %v466 = vld [vmem:[%s3 + $0x560] sm:$0xff]
    %v467 = vld [vmem:[%s3 + $0x568] sm:$0xff]
    %v468 = vld [vmem:[%s3 + $0x570] sm:$0xff]
    %v469 = vld [vmem:[%s3 + $0x578] sm:$0xff]
    %v470 = vld [vmem:[%s3 + $0x580] sm:$0xff]
    %v471 = vld [vmem:[%s3 + $0x588] sm:$0xff]
    %v472 = vld [vmem:[%s3 + $0x590] sm:$0xff]
    %v473 = vld [vmem:[%s3 + $0x598] sm:$0xff]
    %v474 = vld [vmem:[%s3 + $0x5a0] sm:$0xff]
    %v475 = vld [vmem:[%s3 + $0x5a8] sm:$0xff]
    %v476 = vld [vmem:[%s3 + $0x5b0] sm:$0xff]
    %v477 = vld [vmem:[%s3 + $0x5b8] sm:$0xff]
    %v478 = vld [vmem:[%s3 + $0x5c0] sm:$0xff]
    %v479 = vld [vmem:[%s3 + $0x5c8] sm:$0xff]
    %v480 = vld [vmem:[%s3 + $0x5d0] sm:$0xff]
    %v481 = vld [vmem:[%s3 + $0x5d8] sm:$0xff]
    %v482 = vld [vmem:[%s3 + $0x5e0] sm:$0xff]
    %v483 = vld [vmem:[%s3 + $0x5e8] sm:$0xff]
    %v484 = vld [vmem:[%s3 + $0x5f0] sm:$0xff]
    %v485 = vld [vmem:[%s3 + $0x5f8] sm:$0xff]
    %486 = vset.pattern.permute.xlu0 0
    %487 = vperm.xlu0 %486, %v294
    %v488 = vpop.permute.xlu0 %487
    %489 = vset.pattern.permute.xlu0 0
    %490 = vperm.xlu0 %489, %v295
    %v491 = vpop.permute.xlu0 %490
    %492 = vset.pattern.permute.xlu0 0
    %493 = vperm.xlu0 %492, %v296
    %v494 = vpop.permute.xlu0 %493
    %495 = vset.pattern.permute.xlu0 0
    %496 = vperm.xlu0 %495, %v297
    %v497 = vpop.permute.xlu0 %496
    %498 = vset.pattern.permute.xlu0 0
    %499 = vperm.xlu0 %498, %v298
    %v500 = vpop.permute.xlu0 %499
    %501 = vset.pattern.permute.xlu0 0
    %502 = vperm.xlu0 %501, %v299
    %v503 = vpop.permute.xlu0 %502
    %504 = vset.pattern.permute.xlu0 0
    %505 = vperm.xlu0 %504, %v300
    %v506 = vpop.permute.xlu0 %505
    %507 = vset.pattern.permute.xlu0 0
    %508 = vperm.xlu0 %507, %v301
    %v509 = vpop.permute.xlu0 %508
    %510 = vset.pattern.permute.xlu0 0
    %511 = vperm.xlu0 %510, %v302
    %v512 = vpop.permute.xlu0 %511
    %513 = vset.pattern.permute.xlu0 0
    %514 = vperm.xlu0 %513, %v303
    %v515 = vpop.permute.xlu0 %514
    %516 = vset.pattern.permute.xlu0 0
    %517 = vperm.xlu0 %516, %v304
    %v518 = vpop.permute.xlu0 %517
    %519 = vset.pattern.permute.xlu0 0
    %520 = vperm.xlu0 %519, %v305
    %v521 = vpop.permute.xlu0 %520
    %522 = vset.pattern.permute.xlu0 0
    %523 = vperm.xlu0 %522, %v306
    %v524 = vpop.permute.xlu0 %523
    %525 = vset.pattern.permute.xlu0 0
    %526 = vperm.xlu0 %525, %v307
    %v527 = vpop.permute.xlu0 %526
    %528 = vset.pattern.permute.xlu0 0
    %529 = vperm.xlu0 %528, %v308
    %v530 = vpop.permute.xlu0 %529
    %531 = vset.pattern.permute.xlu0 0
    %532 = vperm.xlu0 %531, %v309
    %v533 = vpop.permute.xlu0 %532
    %534 = vset.pattern.permute.xlu0 0
    %535 = vperm.xlu0 %534, %v310
    %v536 = vpop.permute.xlu0 %535
    %537 = vset.pattern.permute.xlu0 0
    %538 = vperm.xlu0 %537, %v311
    %v539 = vpop.permute.xlu0 %538
    %540 = vset.pattern.permute.xlu0 0
    %541 = vperm.xlu0 %540, %v312
    %v542 = vpop.permute.xlu0 %541
    %543 = vset.pattern.permute.xlu0 0
    %544 = vperm.xlu0 %543, %v313
    %v545 = vpop.permute.xlu0 %544
    %546 = vset.pattern.permute.xlu0 0
    %547 = vperm.xlu0 %546, %v314
    %v548 = vpop.permute.xlu0 %547
    %549 = vset.pattern.permute.xlu0 0
    %550 = vperm.xlu0 %549, %v315
    %v551 = vpop.permute.xlu0 %550
    %552 = vset.pattern.permute.xlu0 0
    %553 = vperm.xlu0 %552, %v316
    %v554 = vpop.permute.xlu0 %553
    %555 = vset.pattern.permute.xlu0 0
    %556 = vperm.xlu0 %555, %v317
    %v557 = vpop.permute.xlu0 %556
    %558 = vset.pattern.permute.xlu0 0
    %559 = vperm.xlu0 %558, %v318
    %v560 = vpop.permute.xlu0 %559
    %561 = vset.pattern.permute.xlu0 0
    %562 = vperm.xlu0 %561, %v319
    %v563 = vpop.permute.xlu0 %562
    %564 = vset.pattern.permute.xlu0 0
    %565 = vperm.xlu0 %564, %v320
    %v566 = vpop.permute.xlu0 %565
    %567 = vset.pattern.permute.xlu0 0
    %568 = vperm.xlu0 %567, %v321
    %v569 = vpop.permute.xlu0 %568
    %570 = vset.pattern.permute.xlu0 0
    %571 = vperm.xlu0 %570, %v322
    %v572 = vpop.permute.xlu0 %571
    %573 = vset.pattern.permute.xlu0 0
    %574 = vperm.xlu0 %573, %v323
    %v575 = vpop.permute.xlu0 %574
    %576 = vset.pattern.permute.xlu0 0
    %577 = vperm.xlu0 %576, %v324
    %v578 = vpop.permute.xlu0 %577
    %579 = vset.pattern.permute.xlu0 0
    %580 = vperm.xlu0 %579, %v325
    %v581 = vpop.permute.xlu0 %580
    %582 = vset.pattern.permute.xlu0 0
    %583 = vperm.xlu0 %582, %v326
    %v584 = vpop.permute.xlu0 %583
    %585 = vset.pattern.permute.xlu0 0
    %586 = vperm.xlu0 %585, %v327
    %v587 = vpop.permute.xlu0 %586
    %588 = vset.pattern.permute.xlu0 0
    %589 = vperm.xlu0 %588, %v328
    %v590 = vpop.permute.xlu0 %589
    %591 = vset.pattern.permute.xlu0 0
    %592 = vperm.xlu0 %591, %v329
    %v593 = vpop.permute.xlu0 %592
    %594 = vset.pattern.permute.xlu0 0
    %595 = vperm.xlu0 %594, %v330
    %v596 = vpop.permute.xlu0 %595
    %597 = vset.pattern.permute.xlu0 0
    %598 = vperm.xlu0 %597, %v331
    %v599 = vpop.permute.xlu0 %598
    %600 = vset.pattern.permute.xlu0 0
    %601 = vperm.xlu0 %600, %v332
    %v602 = vpop.permute.xlu0 %601
    %603 = vset.pattern.permute.xlu0 0
    %604 = vperm.xlu0 %603, %v333
    %v605 = vpop.permute.xlu0 %604
    %606 = vset.pattern.permute.xlu0 0
    %607 = vperm.xlu0 %606, %v334
    %v608 = vpop.permute.xlu0 %607
    %609 = vset.pattern.permute.xlu0 0
    %610 = vperm.xlu0 %609, %v335
    %v611 = vpop.permute.xlu0 %610
    %612 = vset.pattern.permute.xlu0 0
    %613 = vperm.xlu0 %612, %v336
    %v614 = vpop.permute.xlu0 %613
    %615 = vset.pattern.permute.xlu0 0
    %616 = vperm.xlu0 %615, %v337
    %v617 = vpop.permute.xlu0 %616
    %618 = vset.pattern.permute.xlu0 0
    %619 = vperm.xlu0 %618, %v338
    %v620 = vpop.permute.xlu0 %619
    %621 = vset.pattern.permute.xlu0 0
    %622 = vperm.xlu0 %621, %v339
    %v623 = vpop.permute.xlu0 %622
    %624 = vset.pattern.permute.xlu0 0
    %625 = vperm.xlu0 %624, %v340
    %v626 = vpop.permute.xlu0 %625
    %627 = vset.pattern.permute.xlu0 0
    %628 = vperm.xlu0 %627, %v341
    %v629 = vpop.permute.xlu0 %628
    %630 = vset.pattern.permute.xlu0 0
    %631 = vperm.xlu0 %630, %v342
    %v632 = vpop.permute.xlu0 %631
    %633 = vset.pattern.permute.xlu0 0
    %634 = vperm.xlu0 %633, %v343
    %v635 = vpop.permute.xlu0 %634
    %636 = vset.pattern.permute.xlu0 0
    %637 = vperm.xlu0 %636, %v344
    %v638 = vpop.permute.xlu0 %637
    %639 = vset.pattern.permute.xlu0 0
    %640 = vperm.xlu0 %639, %v345
    %v641 = vpop.permute.xlu0 %640
    %642 = vset.pattern.permute.xlu0 0
    %643 = vperm.xlu0 %642, %v346
    %v644 = vpop.permute.xlu0 %643
    %645 = vset.pattern.permute.xlu0 0
    %646 = vperm.xlu0 %645, %v347
    %v647 = vpop.permute.xlu0 %646
    %648 = vset.pattern.permute.xlu0 0
    %649 = vperm.xlu0 %648, %v348
    %v650 = vpop.permute.xlu0 %649
    %651 = vset.pattern.permute.xlu0 0
    %652 = vperm.xlu0 %651, %v349
    %v653 = vpop.permute.xlu0 %652
    %654 = vset.pattern.permute.xlu0 0
    %655 = vperm.xlu0 %654, %v350
    %v656 = vpop.permute.xlu0 %655
    %657 = vset.pattern.permute.xlu0 0
    %658 = vperm.xlu0 %657, %v351
    %v659 = vpop.permute.xlu0 %658
    %660 = vset.pattern.permute.xlu0 0
    %661 = vperm.xlu0 %660, %v352
    %v662 = vpop.permute.xlu0 %661
    %663 = vset.pattern.permute.xlu0 0
    %664 = vperm.xlu0 %663, %v353
    %v665 = vpop.permute.xlu0 %664
    %666 = vset.pattern.permute.xlu0 0
    %667 = vperm.xlu0 %666, %v354
    %v668 = vpop.permute.xlu0 %667
    %669 = vset.pattern.permute.xlu0 0
    %670 = vperm.xlu0 %669, %v355
    %v671 = vpop.permute.xlu0 %670
    %672 = vset.pattern.permute.xlu0 0
    %673 = vperm.xlu0 %672, %v356
    %v674 = vpop.permute.xlu0 %673
    %675 = vset.pattern.permute.xlu0 0
    %676 = vperm.xlu0 %675, %v357
    %v677 = vpop.permute.xlu0 %676
    %678 = vset.pattern.permute.xlu0 0
    %679 = vperm.xlu0 %678, %v358
    %v680 = vpop.permute.xlu0 %679
    %681 = vset.pattern.permute.xlu0 0
    %682 = vperm.xlu0 %681, %v359
    %v683 = vpop.permute.xlu0 %682
    %684 = vset.pattern.permute.xlu0 0
    %685 = vperm.xlu0 %684, %v360
    %v686 = vpop.permute.xlu0 %685
    %687 = vset.pattern.permute.xlu0 0
    %688 = vperm.xlu0 %687, %v361
    %v689 = vpop.permute.xlu0 %688
    %690 = vset.pattern.permute.xlu0 0
    %691 = vperm.xlu0 %690, %v362
    %v692 = vpop.permute.xlu0 %691
    %693 = vset.pattern.permute.xlu0 0
    %694 = vperm.xlu0 %693, %v363
    %v695 = vpop.permute.xlu0 %694
    %696 = vset.pattern.permute.xlu0 0
    %697 = vperm.xlu0 %696, %v364
    %v698 = vpop.permute.xlu0 %697
    %699 = vset.pattern.permute.xlu0 0
    %700 = vperm.xlu0 %699, %v365
    %v701 = vpop.permute.xlu0 %700
    %702 = vset.pattern.permute.xlu0 0
    %703 = vperm.xlu0 %702, %v366
    %v704 = vpop.permute.xlu0 %703
    %705 = vset.pattern.permute.xlu0 0
    %706 = vperm.xlu0 %705, %v367
    %v707 = vpop.permute.xlu0 %706
    %708 = vset.pattern.permute.xlu0 0
    %709 = vperm.xlu0 %708, %v368
    %v710 = vpop.permute.xlu0 %709
    %711 = vset.pattern.permute.xlu0 0
    %712 = vperm.xlu0 %711, %v369
    %v713 = vpop.permute.xlu0 %712
    %714 = vset.pattern.permute.xlu0 0
    %715 = vperm.xlu0 %714, %v370
    %v716 = vpop.permute.xlu0 %715
    %717 = vset.pattern.permute.xlu0 0
    %718 = vperm.xlu0 %717, %v371
    %v719 = vpop.permute.xlu0 %718
    %720 = vset.pattern.permute.xlu0 0
    %721 = vperm.xlu0 %720, %v372
    %v722 = vpop.permute.xlu0 %721
    %723 = vset.pattern.permute.xlu0 0
    %724 = vperm.xlu0 %723, %v373
    %v725 = vpop.permute.xlu0 %724
    %726 = vset.pattern.permute.xlu0 0
    %727 = vperm.xlu0 %726, %v374
    %v728 = vpop.permute.xlu0 %727
    %729 = vset.pattern.permute.xlu0 0
    %730 = vperm.xlu0 %729, %v375
    %v731 = vpop.permute.xlu0 %730
    %732 = vset.pattern.permute.xlu0 0
    %733 = vperm.xlu0 %732, %v376
    %v734 = vpop.permute.xlu0 %733
    %735 = vset.pattern.permute.xlu0 0
    %736 = vperm.xlu0 %735, %v377
    %v737 = vpop.permute.xlu0 %736
    %738 = vset.pattern.permute.xlu0 0
    %739 = vperm.xlu0 %738, %v378
    %v740 = vpop.permute.xlu0 %739
    %741 = vset.pattern.permute.xlu0 0
    %742 = vperm.xlu0 %741, %v379
    %v743 = vpop.permute.xlu0 %742
    %744 = vset.pattern.permute.xlu0 0
    %745 = vperm.xlu0 %744, %v380
    %v746 = vpop.permute.xlu0 %745
    %747 = vset.pattern.permute.xlu0 0
    %748 = vperm.xlu0 %747, %v381
    %v749 = vpop.permute.xlu0 %748
    %750 = vset.pattern.permute.xlu0 0
    %751 = vperm.xlu0 %750, %v382
    %v752 = vpop.permute.xlu0 %751
    %753 = vset.pattern.permute.xlu0 0
    %754 = vperm.xlu0 %753, %v383
    %v755 = vpop.permute.xlu0 %754
    %756 = vset.pattern.permute.xlu0 0
    %757 = vperm.xlu0 %756, %v384
    %v758 = vpop.permute.xlu0 %757
    %759 = vset.pattern.permute.xlu0 0
    %760 = vperm.xlu0 %759, %v385
    %v761 = vpop.permute.xlu0 %760
    %762 = vset.pattern.permute.xlu0 0
    %763 = vperm.xlu0 %762, %v386
    %v764 = vpop.permute.xlu0 %763
    %765 = vset.pattern.permute.xlu0 0
    %766 = vperm.xlu0 %765, %v387
    %v767 = vpop.permute.xlu0 %766
    %768 = vset.pattern.permute.xlu0 0
    %769 = vperm.xlu0 %768, %v388
    %v770 = vpop.permute.xlu0 %769
    %771 = vset.pattern.permute.xlu0 0
    %772 = vperm.xlu0 %771, %v389
    %v773 = vpop.permute.xlu0 %772
    %774 = vset.pattern.permute.xlu0 0
    %775 = vperm.xlu0 %774, %v390
    %v776 = vpop.permute.xlu0 %775
    %777 = vset.pattern.permute.xlu0 0
    %778 = vperm.xlu0 %777, %v391
    %v779 = vpop.permute.xlu0 %778
    %780 = vset.pattern.permute.xlu0 0
    %781 = vperm.xlu0 %780, %v392
    %v782 = vpop.permute.xlu0 %781
    %783 = vset.pattern.permute.xlu0 0
    %784 = vperm.xlu0 %783, %v393
    %v785 = vpop.permute.xlu0 %784
    %786 = vset.pattern.permute.xlu0 0
    %787 = vperm.xlu0 %786, %v394
    %v788 = vpop.permute.xlu0 %787
    %789 = vset.pattern.permute.xlu0 0
    %790 = vperm.xlu0 %789, %v395
    %v791 = vpop.permute.xlu0 %790
    %792 = vset.pattern.permute.xlu0 0
    %793 = vperm.xlu0 %792, %v396
    %v794 = vpop.permute.xlu0 %793
    %795 = vset.pattern.permute.xlu0 0
    %796 = vperm.xlu0 %795, %v397
    %v797 = vpop.permute.xlu0 %796
    %798 = vset.pattern.permute.xlu0 0
    %799 = vperm.xlu0 %798, %v398
    %v800 = vpop.permute.xlu0 %799
    %801 = vset.pattern.permute.xlu0 0
    %802 = vperm.xlu0 %801, %v399
    %v803 = vpop.permute.xlu0 %802
    %804 = vset.pattern.permute.xlu0 0
    %805 = vperm.xlu0 %804, %v400
    %v806 = vpop.permute.xlu0 %805
    %807 = vset.pattern.permute.xlu0 0
    %808 = vperm.xlu0 %807, %v401
    %v809 = vpop.permute.xlu0 %808
    %810 = vset.pattern.permute.xlu0 0
    %811 = vperm.xlu0 %810, %v402
    %v812 = vpop.permute.xlu0 %811
    %813 = vset.pattern.permute.xlu0 0
    %814 = vperm.xlu0 %813, %v403
    %v815 = vpop.permute.xlu0 %814
    %816 = vset.pattern.permute.xlu0 0
    %817 = vperm.xlu0 %816, %v404
    %v818 = vpop.permute.xlu0 %817
    %819 = vset.pattern.permute.xlu0 0
    %820 = vperm.xlu0 %819, %v405
    %v821 = vpop.permute.xlu0 %820
    %822 = vset.pattern.permute.xlu0 0
    %823 = vperm.xlu0 %822, %v406
    %v824 = vpop.permute.xlu0 %823
    %825 = vset.pattern.permute.xlu0 0
    %826 = vperm.xlu0 %825, %v407
    %v827 = vpop.permute.xlu0 %826
    %828 = vset.pattern.permute.xlu0 0
    %829 = vperm.xlu0 %828, %v408
    %v830 = vpop.permute.xlu0 %829
    %831 = vset.pattern.permute.xlu0 0
    %832 = vperm.xlu0 %831, %v409
    %v833 = vpop.permute.xlu0 %832
    %834 = vset.pattern.permute.xlu0 0
    %835 = vperm.xlu0 %834, %v410
    %v836 = vpop.permute.xlu0 %835
    %837 = vset.pattern.permute.xlu0 0
    %838 = vperm.xlu0 %837, %v411
    %v839 = vpop.permute.xlu0 %838
    %840 = vset.pattern.permute.xlu0 0
    %841 = vperm.xlu0 %840, %v412
    %v842 = vpop.permute.xlu0 %841
    %843 = vset.pattern.permute.xlu0 0
    %844 = vperm.xlu0 %843, %v413
    %v845 = vpop.permute.xlu0 %844
    %846 = vset.pattern.permute.xlu0 0
    %847 = vperm.xlu0 %846, %v414
    %v848 = vpop.permute.xlu0 %847
    %849 = vset.pattern.permute.xlu0 0
    %850 = vperm.xlu0 %849, %v415
    %v851 = vpop.permute.xlu0 %850
    %852 = vset.pattern.permute.xlu0 0
    %853 = vperm.xlu0 %852, %v416
    %v854 = vpop.permute.xlu0 %853
    %855 = vset.pattern.permute.xlu0 0
    %856 = vperm.xlu0 %855, %v417
    %v857 = vpop.permute.xlu0 %856
    %858 = vset.pattern.permute.xlu0 0
    %859 = vperm.xlu0 %858, %v418
    %v860 = vpop.permute.xlu0 %859
    %861 = vset.pattern.permute.xlu0 0
    %862 = vperm.xlu0 %861, %v419
    %v863 = vpop.permute.xlu0 %862
    %864 = vset.pattern.permute.xlu0 0
    %865 = vperm.xlu0 %864, %v420
    %v866 = vpop.permute.xlu0 %865
    %867 = vset.pattern.permute.xlu0 0
    %868 = vperm.xlu0 %867, %v421
    %v869 = vpop.permute.xlu0 %868
    %870 = vset.pattern.permute.xlu0 0
    %871 = vperm.xlu0 %870, %v422
    %v872 = vpop.permute.xlu0 %871
    %873 = vset.pattern.permute.xlu0 0
    %874 = vperm.xlu0 %873, %v423
    %v875 = vpop.permute.xlu0 %874
    %876 = vset.pattern.permute.xlu0 0
    %877 = vperm.xlu0 %876, %v424
    %v878 = vpop.permute.xlu0 %877
    %879 = vset.pattern.permute.xlu0 0
    %880 = vperm.xlu0 %879, %v425
    %v881 = vpop.permute.xlu0 %880
    %882 = vset.pattern.permute.xlu0 0
    %883 = vperm.xlu0 %882, %v426
    %v884 = vpop.permute.xlu0 %883
    %885 = vset.pattern.permute.xlu0 0
    %886 = vperm.xlu0 %885, %v427
    %v887 = vpop.permute.xlu0 %886
    %888 = vset.pattern.permute.xlu0 0
    %889 = vperm.xlu0 %888, %v428
    %v890 = vpop.permute.xlu0 %889
    %891 = vset.pattern.permute.xlu0 0
    %892 = vperm.xlu0 %891, %v429
    %v893 = vpop.permute.xlu0 %892
    %894 = vset.pattern.permute.xlu0 0
    %895 = vperm.xlu0 %894, %v430
    %v896 = vpop.permute.xlu0 %895
    %897 = vset.pattern.permute.xlu0 0
    %898 = vperm.xlu0 %897, %v431
    %v899 = vpop.permute.xlu0 %898
    %900 = vset.pattern.permute.xlu0 0
    %901 = vperm.xlu0 %900, %v432
    %v902 = vpop.permute.xlu0 %901
    %903 = vset.pattern.permute.xlu0 0
    %904 = vperm.xlu0 %903, %v433
    %v905 = vpop.permute.xlu0 %904
    %906 = vset.pattern.permute.xlu0 0
    %907 = vperm.xlu0 %906, %v434
    %v908 = vpop.permute.xlu0 %907
    %909 = vset.pattern.permute.xlu0 0
    %910 = vperm.xlu0 %909, %v435
    %v911 = vpop.permute.xlu0 %910
    %912 = vset.pattern.permute.xlu0 0
    %913 = vperm.xlu0 %912, %v436
    %v914 = vpop.permute.xlu0 %913
    %915 = vset.pattern.permute.xlu0 0
    %916 = vperm.xlu0 %915, %v437
    %v917 = vpop.permute.xlu0 %916
    %918 = vset.pattern.permute.xlu0 0
    %919 = vperm.xlu0 %918, %v438
    %v920 = vpop.permute.xlu0 %919
    %921 = vset.pattern.permute.xlu0 0
    %922 = vperm.xlu0 %921, %v439
    %v923 = vpop.permute.xlu0 %922
    %924 = vset.pattern.permute.xlu0 0
    %925 = vperm.xlu0 %924, %v440
    %v926 = vpop.permute.xlu0 %925
    %927 = vset.pattern.permute.xlu0 0
    %928 = vperm.xlu0 %927, %v441
    %v929 = vpop.permute.xlu0 %928
    %930 = vset.pattern.permute.xlu0 0
    %931 = vperm.xlu0 %930, %v442
    %v932 = vpop.permute.xlu0 %931
    %933 = vset.pattern.permute.xlu0 0
    %934 = vperm.xlu0 %933, %v443
    %v935 = vpop.permute.xlu0 %934
    %936 = vset.pattern.permute.xlu0 0
    %937 = vperm.xlu0 %936, %v444
    %v938 = vpop.permute.xlu0 %937
    %939 = vset.pattern.permute.xlu0 0
    %940 = vperm.xlu0 %939, %v445
    %v941 = vpop.permute.xlu0 %940
    %942 = vset.pattern.permute.xlu0 0
    %943 = vperm.xlu0 %942, %v446
    %v944 = vpop.permute.xlu0 %943
    %945 = vset.pattern.permute.xlu0 0
    %946 = vperm.xlu0 %945, %v447
    %v947 = vpop.permute.xlu0 %946
    %948 = vset.pattern.permute.xlu0 0
    %949 = vperm.xlu0 %948, %v448
    %v950 = vpop.permute.xlu0 %949
    %951 = vset.pattern.permute.xlu0 0
    %952 = vperm.xlu0 %951, %v449
    %v953 = vpop.permute.xlu0 %952
    %954 = vset.pattern.permute.xlu0 0
    %955 = vperm.xlu0 %954, %v450
    %v956 = vpop.permute.xlu0 %955
    %957 = vset.pattern.permute.xlu0 0
    %958 = vperm.xlu0 %957, %v451
    %v959 = vpop.permute.xlu0 %958
    %960 = vset.pattern.permute.xlu0 0
    %961 = vperm.xlu0 %960, %v452
    %v962 = vpop.permute.xlu0 %961
    %963 = vset.pattern.permute.xlu0 0
    %964 = vperm.xlu0 %963, %v453
    %v965 = vpop.permute.xlu0 %964
    %966 = vset.pattern.permute.xlu0 0
    %967 = vperm.xlu0 %966, %v454
    %v968 = vpop.permute.xlu0 %967
    %969 = vset.pattern.permute.xlu0 0
    %970 = vperm.xlu0 %969, %v455
    %v971 = vpop.permute.xlu0 %970
    %972 = vset.pattern.permute.xlu0 0
    %973 = vperm.xlu0 %972, %v456
    %v974 = vpop.permute.xlu0 %973
    %975 = vset.pattern.permute.xlu0 0
    %976 = vperm.xlu0 %975, %v457
    %v977 = vpop.permute.xlu0 %976
    %978 = vset.pattern.permute.xlu0 0
    %979 = vperm.xlu0 %978, %v458
    %v980 = vpop.permute.xlu0 %979
    %981 = vset.pattern.permute.xlu0 0
    %982 = vperm.xlu0 %981, %v459
    %v983 = vpop.permute.xlu0 %982
    %984 = vset.pattern.permute.xlu0 0
    %985 = vperm.xlu0 %984, %v460
    %v986 = vpop.permute.xlu0 %985
    %987 = vset.pattern.permute.xlu0 0
    %988 = vperm.xlu0 %987, %v461
    %v989 = vpop.permute.xlu0 %988
    %990 = vset.pattern.permute.xlu0 0
    %991 = vperm.xlu0 %990, %v462
    %v992 = vpop.permute.xlu0 %991
    %993 = vset.pattern.permute.xlu0 0
    %994 = vperm.xlu0 %993, %v463
    %v995 = vpop.permute.xlu0 %994
    %996 = vset.pattern.permute.xlu0 0
    %997 = vperm.xlu0 %996, %v464
    %v998 = vpop.permute.xlu0 %997
    %999 = vset.pattern.permute.xlu0 0
    %1000 = vperm.xlu0 %999, %v465
    %v1001 = vpop.permute.xlu0 %1000
    %1002 = vset.pattern.permute.xlu0 0
    %1003 = vperm.xlu0 %1002, %v466
    %v1004 = vpop.permute.xlu0 %1003
    %1005 = vset.pattern.permute.xlu0 0
    %1006 = vperm.xlu0 %1005, %v467
    %v1007 = vpop.permute.xlu0 %1006
    %1008 = vset.pattern.permute.xlu0 0
    %1009 = vperm.xlu0 %1008, %v468
    %v1010 = vpop.permute.xlu0 %1009
    %1011 = vset.pattern.permute.xlu0 0
    %1012 = vperm.xlu0 %1011, %v469
    %v1013 = vpop.permute.xlu0 %1012
    %1014 = vset.pattern.permute.xlu0 0
    %1015 = vperm.xlu0 %1014, %v470
    %v1016 = vpop.permute.xlu0 %1015
    %1017 = vset.pattern.permute.xlu0 0
    %1018 = vperm.xlu0 %1017, %v471
    %v1019 = vpop.permute.xlu0 %1018
    %1020 = vset.pattern.permute.xlu0 0
    %1021 = vperm.xlu0 %1020, %v472
    %v1022 = vpop.permute.xlu0 %1021
    %1023 = vset.pattern.permute.xlu0 0
    %1024 = vperm.xlu0 %1023, %v473
    %v1025 = vpop.permute.xlu0 %1024
    %1026 = vset.pattern.permute.xlu0 0
    %1027 = vperm.xlu0 %1026, %v474
    %v1028 = vpop.permute.xlu0 %1027
    %1029 = vset.pattern.permute.xlu0 0
    %1030 = vperm.xlu0 %1029, %v475
    %v1031 = vpop.permute.xlu0 %1030
    %1032 = vset.pattern.permute.xlu0 0
    %1033 = vperm.xlu0 %1032, %v476
    %v1034 = vpop.permute.xlu0 %1033
    %1035 = vset.pattern.permute.xlu0 0
    %1036 = vperm.xlu0 %1035, %v477
    %v1037 = vpop.permute.xlu0 %1036
    %1038 = vset.pattern.permute.xlu0 0
    %1039 = vperm.xlu0 %1038, %v478
    %v1040 = vpop.permute.xlu0 %1039
    %1041 = vset.pattern.permute.xlu0 0
    %1042 = vperm.xlu0 %1041, %v479
    %v1043 = vpop.permute.xlu0 %1042
    %1044 = vset.pattern.permute.xlu0 0
    %1045 = vperm.xlu0 %1044, %v480
    %v1046 = vpop.permute.xlu0 %1045
    %1047 = vset.pattern.permute.xlu0 0
    %1048 = vperm.xlu0 %1047, %v481
    %v1049 = vpop.permute.xlu0 %1048
    %1050 = vset.pattern.permute.xlu0 0
    %1051 = vperm.xlu0 %1050, %v482
    %v1052 = vpop.permute.xlu0 %1051
    %1053 = vset.pattern.permute.xlu0 0
    %1054 = vperm.xlu0 %1053, %v483
    %v1055 = vpop.permute.xlu0 %1054
    %1056 = vset.pattern.permute.xlu0 0
    %1057 = vperm.xlu0 %1056, %v484
    %v1058 = vpop.permute.xlu0 %1057
    %1059 = vset.pattern.permute.xlu0 0
    %1060 = vperm.xlu0 %1059, %v485
    %v1061 = vpop.permute.xlu0 %1060
    %vm1062 = vcmp.eq.s32.totalorder %v293, %v488
    %vm1063 = vcmp.eq.s32.totalorder %v293, %v491
    %vm1064 = vcmp.eq.s32.totalorder %v293, %v494
    %vm1065 = vcmp.eq.s32.totalorder %v293, %v497
    %vm1066 = vcmp.eq.s32.totalorder %v293, %v500
    %vm1067 = vcmp.eq.s32.totalorder %v293, %v503
    %vm1068 = vcmp.eq.s32.totalorder %v293, %v506
    %vm1069 = vcmp.eq.s32.totalorder %v293, %v509
    %vm1070 = vcmp.eq.s32.totalorder %v293, %v512
    %vm1071 = vcmp.eq.s32.totalorder %v293, %v515
    %vm1072 = vcmp.eq.s32.totalorder %v293, %v518
    %vm1073 = vcmp.eq.s32.totalorder %v293, %v521
    %vm1074 = vcmp.eq.s32.totalorder %v293, %v524
    %vm1075 = vcmp.eq.s32.totalorder %v293, %v527
    %vm1076 = vcmp.eq.s32.totalorder %v293, %v530
    %vm1077 = vcmp.eq.s32.totalorder %v293, %v533
    %vm1078 = vcmp.eq.s32.totalorder %v293, %v536
    %vm1079 = vcmp.eq.s32.totalorder %v293, %v539
    %vm1080 = vcmp.eq.s32.totalorder %v293, %v542
    %vm1081 = vcmp.eq.s32.totalorder %v293, %v545
    %vm1082 = vcmp.eq.s32.totalorder %v293, %v548
    %vm1083 = vcmp.eq.s32.totalorder %v293, %v551
    %vm1084 = vcmp.eq.s32.totalorder %v293, %v554
    %vm1085 = vcmp.eq.s32.totalorder %v293, %v557
    %vm1086 = vcmp.eq.s32.totalorder %v293, %v560
    %vm1087 = vcmp.eq.s32.totalorder %v293, %v563
    %vm1088 = vcmp.eq.s32.totalorder %v293, %v566
    %vm1089 = vcmp.eq.s32.totalorder %v293, %v569
    %vm1090 = vcmp.eq.s32.totalorder %v293, %v572
    %vm1091 = vcmp.eq.s32.totalorder %v293, %v575
    %vm1092 = vcmp.eq.s32.totalorder %v293, %v578
    %vm1093 = vcmp.eq.s32.totalorder %v293, %v581
    %vm1094 = vcmp.eq.s32.totalorder %v293, %v584
    %vm1095 = vcmp.eq.s32.totalorder %v293, %v587
    %vm1096 = vcmp.eq.s32.totalorder %v293, %v590
    %vm1097 = vcmp.eq.s32.totalorder %v293, %v593
    %vm1098 = vcmp.eq.s32.totalorder %v293, %v596
    %vm1099 = vcmp.eq.s32.totalorder %v293, %v599
    %vm1100 = vcmp.eq.s32.totalorder %v293, %v602
    %vm1101 = vcmp.eq.s32.totalorder %v293, %v605
    %vm1102 = vcmp.eq.s32.totalorder %v293, %v608
    %vm1103 = vcmp.eq.s32.totalorder %v293, %v611
    %vm1104 = vcmp.eq.s32.totalorder %v293, %v614
    %vm1105 = vcmp.eq.s32.totalorder %v293, %v617
    %vm1106 = vcmp.eq.s32.totalorder %v293, %v620
    %vm1107 = vcmp.eq.s32.totalorder %v293, %v623
    %vm1108 = vcmp.eq.s32.totalorder %v293, %v626
    %vm1109 = vcmp.eq.s32.totalorder %v293, %v629
    %vm1110 = vcmp.eq.s32.totalorder %v293, %v632
    %vm1111 = vcmp.eq.s32.totalorder %v293, %v635
    %vm1112 = vcmp.eq.s32.totalorder %v293, %v638
    %vm1113 = vcmp.eq.s32.totalorder %v293, %v641
    %vm1114 = vcmp.eq.s32.totalorder %v293, %v644
    %vm1115 = vcmp.eq.s32.totalorder %v293, %v647
    %vm1116 = vcmp.eq.s32.totalorder %v293, %v650
    %vm1117 = vcmp.eq.s32.totalorder %v293, %v653
    %vm1118 = vcmp.eq.s32.totalorder %v293, %v656
    %vm1119 = vcmp.eq.s32.totalorder %v293, %v659
    %vm1120 = vcmp.eq.s32.totalorder %v293, %v662
    %vm1121 = vcmp.eq.s32.totalorder %v293, %v665
    %vm1122 = vcmp.eq.s32.totalorder %v293, %v668
    %vm1123 = vcmp.eq.s32.totalorder %v293, %v671
    %vm1124 = vcmp.eq.s32.totalorder %v293, %v674
    %vm1125 = vcmp.eq.s32.totalorder %v293, %v677
    %vm1126 = vcmp.eq.s32.totalorder %v293, %v680
    %vm1127 = vcmp.eq.s32.totalorder %v293, %v683
    %vm1128 = vcmp.eq.s32.totalorder %v293, %v686
    %vm1129 = vcmp.eq.s32.totalorder %v293, %v689
    %vm1130 = vcmp.eq.s32.totalorder %v293, %v692
    %vm1131 = vcmp.eq.s32.totalorder %v293, %v695
    %vm1132 = vcmp.eq.s32.totalorder %v293, %v698
    %vm1133 = vcmp.eq.s32.totalorder %v293, %v701
    %vm1134 = vcmp.eq.s32.totalorder %v293, %v704
    %vm1135 = vcmp.eq.s32.totalorder %v293, %v707
    %vm1136 = vcmp.eq.s32.totalorder %v293, %v710
    %vm1137 = vcmp.eq.s32.totalorder %v293, %v713
    %vm1138 = vcmp.eq.s32.totalorder %v293, %v716
    %vm1139 = vcmp.eq.s32.totalorder %v293, %v719
    %vm1140 = vcmp.eq.s32.totalorder %v293, %v722
    %vm1141 = vcmp.eq.s32.totalorder %v293, %v725
    %vm1142 = vcmp.eq.s32.totalorder %v293, %v728
    %vm1143 = vcmp.eq.s32.totalorder %v293, %v731
    %vm1144 = vcmp.eq.s32.totalorder %v293, %v734
    %vm1145 = vcmp.eq.s32.totalorder %v293, %v737
    %vm1146 = vcmp.eq.s32.totalorder %v293, %v740
    %vm1147 = vcmp.eq.s32.totalorder %v293, %v743
    %vm1148 = vcmp.eq.s32.totalorder %v293, %v746
    %vm1149 = vcmp.eq.s32.totalorder %v293, %v749
    %vm1150 = vcmp.eq.s32.totalorder %v293, %v752
    %vm1151 = vcmp.eq.s32.totalorder %v293, %v755
    %vm1152 = vcmp.eq.s32.totalorder %v293, %v758
    %vm1153 = vcmp.eq.s32.totalorder %v293, %v761
    %vm1154 = vcmp.eq.s32.totalorder %v293, %v764
    %vm1155 = vcmp.eq.s32.totalorder %v293, %v767
    %vm1156 = vcmp.eq.s32.totalorder %v293, %v770
    %vm1157 = vcmp.eq.s32.totalorder %v293, %v773
    %vm1158 = vcmp.eq.s32.totalorder %v293, %v776
    %vm1159 = vcmp.eq.s32.totalorder %v293, %v779
    %vm1160 = vcmp.eq.s32.totalorder %v293, %v782
    %vm1161 = vcmp.eq.s32.totalorder %v293, %v785
    %vm1162 = vcmp.eq.s32.totalorder %v293, %v788
    %vm1163 = vcmp.eq.s32.totalorder %v293, %v791
    %vm1164 = vcmp.eq.s32.totalorder %v293, %v794
    %vm1165 = vcmp.eq.s32.totalorder %v293, %v797
    %vm1166 = vcmp.eq.s32.totalorder %v293, %v800
    %vm1167 = vcmp.eq.s32.totalorder %v293, %v803
    %vm1168 = vcmp.eq.s32.totalorder %v293, %v806
    %vm1169 = vcmp.eq.s32.totalorder %v293, %v809
    %vm1170 = vcmp.eq.s32.totalorder %v293, %v812
    %vm1171 = vcmp.eq.s32.totalorder %v293, %v815
    %vm1172 = vcmp.eq.s32.totalorder %v293, %v818
    %vm1173 = vcmp.eq.s32.totalorder %v293, %v821
    %vm1174 = vcmp.eq.s32.totalorder %v293, %v824
    %vm1175 = vcmp.eq.s32.totalorder %v293, %v827
    %vm1176 = vcmp.eq.s32.totalorder %v293, %v830
    %vm1177 = vcmp.eq.s32.totalorder %v293, %v833
    %vm1178 = vcmp.eq.s32.totalorder %v293, %v836
    %vm1179 = vcmp.eq.s32.totalorder %v293, %v839
    %vm1180 = vcmp.eq.s32.totalorder %v293, %v842
    %vm1181 = vcmp.eq.s32.totalorder %v293, %v845
    %vm1182 = vcmp.eq.s32.totalorder %v293, %v848
    %vm1183 = vcmp.eq.s32.totalorder %v293, %v851
    %vm1184 = vcmp.eq.s32.totalorder %v293, %v854
    %vm1185 = vcmp.eq.s32.totalorder %v293, %v857
    %vm1186 = vcmp.eq.s32.totalorder %v293, %v860
    %vm1187 = vcmp.eq.s32.totalorder %v293, %v863
    %vm1188 = vcmp.eq.s32.totalorder %v293, %v866
    %vm1189 = vcmp.eq.s32.totalorder %v293, %v869
    %vm1190 = vcmp.eq.s32.totalorder %v293, %v872
    %vm1191 = vcmp.eq.s32.totalorder %v293, %v875
    %vm1192 = vcmp.eq.s32.totalorder %v293, %v878
    %vm1193 = vcmp.eq.s32.totalorder %v293, %v881
    %vm1194 = vcmp.eq.s32.totalorder %v293, %v884
    %vm1195 = vcmp.eq.s32.totalorder %v293, %v887
    %vm1196 = vcmp.eq.s32.totalorder %v293, %v890
    %vm1197 = vcmp.eq.s32.totalorder %v293, %v893
    %vm1198 = vcmp.eq.s32.totalorder %v293, %v896
    %vm1199 = vcmp.eq.s32.totalorder %v293, %v899
    %vm1200 = vcmp.eq.s32.totalorder %v293, %v902
    %vm1201 = vcmp.eq.s32.totalorder %v293, %v905
    %vm1202 = vcmp.eq.s32.totalorder %v293, %v908
    %vm1203 = vcmp.eq.s32.totalorder %v293, %v911
    %vm1204 = vcmp.eq.s32.totalorder %v293, %v914
    %vm1205 = vcmp.eq.s32.totalorder %v293, %v917
    %vm1206 = vcmp.eq.s32.totalorder %v293, %v920
    %vm1207 = vcmp.eq.s32.totalorder %v293, %v923
    %vm1208 = vcmp.eq.s32.totalorder %v293, %v926
    %vm1209 = vcmp.eq.s32.totalorder %v293, %v929
    %vm1210 = vcmp.eq.s32.totalorder %v293, %v932
    %vm1211 = vcmp.eq.s32.totalorder %v293, %v935
    %vm1212 = vcmp.eq.s32.totalorder %v293, %v938
    %vm1213 = vcmp.eq.s32.totalorder %v293, %v941
    %vm1214 = vcmp.eq.s32.totalorder %v293, %v944
    %vm1215 = vcmp.eq.s32.totalorder %v293, %v947
    %vm1216 = vcmp.eq.s32.totalorder %v293, %v950
    %vm1217 = vcmp.eq.s32.totalorder %v293, %v953
    %vm1218 = vcmp.eq.s32.totalorder %v293, %v956
    %vm1219 = vcmp.eq.s32.totalorder %v293, %v959
    %vm1220 = vcmp.eq.s32.totalorder %v293, %v962
    %vm1221 = vcmp.eq.s32.totalorder %v293, %v965
    %vm1222 = vcmp.eq.s32.totalorder %v293, %v968
    %vm1223 = vcmp.eq.s32.totalorder %v293, %v971
    %vm1224 = vcmp.eq.s32.totalorder %v293, %v974
    %vm1225 = vcmp.eq.s32.totalorder %v293, %v977
    %vm1226 = vcmp.eq.s32.totalorder %v293, %v980
    %vm1227 = vcmp.eq.s32.totalorder %v293, %v983
    %vm1228 = vcmp.eq.s32.totalorder %v293, %v986
    %vm1229 = vcmp.eq.s32.totalorder %v293, %v989
    %vm1230 = vcmp.eq.s32.totalorder %v293, %v992
    %vm1231 = vcmp.eq.s32.totalorder %v293, %v995
    %vm1232 = vcmp.eq.s32.totalorder %v293, %v998
    %vm1233 = vcmp.eq.s32.totalorder %v293, %v1001
    %vm1234 = vcmp.eq.s32.totalorder %v293, %v1004
    %vm1235 = vcmp.eq.s32.totalorder %v293, %v1007
    %vm1236 = vcmp.eq.s32.totalorder %v293, %v1010
    %vm1237 = vcmp.eq.s32.totalorder %v293, %v1013
    %vm1238 = vcmp.eq.s32.totalorder %v293, %v1016
    %vm1239 = vcmp.eq.s32.totalorder %v293, %v1019
    %vm1240 = vcmp.eq.s32.totalorder %v293, %v1022
    %vm1241 = vcmp.eq.s32.totalorder %v293, %v1025
    %vm1242 = vcmp.eq.s32.totalorder %v293, %v1028
    %vm1243 = vcmp.eq.s32.totalorder %v293, %v1031
    %vm1244 = vcmp.eq.s32.totalorder %v293, %v1034
    %vm1245 = vcmp.eq.s32.totalorder %v293, %v1037
    %vm1246 = vcmp.eq.s32.totalorder %v293, %v1040
    %vm1247 = vcmp.eq.s32.totalorder %v293, %v1043
    %vm1248 = vcmp.eq.s32.totalorder %v293, %v1046
    %vm1249 = vcmp.eq.s32.totalorder %v293, %v1049
    %vm1250 = vcmp.eq.s32.totalorder %v293, %v1052
    %vm1251 = vcmp.eq.s32.totalorder %v293, %v1055
    %vm1252 = vcmp.eq.s32.totalorder %v293, %v1058
    %vm1253 = vcmp.eq.s32.totalorder %v293, %v1061
    %v1254 = vsel %vm1062, 1, 0
    %v1255 = vsel %vm1063, 1, 0
    %v1256 = vsel %vm1064, 1, 0
    %v1257 = vsel %vm1065, 1, 0
    %v1258 = vsel %vm1066, 1, 0
    %v1259 = vsel %vm1067, 1, 0
    %v1260 = vsel %vm1068, 1, 0
    %v1261 = vsel %vm1069, 1, 0
    %v1262 = vsel %vm1070, 1, 0
    %v1263 = vsel %vm1071, 1, 0
    %v1264 = vsel %vm1072, 1, 0
    %v1265 = vsel %vm1073, 1, 0
    %v1266 = vsel %vm1074, 1, 0
    %v1267 = vsel %vm1075, 1, 0
    %v1268 = vsel %vm1076, 1, 0
    %v1269 = vsel %vm1077, 1, 0
    %v1270 = vsel %vm1078, 1, 0
    %v1271 = vsel %vm1079, 1, 0
    %v1272 = vsel %vm1080, 1, 0
    %v1273 = vsel %vm1081, 1, 0
    %v1274 = vsel %vm1082, 1, 0
    %v1275 = vsel %vm1083, 1, 0
    %v1276 = vsel %vm1084, 1, 0
    %v1277 = vsel %vm1085, 1, 0
    %v1278 = vsel %vm1086, 1, 0
    %v1279 = vsel %vm1087, 1, 0
    %v1280 = vsel %vm1088, 1, 0
    %v1281 = vsel %vm1089, 1, 0
    %v1282 = vsel %vm1090, 1, 0
    %v1283 = vsel %vm1091, 1, 0
    %v1284 = vsel %vm1092, 1, 0
    %v1285 = vsel %vm1093, 1, 0
    %v1286 = vsel %vm1094, 1, 0
    %v1287 = vsel %vm1095, 1, 0
    %v1288 = vsel %vm1096, 1, 0
    %v1289 = vsel %vm1097, 1, 0
    %v1290 = vsel %vm1098, 1, 0
    %v1291 = vsel %vm1099, 1, 0
    %v1292 = vsel %vm1100, 1, 0
    %v1293 = vsel %vm1101, 1, 0
    %v1294 = vsel %vm1102, 1, 0
    %v1295 = vsel %vm1103, 1, 0
    %v1296 = vsel %vm1104, 1, 0
    %v1297 = vsel %vm1105, 1, 0
    %v1298 = vsel %vm1106, 1, 0
    %v1299 = vsel %vm1107, 1, 0
    %v1300 = vsel %vm1108, 1, 0
    %v1301 = vsel %vm1109, 1, 0
    %v1302 = vsel %vm1110, 1, 0
    %v1303 = vsel %vm1111, 1, 0
    %v1304 = vsel %vm1112, 1, 0
    %v1305 = vsel %vm1113, 1, 0
    %v1306 = vsel %vm1114, 1, 0
    %v1307 = vsel %vm1115, 1, 0
    %v1308 = vsel %vm1116, 1, 0
    %v1309 = vsel %vm1117, 1, 0
    %v1310 = vsel %vm1118, 1, 0
    %v1311 = vsel %vm1119, 1, 0
    %v1312 = vsel %vm1120, 1, 0
    %v1313 = vsel %vm1121, 1, 0
    %v1314 = vsel %vm1122, 1, 0
    %v1315 = vsel %vm1123, 1, 0
    %v1316 = vsel %vm1124, 1, 0
    %v1317 = vsel %vm1125, 1, 0
    %v1318 = vsel %vm1126, 1, 0
    %v1319 = vsel %vm1127, 1, 0
    %v1320 = vsel %vm1128, 1, 0
    %v1321 = vsel %vm1129, 1, 0
    %v1322 = vsel %vm1130, 1, 0
    %v1323 = vsel %vm1131, 1, 0
    %v1324 = vsel %vm1132, 1, 0
    %v1325 = vsel %vm1133, 1, 0
    %v1326 = vsel %vm1134, 1, 0
    %v1327 = vsel %vm1135, 1, 0
    %v1328 = vsel %vm1136, 1, 0
    %v1329 = vsel %vm1137, 1, 0
    %v1330 = vsel %vm1138, 1, 0
    %v1331 = vsel %vm1139, 1, 0
    %v1332 = vsel %vm1140, 1, 0
    %v1333 = vsel %vm1141, 1, 0
    %v1334 = vsel %vm1142, 1, 0
    %v1335 = vsel %vm1143, 1, 0
    %v1336 = vsel %vm1144, 1, 0
    %v1337 = vsel %vm1145, 1, 0
    %v1338 = vsel %vm1146, 1, 0
    %v1339 = vsel %vm1147, 1, 0
    %v1340 = vsel %vm1148, 1, 0
    %v1341 = vsel %vm1149, 1, 0
    %v1342 = vsel %vm1150, 1, 0
    %v1343 = vsel %vm1151, 1, 0
    %v1344 = vsel %vm1152, 1, 0
    %v1345 = vsel %vm1153, 1, 0
    %v1346 = vsel %vm1154, 1, 0
    %v1347 = vsel %vm1155, 1, 0
    %v1348 = vsel %vm1156, 1, 0
    %v1349 = vsel %vm1157, 1, 0
    %v1350 = vsel %vm1158, 1, 0
    %v1351 = vsel %vm1159, 1, 0
    %v1352 = vsel %vm1160, 1, 0
    %v1353 = vsel %vm1161, 1, 0
    %v1354 = vsel %vm1162, 1, 0
    %v1355 = vsel %vm1163, 1, 0
    %v1356 = vsel %vm1164, 1, 0
    %v1357 = vsel %vm1165, 1, 0
    %v1358 = vsel %vm1166, 1, 0
    %v1359 = vsel %vm1167, 1, 0
    %v1360 = vsel %vm1168, 1, 0
    %v1361 = vsel %vm1169, 1, 0
    %v1362 = vsel %vm1170, 1, 0
    %v1363 = vsel %vm1171, 1, 0
    %v1364 = vsel %vm1172, 1, 0
    %v1365 = vsel %vm1173, 1, 0
    %v1366 = vsel %vm1174, 1, 0
    %v1367 = vsel %vm1175, 1, 0
    %v1368 = vsel %vm1176, 1, 0
    %v1369 = vsel %vm1177, 1, 0
    %v1370 = vsel %vm1178, 1, 0
    %v1371 = vsel %vm1179, 1, 0
    %v1372 = vsel %vm1180, 1, 0
    %v1373 = vsel %vm1181, 1, 0
    %v1374 = vsel %vm1182, 1, 0
    %v1375 = vsel %vm1183, 1, 0
    %v1376 = vsel %vm1184, 1, 0
    %v1377 = vsel %vm1185, 1, 0
    %v1378 = vsel %vm1186, 1, 0
    %v1379 = vsel %vm1187, 1, 0
    %v1380 = vsel %vm1188, 1, 0
    %v1381 = vsel %vm1189, 1, 0
    %v1382 = vsel %vm1190, 1, 0
    %v1383 = vsel %vm1191, 1, 0
    %v1384 = vsel %vm1192, 1, 0
    %v1385 = vsel %vm1193, 1, 0
    %v1386 = vsel %vm1194, 1, 0
    %v1387 = vsel %vm1195, 1, 0
    %v1388 = vsel %vm1196, 1, 0
    %v1389 = vsel %vm1197, 1, 0
    %v1390 = vsel %vm1198, 1, 0
    %v1391 = vsel %vm1199, 1, 0
    %v1392 = vsel %vm1200, 1, 0
    %v1393 = vsel %vm1201, 1, 0
    %v1394 = vsel %vm1202, 1, 0
    %v1395 = vsel %vm1203, 1, 0
    %v1396 = vsel %vm1204, 1, 0
    %v1397 = vsel %vm1205, 1, 0
    %v1398 = vsel %vm1206, 1, 0
    %v1399 = vsel %vm1207, 1, 0
    %v1400 = vsel %vm1208, 1, 0
    %v1401 = vsel %vm1209, 1, 0
    %v1402 = vsel %vm1210, 1, 0
    %v1403 = vsel %vm1211, 1, 0
    %v1404 = vsel %vm1212, 1, 0
    %v1405 = vsel %vm1213, 1, 0
    %v1406 = vsel %vm1214, 1, 0
    %v1407 = vsel %vm1215, 1, 0
    %v1408 = vsel %vm1216, 1, 0
    %v1409 = vsel %vm1217, 1, 0
    %v1410 = vsel %vm1218, 1, 0
    %v1411 = vsel %vm1219, 1, 0
    %v1412 = vsel %vm1220, 1, 0
    %v1413 = vsel %vm1221, 1, 0
    %v1414 = vsel %vm1222, 1, 0
    %v1415 = vsel %vm1223, 1, 0
    %v1416 = vsel %vm1224, 1, 0
    %v1417 = vsel %vm1225, 1, 0
    %v1418 = vsel %vm1226, 1, 0
    %v1419 = vsel %vm1227, 1, 0
    %v1420 = vsel %vm1228, 1, 0
    %v1421 = vsel %vm1229, 1, 0
    %v1422 = vsel %vm1230, 1, 0
    %v1423 = vsel %vm1231, 1, 0
    %v1424 = vsel %vm1232, 1, 0
    %v1425 = vsel %vm1233, 1, 0
    %v1426 = vsel %vm1234, 1, 0
    %v1427 = vsel %vm1235, 1, 0
    %v1428 = vsel %vm1236, 1, 0
    %v1429 = vsel %vm1237, 1, 0
    %v1430 = vsel %vm1238, 1, 0
    %v1431 = vsel %vm1239, 1, 0
    %v1432 = vsel %vm1240, 1, 0
    %v1433 = vsel %vm1241, 1, 0
    %v1434 = vsel %vm1242, 1, 0
    %v1435 = vsel %vm1243, 1, 0
    %v1436 = vsel %vm1244, 1, 0
    %v1437 = vsel %vm1245, 1, 0
    %v1438 = vsel %vm1246, 1, 0
    %v1439 = vsel %vm1247, 1, 0
    %v1440 = vsel %vm1248, 1, 0
    %v1441 = vsel %vm1249, 1, 0
    %v1442 = vsel %vm1250, 1, 0
    %v1443 = vsel %vm1251, 1, 0
    %v1444 = vsel %vm1252, 1, 0
    %v1445 = vsel %vm1253, 1, 0
    %v1446 = vcvt.s32.f32 %v1254
    %v1447 = vcvt.s32.f32 %v1255
    %v1448 = vcvt.s32.f32 %v1256
    %v1449 = vcvt.s32.f32 %v1257
    %v1450 = vcvt.s32.f32 %v1258
    %v1451 = vcvt.s32.f32 %v1259
    %v1452 = vcvt.s32.f32 %v1260
    %v1453 = vcvt.s32.f32 %v1261
    %v1454 = vcvt.s32.f32 %v1262
    %v1455 = vcvt.s32.f32 %v1263
    %v1456 = vcvt.s32.f32 %v1264
    %v1457 = vcvt.s32.f32 %v1265
    %v1458 = vcvt.s32.f32 %v1266
    %v1459 = vcvt.s32.f32 %v1267
    %v1460 = vcvt.s32.f32 %v1268
    %v1461 = vcvt.s32.f32 %v1269
    %v1462 = vcvt.s32.f32 %v1270
    %v1463 = vcvt.s32.f32 %v1271
    %v1464 = vcvt.s32.f32 %v1272
    %v1465 = vcvt.s32.f32 %v1273
    %v1466 = vcvt.s32.f32 %v1274
    %v1467 = vcvt.s32.f32 %v1275
    %v1468 = vcvt.s32.f32 %v1276
    %v1469 = vcvt.s32.f32 %v1277
    %v1470 = vcvt.s32.f32 %v1278
    %v1471 = vcvt.s32.f32 %v1279
    %v1472 = vcvt.s32.f32 %v1280
    %v1473 = vcvt.s32.f32 %v1281
    %v1474 = vcvt.s32.f32 %v1282
    %v1475 = vcvt.s32.f32 %v1283
    %v1476 = vcvt.s32.f32 %v1284
    %v1477 = vcvt.s32.f32 %v1285
    %v1478 = vcvt.s32.f32 %v1286
    %v1479 = vcvt.s32.f32 %v1287
    %v1480 = vcvt.s32.f32 %v1288
    %v1481 = vcvt.s32.f32 %v1289
    %v1482 = vcvt.s32.f32 %v1290
    %v1483 = vcvt.s32.f32 %v1291
    %v1484 = vcvt.s32.f32 %v1292
    %v1485 = vcvt.s32.f32 %v1293
    %v1486 = vcvt.s32.f32 %v1294
    %v1487 = vcvt.s32.f32 %v1295
    %v1488 = vcvt.s32.f32 %v1296
    %v1489 = vcvt.s32.f32 %v1297
    %v1490 = vcvt.s32.f32 %v1298
    %v1491 = vcvt.s32.f32 %v1299
    %v1492 = vcvt.s32.f32 %v1300
    %v1493 = vcvt.s32.f32 %v1301
    %v1494 = vcvt.s32.f32 %v1302
    %v1495 = vcvt.s32.f32 %v1303
    %v1496 = vcvt.s32.f32 %v1304
    %v1497 = vcvt.s32.f32 %v1305
    %v1498 = vcvt.s32.f32 %v1306
    %v1499 = vcvt.s32.f32 %v1307
    %v1500 = vcvt.s32.f32 %v1308
    %v1501 = vcvt.s32.f32 %v1309
    %v1502 = vcvt.s32.f32 %v1310
    %v1503 = vcvt.s32.f32 %v1311
    %v1504 = vcvt.s32.f32 %v1312
    %v1505 = vcvt.s32.f32 %v1313
    %v1506 = vcvt.s32.f32 %v1314
    %v1507 = vcvt.s32.f32 %v1315
    %v1508 = vcvt.s32.f32 %v1316
    %v1509 = vcvt.s32.f32 %v1317
    %v1510 = vcvt.s32.f32 %v1318
    %v1511 = vcvt.s32.f32 %v1319
    %v1512 = vcvt.s32.f32 %v1320
    %v1513 = vcvt.s32.f32 %v1321
    %v1514 = vcvt.s32.f32 %v1322
    %v1515 = vcvt.s32.f32 %v1323
    %v1516 = vcvt.s32.f32 %v1324
    %v1517 = vcvt.s32.f32 %v1325
    %v1518 = vcvt.s32.f32 %v1326
    %v1519 = vcvt.s32.f32 %v1327
    %v1520 = vcvt.s32.f32 %v1328
    %v1521 = vcvt.s32.f32 %v1329
    %v1522 = vcvt.s32.f32 %v1330
    %v1523 = vcvt.s32.f32 %v1331
    %v1524 = vcvt.s32.f32 %v1332
    %v1525 = vcvt.s32.f32 %v1333
    %v1526 = vcvt.s32.f32 %v1334
    %v1527 = vcvt.s32.f32 %v1335
    %v1528 = vcvt.s32.f32 %v1336
    %v1529 = vcvt.s32.f32 %v1337
    %v1530 = vcvt.s32.f32 %v1338
    %v1531 = vcvt.s32.f32 %v1339
    %v1532 = vcvt.s32.f32 %v1340
    %v1533 = vcvt.s32.f32 %v1341
    %v1534 = vcvt.s32.f32 %v1342
    %v1535 = vcvt.s32.f32 %v1343
    %v1536 = vcvt.s32.f32 %v1344
    %v1537 = vcvt.s32.f32 %v1345
    %v1538 = vcvt.s32.f32 %v1346
    %v1539 = vcvt.s32.f32 %v1347
    %v1540 = vcvt.s32.f32 %v1348
    %v1541 = vcvt.s32.f32 %v1349
    %v1542 = vcvt.s32.f32 %v1350
    %v1543 = vcvt.s32.f32 %v1351
    %v1544 = vcvt.s32.f32 %v1352
    %v1545 = vcvt.s32.f32 %v1353
    %v1546 = vcvt.s32.f32 %v1354
    %v1547 = vcvt.s32.f32 %v1355
    %v1548 = vcvt.s32.f32 %v1356
    %v1549 = vcvt.s32.f32 %v1357
    %v1550 = vcvt.s32.f32 %v1358
    %v1551 = vcvt.s32.f32 %v1359
    %v1552 = vcvt.s32.f32 %v1360
    %v1553 = vcvt.s32.f32 %v1361
    %v1554 = vcvt.s32.f32 %v1362
    %v1555 = vcvt.s32.f32 %v1363
    %v1556 = vcvt.s32.f32 %v1364
    %v1557 = vcvt.s32.f32 %v1365
    %v1558 = vcvt.s32.f32 %v1366
    %v1559 = vcvt.s32.f32 %v1367
    %v1560 = vcvt.s32.f32 %v1368
    %v1561 = vcvt.s32.f32 %v1369
    %v1562 = vcvt.s32.f32 %v1370
    %v1563 = vcvt.s32.f32 %v1371
    %v1564 = vcvt.s32.f32 %v1372
    %v1565 = vcvt.s32.f32 %v1373
    %v1566 = vcvt.s32.f32 %v1374
    %v1567 = vcvt.s32.f32 %v1375
    %v1568 = vcvt.s32.f32 %v1376
    %v1569 = vcvt.s32.f32 %v1377
    %v1570 = vcvt.s32.f32 %v1378
    %v1571 = vcvt.s32.f32 %v1379
    %v1572 = vcvt.s32.f32 %v1380
    %v1573 = vcvt.s32.f32 %v1381
    %v1574 = vcvt.s32.f32 %v1382
    %v1575 = vcvt.s32.f32 %v1383
    %v1576 = vcvt.s32.f32 %v1384
    %v1577 = vcvt.s32.f32 %v1385
    %v1578 = vcvt.s32.f32 %v1386
    %v1579 = vcvt.s32.f32 %v1387
    %v1580 = vcvt.s32.f32 %v1388
    %v1581 = vcvt.s32.f32 %v1389
    %v1582 = vcvt.s32.f32 %v1390
    %v1583 = vcvt.s32.f32 %v1391
    %v1584 = vcvt.s32.f32 %v1392
    %v1585 = vcvt.s32.f32 %v1393
    %v1586 = vcvt.s32.f32 %v1394
    %v1587 = vcvt.s32.f32 %v1395
    %v1588 = vcvt.s32.f32 %v1396
    %v1589 = vcvt.s32.f32 %v1397
    %v1590 = vcvt.s32.f32 %v1398
    %v1591 = vcvt.s32.f32 %v1399
    %v1592 = vcvt.s32.f32 %v1400
    %v1593 = vcvt.s32.f32 %v1401
    %v1594 = vcvt.s32.f32 %v1402
    %v1595 = vcvt.s32.f32 %v1403
    %v1596 = vcvt.s32.f32 %v1404
    %v1597 = vcvt.s32.f32 %v1405
    %v1598 = vcvt.s32.f32 %v1406
    %v1599 = vcvt.s32.f32 %v1407
    %v1600 = vcvt.s32.f32 %v1408
    %v1601 = vcvt.s32.f32 %v1409
    %v1602 = vcvt.s32.f32 %v1410
    %v1603 = vcvt.s32.f32 %v1411
    %v1604 = vcvt.s32.f32 %v1412
    %v1605 = vcvt.s32.f32 %v1413
    %v1606 = vcvt.s32.f32 %v1414
    %v1607 = vcvt.s32.f32 %v1415
    %v1608 = vcvt.s32.f32 %v1416
    %v1609 = vcvt.s32.f32 %v1417
    %v1610 = vcvt.s32.f32 %v1418
    %v1611 = vcvt.s32.f32 %v1419
    %v1612 = vcvt.s32.f32 %v1420
    %v1613 = vcvt.s32.f32 %v1421
    %v1614 = vcvt.s32.f32 %v1422
    %v1615 = vcvt.s32.f32 %v1423
    %v1616 = vcvt.s32.f32 %v1424
    %v1617 = vcvt.s32.f32 %v1425
    %v1618 = vcvt.s32.f32 %v1426
    %v1619 = vcvt.s32.f32 %v1427
    %v1620 = vcvt.s32.f32 %v1428
    %v1621 = vcvt.s32.f32 %v1429
    %v1622 = vcvt.s32.f32 %v1430
    %v1623 = vcvt.s32.f32 %v1431
    %v1624 = vcvt.s32.f32 %v1432
    %v1625 = vcvt.s32.f32 %v1433
    %v1626 = vcvt.s32.f32 %v1434
    %v1627 = vcvt.s32.f32 %v1435
    %v1628 = vcvt.s32.f32 %v1436
    %v1629 = vcvt.s32.f32 %v1437
    %v1630 = vcvt.s32.f32 %v1438
    %v1631 = vcvt.s32.f32 %v1439
    %v1632 = vcvt.s32.f32 %v1440
    %v1633 = vcvt.s32.f32 %v1441
    %v1634 = vcvt.s32.f32 %v1442
    %v1635 = vcvt.s32.f32 %v1443
    %v1636 = vcvt.s32.f32 %v1444
    %v1637 = vcvt.s32.f32 %v1445
    %vm1638 = vcmask 785408
    %v1640 = vsel %vm1638, %v1446, 0
    %v1643 = vsel %vm1638, %v1447, 0
    %v1646 = vsel %vm1638, %v1448, 0
    %v1649 = vsel %vm1638, %v1449, 0
    %v1652 = vsel %vm1638, %v1450, 0
    %v1655 = vsel %vm1638, %v1451, 0
    %v1658 = vsel %vm1638, %v1452, 0
    %v1661 = vsel %vm1638, %v1453, 0
    %v1664 = vsel %vm1638, %v1454, 0
    %v1667 = vsel %vm1638, %v1455, 0
    %v1670 = vsel %vm1638, %v1456, 0
    %v1673 = vsel %vm1638, %v1457, 0
    %v1676 = vsel %vm1638, %v1458, 0
    %v1679 = vsel %vm1638, %v1459, 0
    %v1682 = vsel %vm1638, %v1460, 0
    %v1685 = vsel %vm1638, %v1461, 0
    %v1688 = vsel %vm1638, %v1462, 0
    %v1691 = vsel %vm1638, %v1463, 0
    %v1694 = vsel %vm1638, %v1464, 0
    %v1697 = vsel %vm1638, %v1465, 0
    %v1700 = vsel %vm1638, %v1466, 0
    %v1703 = vsel %vm1638, %v1467, 0
    %v1706 = vsel %vm1638, %v1468, 0
    %v1709 = vsel %vm1638, %v1469, 0
    %v1712 = vsel %vm1638, %v1470, 0
    %v1715 = vsel %vm1638, %v1471, 0
    %v1718 = vsel %vm1638, %v1472, 0
    %v1721 = vsel %vm1638, %v1473, 0
    %v1724 = vsel %vm1638, %v1474, 0
    %v1727 = vsel %vm1638, %v1475, 0
    %v1730 = vsel %vm1638, %v1476, 0
    %v1733 = vsel %vm1638, %v1477, 0
    %v1736 = vsel %vm1638, %v1478, 0
    %v1739 = vsel %vm1638, %v1479, 0
    %v1742 = vsel %vm1638, %v1480, 0
    %v1745 = vsel %vm1638, %v1481, 0
    %v1748 = vsel %vm1638, %v1482, 0
    %v1751 = vsel %vm1638, %v1483, 0
    %v1754 = vsel %vm1638, %v1484, 0
    %v1757 = vsel %vm1638, %v1485, 0
    %v1760 = vsel %vm1638, %v1486, 0
    %v1763 = vsel %vm1638, %v1487, 0
    %v1766 = vsel %vm1638, %v1488, 0
    %v1769 = vsel %vm1638, %v1489, 0
    %v1772 = vsel %vm1638, %v1490, 0
    %v1775 = vsel %vm1638, %v1491, 0
    %v1778 = vsel %vm1638, %v1492, 0
    %v1781 = vsel %vm1638, %v1493, 0
    %v1784 = vsel %vm1638, %v1494, 0
    %v1787 = vsel %vm1638, %v1495, 0
    %v1790 = vsel %vm1638, %v1496, 0
    %v1793 = vsel %vm1638, %v1497, 0
    %v1796 = vsel %vm1638, %v1498, 0
    %v1799 = vsel %vm1638, %v1499, 0
    %v1802 = vsel %vm1638, %v1500, 0
    %v1805 = vsel %vm1638, %v1501, 0
    %v1808 = vsel %vm1638, %v1502, 0
    %v1811 = vsel %vm1638, %v1503, 0
    %v1814 = vsel %vm1638, %v1504, 0
    %v1817 = vsel %vm1638, %v1505, 0
    %v1820 = vsel %vm1638, %v1506, 0
    %v1823 = vsel %vm1638, %v1507, 0
    %v1826 = vsel %vm1638, %v1508, 0
    %v1829 = vsel %vm1638, %v1509, 0
    %v1832 = vsel %vm1638, %v1510, 0
    %v1835 = vsel %vm1638, %v1511, 0
    %v1838 = vsel %vm1638, %v1512, 0
    %v1841 = vsel %vm1638, %v1513, 0
    %v1844 = vsel %vm1638, %v1514, 0
    %v1847 = vsel %vm1638, %v1515, 0
    %v1850 = vsel %vm1638, %v1516, 0
    %v1853 = vsel %vm1638, %v1517, 0
    %v1856 = vsel %vm1638, %v1518, 0
    %v1859 = vsel %vm1638, %v1519, 0
    %v1862 = vsel %vm1638, %v1520, 0
    %v1865 = vsel %vm1638, %v1521, 0
    %v1868 = vsel %vm1638, %v1522, 0
    %v1871 = vsel %vm1638, %v1523, 0
    %v1874 = vsel %vm1638, %v1524, 0
    %v1877 = vsel %vm1638, %v1525, 0
    %v1880 = vsel %vm1638, %v1526, 0
    %v1883 = vsel %vm1638, %v1527, 0
    %v1886 = vsel %vm1638, %v1528, 0
    %v1889 = vsel %vm1638, %v1529, 0
    %v1892 = vsel %vm1638, %v1530, 0
    %v1895 = vsel %vm1638, %v1531, 0
    %v1898 = vsel %vm1638, %v1532, 0
    %v1901 = vsel %vm1638, %v1533, 0
    %v1904 = vsel %vm1638, %v1534, 0
    %v1907 = vsel %vm1638, %v1535, 0
    %v1910 = vsel %vm1638, %v1536, 0
    %v1913 = vsel %vm1638, %v1537, 0
    %v1916 = vsel %vm1638, %v1538, 0
    %v1919 = vsel %vm1638, %v1539, 0
    %v1922 = vsel %vm1638, %v1540, 0
    %v1925 = vsel %vm1638, %v1541, 0
    %v1928 = vsel %vm1638, %v1542, 0
    %v1931 = vsel %vm1638, %v1543, 0
    %v1934 = vsel %vm1638, %v1544, 0
    %v1937 = vsel %vm1638, %v1545, 0
    %v1940 = vsel %vm1638, %v1546, 0
    %v1943 = vsel %vm1638, %v1547, 0
    %v1946 = vsel %vm1638, %v1548, 0
    %v1949 = vsel %vm1638, %v1549, 0
    %v1952 = vsel %vm1638, %v1550, 0
    %v1955 = vsel %vm1638, %v1551, 0
    %v1958 = vsel %vm1638, %v1552, 0
    %v1961 = vsel %vm1638, %v1553, 0
    %v1964 = vsel %vm1638, %v1554, 0
    %v1967 = vsel %vm1638, %v1555, 0
    %v1970 = vsel %vm1638, %v1556, 0
    %v1973 = vsel %vm1638, %v1557, 0
    %v1976 = vsel %vm1638, %v1558, 0
    %v1979 = vsel %vm1638, %v1559, 0
    %v1982 = vsel %vm1638, %v1560, 0
    %v1985 = vsel %vm1638, %v1561, 0
    %v1988 = vsel %vm1638, %v1562, 0
    %v1991 = vsel %vm1638, %v1563, 0
    %v1994 = vsel %vm1638, %v1564, 0
    %v1997 = vsel %vm1638, %v1565, 0
    %v2000 = vsel %vm1638, %v1566, 0
    %v2003 = vsel %vm1638, %v1567, 0
    %v2006 = vsel %vm1638, %v1568, 0
    %v2009 = vsel %vm1638, %v1569, 0
    %v2012 = vsel %vm1638, %v1570, 0
    %v2015 = vsel %vm1638, %v1571, 0
    %v2018 = vsel %vm1638, %v1572, 0
    %v2021 = vsel %vm1638, %v1573, 0
    %v2024 = vsel %vm1638, %v1574, 0
    %v2027 = vsel %vm1638, %v1575, 0
    %v2030 = vsel %vm1638, %v1576, 0
    %v2033 = vsel %vm1638, %v1577, 0
    %v2036 = vsel %vm1638, %v1578, 0
    %v2039 = vsel %vm1638, %v1579, 0
    %v2042 = vsel %vm1638, %v1580, 0
    %v2045 = vsel %vm1638, %v1581, 0
    %v2048 = vsel %vm1638, %v1582, 0
    %v2051 = vsel %vm1638, %v1583, 0
    %v2054 = vsel %vm1638, %v1584, 0
    %v2057 = vsel %vm1638, %v1585, 0
    %v2060 = vsel %vm1638, %v1586, 0
    %v2063 = vsel %vm1638, %v1587, 0
    %v2066 = vsel %vm1638, %v1588, 0
    %v2069 = vsel %vm1638, %v1589, 0
    %v2072 = vsel %vm1638, %v1590, 0
    %v2075 = vsel %vm1638, %v1591, 0
    %v2078 = vsel %vm1638, %v1592, 0
    %v2081 = vsel %vm1638, %v1593, 0
    %v2084 = vsel %vm1638, %v1594, 0
    %v2087 = vsel %vm1638, %v1595, 0
    %v2090 = vsel %vm1638, %v1596, 0
    %v2093 = vsel %vm1638, %v1597, 0
    %v2096 = vsel %vm1638, %v1598, 0
    %v2099 = vsel %vm1638, %v1599, 0
    %v2102 = vsel %vm1638, %v1600, 0
    %v2105 = vsel %vm1638, %v1601, 0
    %v2108 = vsel %vm1638, %v1602, 0
    %v2111 = vsel %vm1638, %v1603, 0
    %v2114 = vsel %vm1638, %v1604, 0
    %v2117 = vsel %vm1638, %v1605, 0
    %v2120 = vsel %vm1638, %v1606, 0
    %v2123 = vsel %vm1638, %v1607, 0
    %v2126 = vsel %vm1638, %v1608, 0
    %v2129 = vsel %vm1638, %v1609, 0
    %v2132 = vsel %vm1638, %v1610, 0
    %v2135 = vsel %vm1638, %v1611, 0
    %v2138 = vsel %vm1638, %v1612, 0
    %v2141 = vsel %vm1638, %v1613, 0
    %v2144 = vsel %vm1638, %v1614, 0
    %v2147 = vsel %vm1638, %v1615, 0
    %v2150 = vsel %vm1638, %v1616, 0
    %v2153 = vsel %vm1638, %v1617, 0
    %v2156 = vsel %vm1638, %v1618, 0
    %v2159 = vsel %vm1638, %v1619, 0
    %v2162 = vsel %vm1638, %v1620, 0
    %v2165 = vsel %vm1638, %v1621, 0
    %v2168 = vsel %vm1638, %v1622, 0
    %v2171 = vsel %vm1638, %v1623, 0
    %v2174 = vsel %vm1638, %v1624, 0
    %v2177 = vsel %vm1638, %v1625, 0
    %v2180 = vsel %vm1638, %v1626, 0
    %v2183 = vsel %vm1638, %v1627, 0
    %v2186 = vsel %vm1638, %v1628, 0
    %v2189 = vsel %vm1638, %v1629, 0
    %v2192 = vsel %vm1638, %v1630, 0
    %v2195 = vsel %vm1638, %v1631, 0
    %v2198 = vsel %vm1638, %v1632, 0
    %v2201 = vsel %vm1638, %v1633, 0
    %v2204 = vsel %vm1638, %v1634, 0
    %v2207 = vsel %vm1638, %v1635, 0
    %v2210 = vsel %vm1638, %v1636, 0
    %v2213 = vsel %vm1638, %v1637, 0
    %2215 = vmatpush.msra.mxu0 0.0
    %2216 = vmatpush.msra.mxu0 0.0
    %2217 = vmatpush.msra.mxu0 0.0
    %2218 = vmatpush.msra.mxu0 0.0
    %2219 = vmatpush.msra.mxu0 %v290
    %2220 = vmatpush.msra.mxu0 %v288
    %2221 = vmatpush.msra.mxu0 %v285
    %2222 = vmatpush.msra.mxu0 %v283
    %2223 = vmatpush.msra.mxu0 %v280
    %2224 = vmatpush.msra.mxu0 %v278
    %2225 = vmatpush.msra.mxu0 %v275
    %2226 = vmatpush.msra.mxu0 %v273
    %2227 = vmatpush.msra.mxu0 %v270
    %2228 = vmatpush.msra.mxu0 %v268
    %2229 = vmatpush.msra.mxu0 %v265
    %2230 = vmatpush.msra.mxu0 %v263
    %2231 = vmatmul.f32.gmra.mxu0 %v1640
    %v2232 = vpop.f32.mrf.mxu0
    %v2233 = vadd.f32 0.0, %v2232
    %2234 = vmatmul.f32.gmra.mxu0 %v1643
    %v2235 = vpop.f32.mrf.mxu0
    %v2236 = vadd.f32 0.0, %v2235
    %2237 = vmatmul.f32.gmra.mxu0 %v1646
    %v2238 = vpop.f32.mrf.mxu0
    %v2239 = vadd.f32 0.0, %v2238
    %2240 = vmatmul.f32.gmra.mxu0 %v1649
    %v2241 = vpop.f32.mrf.mxu0
    %v2242 = vadd.f32 0.0, %v2241
    %2243 = vmatmul.f32.gmra.mxu0 %v1652
    %v2244 = vpop.f32.mrf.mxu0
    %v2245 = vadd.f32 0.0, %v2244
    %2246 = vmatmul.f32.gmra.mxu0 %v1655
    %v2247 = vpop.f32.mrf.mxu0
    %v2248 = vadd.f32 0.0, %v2247
    %2249 = vmatmul.f32.gmra.mxu0 %v1658
    %v2250 = vpop.f32.mrf.mxu0
    %v2251 = vadd.f32 0.0, %v2250
    %2252 = vmatmul.f32.gmra.mxu0 %v1661
    %v2253 = vpop.f32.mrf.mxu0
    %v2254 = vadd.f32 0.0, %v2253
    %2255 = vmatmul.f32.gmra.mxu0 %v1664
    %v2256 = vpop.f32.mrf.mxu0
    %v2257 = vadd.f32 0.0, %v2256
    %2258 = vmatmul.f32.gmra.mxu0 %v1667
    %v2259 = vpop.f32.mrf.mxu0
    %v2260 = vadd.f32 0.0, %v2259
    %2261 = vmatmul.f32.gmra.mxu0 %v1670
    %v2262 = vpop.f32.mrf.mxu0
    %v2263 = vadd.f32 0.0, %v2262
    %2264 = vmatmul.f32.gmra.mxu0 %v1673
    %v2265 = vpop.f32.mrf.mxu0
    %v2266 = vadd.f32 0.0, %v2265
    %2267 = vmatmul.f32.gmra.mxu0 %v1676
    %v2268 = vpop.f32.mrf.mxu0
    %v2269 = vadd.f32 0.0, %v2268
    %2270 = vmatmul.f32.gmra.mxu0 %v1679
    %v2271 = vpop.f32.mrf.mxu0
    %v2272 = vadd.f32 0.0, %v2271
    %2273 = vmatmul.f32.gmra.mxu0 %v1682
    %v2274 = vpop.f32.mrf.mxu0
    %v2275 = vadd.f32 0.0, %v2274
    %2276 = vmatmul.f32.gmra.mxu0 %v1685
    %v2277 = vpop.f32.mrf.mxu0
    %v2278 = vadd.f32 0.0, %v2277
    %2279 = vmatmul.f32.gmra.mxu0 %v1688
    %v2280 = vpop.f32.mrf.mxu0
    %v2281 = vadd.f32 0.0, %v2280
    %2282 = vmatmul.f32.gmra.mxu0 %v1691
    %v2283 = vpop.f32.mrf.mxu0
    %v2284 = vadd.f32 0.0, %v2283
    %2285 = vmatmul.f32.gmra.mxu0 %v1694
    %v2286 = vpop.f32.mrf.mxu0
    %v2287 = vadd.f32 0.0, %v2286
    %2288 = vmatmul.f32.gmra.mxu0 %v1697
    %v2289 = vpop.f32.mrf.mxu0
    %v2290 = vadd.f32 0.0, %v2289
    %2291 = vmatmul.f32.gmra.mxu0 %v1700
    %v2292 = vpop.f32.mrf.mxu0
    %v2293 = vadd.f32 0.0, %v2292
    %2294 = vmatmul.f32.gmra.mxu0 %v1703
    %v2295 = vpop.f32.mrf.mxu0
    %v2296 = vadd.f32 0.0, %v2295
    %2297 = vmatmul.f32.gmra.mxu0 %v1706
    %v2298 = vpop.f32.mrf.mxu0
    %v2299 = vadd.f32 0.0, %v2298
    %2300 = vmatmul.f32.gmra.mxu0 %v1709
    %v2301 = vpop.f32.mrf.mxu0
    %v2302 = vadd.f32 0.0, %v2301
    %2303 = vmatmul.f32.gmra.mxu0 %v1712
    %v2304 = vpop.f32.mrf.mxu0
    %v2305 = vadd.f32 0.0, %v2304
    %2306 = vmatmul.f32.gmra.mxu0 %v1715
    %v2307 = vpop.f32.mrf.mxu0
    %v2308 = vadd.f32 0.0, %v2307
    %2309 = vmatmul.f32.gmra.mxu0 %v1718
    %v2310 = vpop.f32.mrf.mxu0
    %v2311 = vadd.f32 0.0, %v2310
    %2312 = vmatmul.f32.gmra.mxu0 %v1721
    %v2313 = vpop.f32.mrf.mxu0
    %v2314 = vadd.f32 0.0, %v2313
    %2315 = vmatmul.f32.gmra.mxu0 %v1724
    %v2316 = vpop.f32.mrf.mxu0
    %v2317 = vadd.f32 0.0, %v2316
    %2318 = vmatmul.f32.gmra.mxu0 %v1727
    %v2319 = vpop.f32.mrf.mxu0
    %v2320 = vadd.f32 0.0, %v2319
    %2321 = vmatmul.f32.gmra.mxu0 %v1730
    %v2322 = vpop.f32.mrf.mxu0
    %v2323 = vadd.f32 0.0, %v2322
    %2324 = vmatmul.f32.gmra.mxu0 %v1733
    %v2325 = vpop.f32.mrf.mxu0
    %v2326 = vadd.f32 0.0, %v2325
    %2327 = vmatmul.f32.gmra.mxu0 %v1736
    %v2328 = vpop.f32.mrf.mxu0
    %v2329 = vadd.f32 0.0, %v2328
    %2330 = vmatmul.f32.gmra.mxu0 %v1739
    %v2331 = vpop.f32.mrf.mxu0
    %v2332 = vadd.f32 0.0, %v2331
    %2333 = vmatmul.f32.gmra.mxu0 %v1742
    %v2334 = vpop.f32.mrf.mxu0
    %v2335 = vadd.f32 0.0, %v2334
    %2336 = vmatmul.f32.gmra.mxu0 %v1745
    %v2337 = vpop.f32.mrf.mxu0
    %v2338 = vadd.f32 0.0, %v2337
    %2339 = vmatmul.f32.gmra.mxu0 %v1748
    %v2340 = vpop.f32.mrf.mxu0
    %v2341 = vadd.f32 0.0, %v2340
    %2342 = vmatmul.f32.gmra.mxu0 %v1751
    %v2343 = vpop.f32.mrf.mxu0
    %v2344 = vadd.f32 0.0, %v2343
    %2345 = vmatmul.f32.gmra.mxu0 %v1754
    %v2346 = vpop.f32.mrf.mxu0
    %v2347 = vadd.f32 0.0, %v2346
    %2348 = vmatmul.f32.gmra.mxu0 %v1757
    %v2349 = vpop.f32.mrf.mxu0
    %v2350 = vadd.f32 0.0, %v2349
    %2351 = vmatmul.f32.gmra.mxu0 %v1760
    %v2352 = vpop.f32.mrf.mxu0
    %v2353 = vadd.f32 0.0, %v2352
    %2354 = vmatmul.f32.gmra.mxu0 %v1763
    %v2355 = vpop.f32.mrf.mxu0
    %v2356 = vadd.f32 0.0, %v2355
    %2357 = vmatmul.f32.gmra.mxu0 %v1766
    %v2358 = vpop.f32.mrf.mxu0
    %v2359 = vadd.f32 0.0, %v2358
    %2360 = vmatmul.f32.gmra.mxu0 %v1769
    %v2361 = vpop.f32.mrf.mxu0
    %v2362 = vadd.f32 0.0, %v2361
    %2363 = vmatmul.f32.gmra.mxu0 %v1772
    %v2364 = vpop.f32.mrf.mxu0
    %v2365 = vadd.f32 0.0, %v2364
    %2366 = vmatmul.f32.gmra.mxu0 %v1775
    %v2367 = vpop.f32.mrf.mxu0
    %v2368 = vadd.f32 0.0, %v2367
    %2369 = vmatmul.f32.gmra.mxu0 %v1778
    %v2370 = vpop.f32.mrf.mxu0
    %v2371 = vadd.f32 0.0, %v2370
    %2372 = vmatmul.f32.gmra.mxu0 %v1781
    %v2373 = vpop.f32.mrf.mxu0
    %v2374 = vadd.f32 0.0, %v2373
    %2375 = vmatmul.f32.gmra.mxu0 %v1784
    %v2376 = vpop.f32.mrf.mxu0
    %v2377 = vadd.f32 0.0, %v2376
    %2378 = vmatmul.f32.gmra.mxu0 %v1787
    %v2379 = vpop.f32.mrf.mxu0
    %v2380 = vadd.f32 0.0, %v2379
    %2381 = vmatmul.f32.gmra.mxu0 %v1790
    %v2382 = vpop.f32.mrf.mxu0
    %v2383 = vadd.f32 0.0, %v2382
    %2384 = vmatmul.f32.gmra.mxu0 %v1793
    %v2385 = vpop.f32.mrf.mxu0
    %v2386 = vadd.f32 0.0, %v2385
    %2387 = vmatmul.f32.gmra.mxu0 %v1796
    %v2388 = vpop.f32.mrf.mxu0
    %v2389 = vadd.f32 0.0, %v2388
    %2390 = vmatmul.f32.gmra.mxu0 %v1799
    %v2391 = vpop.f32.mrf.mxu0
    %v2392 = vadd.f32 0.0, %v2391
    %2393 = vmatmul.f32.gmra.mxu0 %v1802
    %v2394 = vpop.f32.mrf.mxu0
    %v2395 = vadd.f32 0.0, %v2394
    %2396 = vmatmul.f32.gmra.mxu0 %v1805
    %v2397 = vpop.f32.mrf.mxu0
    %v2398 = vadd.f32 0.0, %v2397
    %2399 = vmatmul.f32.gmra.mxu0 %v1808
    %v2400 = vpop.f32.mrf.mxu0
    %v2401 = vadd.f32 0.0, %v2400
    %2402 = vmatmul.f32.gmra.mxu0 %v1811
    %v2403 = vpop.f32.mrf.mxu0
    %v2404 = vadd.f32 0.0, %v2403
    %2405 = vmatmul.f32.gmra.mxu0 %v1814
    %v2406 = vpop.f32.mrf.mxu0
    %v2407 = vadd.f32 0.0, %v2406
    %2408 = vmatmul.f32.gmra.mxu0 %v1817
    %v2409 = vpop.f32.mrf.mxu0
    %v2410 = vadd.f32 0.0, %v2409
    %2411 = vmatmul.f32.gmra.mxu0 %v1820
    %v2412 = vpop.f32.mrf.mxu0
    %v2413 = vadd.f32 0.0, %v2412
    %2414 = vmatmul.f32.gmra.mxu0 %v1823
    %v2415 = vpop.f32.mrf.mxu0
    %v2416 = vadd.f32 0.0, %v2415
    %2417 = vmatmul.f32.gmra.mxu0 %v1826
    %v2418 = vpop.f32.mrf.mxu0
    %v2419 = vadd.f32 0.0, %v2418
    %2420 = vmatmul.f32.gmra.mxu0 %v1829
    %v2421 = vpop.f32.mrf.mxu0
    %v2422 = vadd.f32 0.0, %v2421
    %2423 = vmatmul.f32.gmra.mxu0 %v1832
    %v2424 = vpop.f32.mrf.mxu0
    %v2425 = vadd.f32 0.0, %v2424
    %2426 = vmatmul.f32.gmra.mxu0 %v1835
    %v2427 = vpop.f32.mrf.mxu0
    %v2428 = vadd.f32 0.0, %v2427
    %2429 = vmatmul.f32.gmra.mxu0 %v1838
    %v2430 = vpop.f32.mrf.mxu0
    %v2431 = vadd.f32 0.0, %v2430
    %2432 = vmatmul.f32.gmra.mxu0 %v1841
    %v2433 = vpop.f32.mrf.mxu0
    %v2434 = vadd.f32 0.0, %v2433
    %2435 = vmatmul.f32.gmra.mxu0 %v1844
    %v2436 = vpop.f32.mrf.mxu0
    %v2437 = vadd.f32 0.0, %v2436
    %2438 = vmatmul.f32.gmra.mxu0 %v1847
    %v2439 = vpop.f32.mrf.mxu0
    %v2440 = vadd.f32 0.0, %v2439
    %2441 = vmatmul.f32.gmra.mxu0 %v1850
    %v2442 = vpop.f32.mrf.mxu0
    %v2443 = vadd.f32 0.0, %v2442
    %2444 = vmatmul.f32.gmra.mxu0 %v1853
    %v2445 = vpop.f32.mrf.mxu0
    %v2446 = vadd.f32 0.0, %v2445
    %2447 = vmatmul.f32.gmra.mxu0 %v1856
    %v2448 = vpop.f32.mrf.mxu0
    %v2449 = vadd.f32 0.0, %v2448
    %2450 = vmatmul.f32.gmra.mxu0 %v1859
    %v2451 = vpop.f32.mrf.mxu0
    %v2452 = vadd.f32 0.0, %v2451
    %2453 = vmatmul.f32.gmra.mxu0 %v1862
    %v2454 = vpop.f32.mrf.mxu0
    %v2455 = vadd.f32 0.0, %v2454
    %2456 = vmatmul.f32.gmra.mxu0 %v1865
    %v2457 = vpop.f32.mrf.mxu0
    %v2458 = vadd.f32 0.0, %v2457
    %2459 = vmatmul.f32.gmra.mxu0 %v1868
    %v2460 = vpop.f32.mrf.mxu0
    %v2461 = vadd.f32 0.0, %v2460
    %2462 = vmatmul.f32.gmra.mxu0 %v1871
    %v2463 = vpop.f32.mrf.mxu0
    %v2464 = vadd.f32 0.0, %v2463
    %2465 = vmatmul.f32.gmra.mxu0 %v1874
    %v2466 = vpop.f32.mrf.mxu0
    %v2467 = vadd.f32 0.0, %v2466
    %2468 = vmatmul.f32.gmra.mxu0 %v1877
    %v2469 = vpop.f32.mrf.mxu0
    %v2470 = vadd.f32 0.0, %v2469
    %2471 = vmatmul.f32.gmra.mxu0 %v1880
    %v2472 = vpop.f32.mrf.mxu0
    %v2473 = vadd.f32 0.0, %v2472
    %2474 = vmatmul.f32.gmra.mxu0 %v1883
    %v2475 = vpop.f32.mrf.mxu0
    %v2476 = vadd.f32 0.0, %v2475
    %2477 = vmatmul.f32.gmra.mxu0 %v1886
    %v2478 = vpop.f32.mrf.mxu0
    %v2479 = vadd.f32 0.0, %v2478
    %2480 = vmatmul.f32.gmra.mxu0 %v1889
    %v2481 = vpop.f32.mrf.mxu0
    %v2482 = vadd.f32 0.0, %v2481
    %2483 = vmatmul.f32.gmra.mxu0 %v1892
    %v2484 = vpop.f32.mrf.mxu0
    %v2485 = vadd.f32 0.0, %v2484
    %2486 = vmatmul.f32.gmra.mxu0 %v1895
    %v2487 = vpop.f32.mrf.mxu0
    %v2488 = vadd.f32 0.0, %v2487
    %2489 = vmatmul.f32.gmra.mxu0 %v1898
    %v2490 = vpop.f32.mrf.mxu0
    %v2491 = vadd.f32 0.0, %v2490
    %2492 = vmatmul.f32.gmra.mxu0 %v1901
    %v2493 = vpop.f32.mrf.mxu0
    %v2494 = vadd.f32 0.0, %v2493
    %2495 = vmatmul.f32.gmra.mxu0 %v1904
    %v2496 = vpop.f32.mrf.mxu0
    %v2497 = vadd.f32 0.0, %v2496
    %2498 = vmatmul.f32.gmra.mxu0 %v1907
    %v2499 = vpop.f32.mrf.mxu0
    %v2500 = vadd.f32 0.0, %v2499
    %2501 = vmatmul.f32.gmra.mxu0 %v1910
    %v2502 = vpop.f32.mrf.mxu0
    %v2503 = vadd.f32 0.0, %v2502
    %2504 = vmatmul.f32.gmra.mxu0 %v1913
    %v2505 = vpop.f32.mrf.mxu0
    %v2506 = vadd.f32 0.0, %v2505
    %2507 = vmatmul.f32.gmra.mxu0 %v1916
    %v2508 = vpop.f32.mrf.mxu0
    %v2509 = vadd.f32 0.0, %v2508
    %2510 = vmatmul.f32.gmra.mxu0 %v1919
    %v2511 = vpop.f32.mrf.mxu0
    %v2512 = vadd.f32 0.0, %v2511
    %2513 = vmatmul.f32.gmra.mxu0 %v1922
    %v2514 = vpop.f32.mrf.mxu0
    %v2515 = vadd.f32 0.0, %v2514
    %2516 = vmatmul.f32.gmra.mxu0 %v1925
    %v2517 = vpop.f32.mrf.mxu0
    %v2518 = vadd.f32 0.0, %v2517
    %2519 = vmatmul.f32.gmra.mxu0 %v1928
    %v2520 = vpop.f32.mrf.mxu0
    %v2521 = vadd.f32 0.0, %v2520
    %2522 = vmatmul.f32.gmra.mxu0 %v1931
    %v2523 = vpop.f32.mrf.mxu0
    %v2524 = vadd.f32 0.0, %v2523
    %2525 = vmatmul.f32.gmra.mxu0 %v1934
    %v2526 = vpop.f32.mrf.mxu0
    %v2527 = vadd.f32 0.0, %v2526
    %2528 = vmatmul.f32.gmra.mxu0 %v1937
    %v2529 = vpop.f32.mrf.mxu0
    %v2530 = vadd.f32 0.0, %v2529
    %2531 = vmatmul.f32.gmra.mxu0 %v1940
    %v2532 = vpop.f32.mrf.mxu0
    %v2533 = vadd.f32 0.0, %v2532
    %2534 = vmatmul.f32.gmra.mxu0 %v1943
    %v2535 = vpop.f32.mrf.mxu0
    %v2536 = vadd.f32 0.0, %v2535
    %2537 = vmatmul.f32.gmra.mxu0 %v1946
    %v2538 = vpop.f32.mrf.mxu0
    %v2539 = vadd.f32 0.0, %v2538
    %2540 = vmatmul.f32.gmra.mxu0 %v1949
    %v2541 = vpop.f32.mrf.mxu0
    %v2542 = vadd.f32 0.0, %v2541
    %2543 = vmatmul.f32.gmra.mxu0 %v1952
    %v2544 = vpop.f32.mrf.mxu0
    %v2545 = vadd.f32 0.0, %v2544
    %2546 = vmatmul.f32.gmra.mxu0 %v1955
    %v2547 = vpop.f32.mrf.mxu0
    %v2548 = vadd.f32 0.0, %v2547
    %2549 = vmatmul.f32.gmra.mxu0 %v1958
    %v2550 = vpop.f32.mrf.mxu0
    %v2551 = vadd.f32 0.0, %v2550
    %2552 = vmatmul.f32.gmra.mxu0 %v1961
    %v2553 = vpop.f32.mrf.mxu0
    %v2554 = vadd.f32 0.0, %v2553
    %2555 = vmatmul.f32.gmra.mxu0 %v1964
    %v2556 = vpop.f32.mrf.mxu0
    %v2557 = vadd.f32 0.0, %v2556
    %2558 = vmatmul.f32.gmra.mxu0 %v1967
    %v2559 = vpop.f32.mrf.mxu0
    %v2560 = vadd.f32 0.0, %v2559
    %2561 = vmatmul.f32.gmra.mxu0 %v1970
    %v2562 = vpop.f32.mrf.mxu0
    %v2563 = vadd.f32 0.0, %v2562
    %2564 = vmatmul.f32.gmra.mxu0 %v1973
    %v2565 = vpop.f32.mrf.mxu0
    %v2566 = vadd.f32 0.0, %v2565
    %2567 = vmatmul.f32.gmra.mxu0 %v1976
    %v2568 = vpop.f32.mrf.mxu0
    %v2569 = vadd.f32 0.0, %v2568
    %2570 = vmatmul.f32.gmra.mxu0 %v1979
    %v2571 = vpop.f32.mrf.mxu0
    %v2572 = vadd.f32 0.0, %v2571
    %2573 = vmatmul.f32.gmra.mxu0 %v1982
    %v2574 = vpop.f32.mrf.mxu0
    %v2575 = vadd.f32 0.0, %v2574
    %2576 = vmatmul.f32.gmra.mxu0 %v1985
    %v2577 = vpop.f32.mrf.mxu0
    %v2578 = vadd.f32 0.0, %v2577
    %2579 = vmatmul.f32.gmra.mxu0 %v1988
    %v2580 = vpop.f32.mrf.mxu0
    %v2581 = vadd.f32 0.0, %v2580
    %2582 = vmatmul.f32.gmra.mxu0 %v1991
    %v2583 = vpop.f32.mrf.mxu0
    %v2584 = vadd.f32 0.0, %v2583
    %2585 = vmatmul.f32.gmra.mxu0 %v1994
    %v2586 = vpop.f32.mrf.mxu0
    %v2587 = vadd.f32 0.0, %v2586
    %2588 = vmatmul.f32.gmra.mxu0 %v1997
    %v2589 = vpop.f32.mrf.mxu0
    %v2590 = vadd.f32 0.0, %v2589
    %2591 = vmatmul.f32.gmra.mxu0 %v2000
    %v2592 = vpop.f32.mrf.mxu0
    %v2593 = vadd.f32 0.0, %v2592
    %2594 = vmatmul.f32.gmra.mxu0 %v2003
    %v2595 = vpop.f32.mrf.mxu0
    %v2596 = vadd.f32 0.0, %v2595
    %2597 = vmatmul.f32.gmra.mxu0 %v2006
    %v2598 = vpop.f32.mrf.mxu0
    %v2599 = vadd.f32 0.0, %v2598
    %2600 = vmatmul.f32.gmra.mxu0 %v2009
    %v2601 = vpop.f32.mrf.mxu0
    %v2602 = vadd.f32 0.0, %v2601
    %2603 = vmatmul.f32.gmra.mxu0 %v2012
    %v2604 = vpop.f32.mrf.mxu0
    %v2605 = vadd.f32 0.0, %v2604
    %2606 = vmatmul.f32.gmra.mxu0 %v2015
    %v2607 = vpop.f32.mrf.mxu0
    %v2608 = vadd.f32 0.0, %v2607
    %2609 = vmatmul.f32.gmra.mxu0 %v2018
    %v2610 = vpop.f32.mrf.mxu0
    %v2611 = vadd.f32 0.0, %v2610
    %2612 = vmatmul.f32.gmra.mxu0 %v2021
    %v2613 = vpop.f32.mrf.mxu0
    %v2614 = vadd.f32 0.0, %v2613
    %2615 = vmatmul.f32.gmra.mxu0 %v2024
    %v2616 = vpop.f32.mrf.mxu0
    %v2617 = vadd.f32 0.0, %v2616
    %2618 = vmatmul.f32.gmra.mxu0 %v2027
    %v2619 = vpop.f32.mrf.mxu0
    %v2620 = vadd.f32 0.0, %v2619
    %2621 = vmatmul.f32.gmra.mxu0 %v2030
    %v2622 = vpop.f32.mrf.mxu0
    %v2623 = vadd.f32 0.0, %v2622
    %2624 = vmatmul.f32.gmra.mxu0 %v2033
    %v2625 = vpop.f32.mrf.mxu0
    %v2626 = vadd.f32 0.0, %v2625
    %2627 = vmatmul.f32.gmra.mxu0 %v2036
    %v2628 = vpop.f32.mrf.mxu0
    %v2629 = vadd.f32 0.0, %v2628
    %2630 = vmatmul.f32.gmra.mxu0 %v2039
    %v2631 = vpop.f32.mrf.mxu0
    %v2632 = vadd.f32 0.0, %v2631
    %2633 = vmatmul.f32.gmra.mxu0 %v2042
    %v2634 = vpop.f32.mrf.mxu0
    %v2635 = vadd.f32 0.0, %v2634
    %2636 = vmatmul.f32.gmra.mxu0 %v2045
    %v2637 = vpop.f32.mrf.mxu0
    %v2638 = vadd.f32 0.0, %v2637
    %2639 = vmatmul.f32.gmra.mxu0 %v2048
    %v2640 = vpop.f32.mrf.mxu0
    %v2641 = vadd.f32 0.0, %v2640
    %2642 = vmatmul.f32.gmra.mxu0 %v2051
    %v2643 = vpop.f32.mrf.mxu0
    %v2644 = vadd.f32 0.0, %v2643
    %2645 = vmatmul.f32.gmra.mxu0 %v2054
    %v2646 = vpop.f32.mrf.mxu0
    %v2647 = vadd.f32 0.0, %v2646
    %2648 = vmatmul.f32.gmra.mxu0 %v2057
    %v2649 = vpop.f32.mrf.mxu0
    %v2650 = vadd.f32 0.0, %v2649
    %2651 = vmatmul.f32.gmra.mxu0 %v2060
    %v2652 = vpop.f32.mrf.mxu0
    %v2653 = vadd.f32 0.0, %v2652
    %2654 = vmatmul.f32.gmra.mxu0 %v2063
    %v2655 = vpop.f32.mrf.mxu0
    %v2656 = vadd.f32 0.0, %v2655
    %2657 = vmatmul.f32.gmra.mxu0 %v2066
    %v2658 = vpop.f32.mrf.mxu0
    %v2659 = vadd.f32 0.0, %v2658
    %2660 = vmatmul.f32.gmra.mxu0 %v2069
    %v2661 = vpop.f32.mrf.mxu0
    %v2662 = vadd.f32 0.0, %v2661
    %2663 = vmatmul.f32.gmra.mxu0 %v2072
    %v2664 = vpop.f32.mrf.mxu0
    %v2665 = vadd.f32 0.0, %v2664
    %2666 = vmatmul.f32.gmra.mxu0 %v2075
    %v2667 = vpop.f32.mrf.mxu0
    %v2668 = vadd.f32 0.0, %v2667
    %2669 = vmatmul.f32.gmra.mxu0 %v2078
    %v2670 = vpop.f32.mrf.mxu0
    %v2671 = vadd.f32 0.0, %v2670
    %2672 = vmatmul.f32.gmra.mxu0 %v2081
    %v2673 = vpop.f32.mrf.mxu0
    %v2674 = vadd.f32 0.0, %v2673
    %2675 = vmatmul.f32.gmra.mxu0 %v2084
    %v2676 = vpop.f32.mrf.mxu0
    %v2677 = vadd.f32 0.0, %v2676
    %2678 = vmatmul.f32.gmra.mxu0 %v2087
    %v2679 = vpop.f32.mrf.mxu0
    %v2680 = vadd.f32 0.0, %v2679
    %2681 = vmatmul.f32.gmra.mxu0 %v2090
    %v2682 = vpop.f32.mrf.mxu0
    %v2683 = vadd.f32 0.0, %v2682
    %2684 = vmatmul.f32.gmra.mxu0 %v2093
    %v2685 = vpop.f32.mrf.mxu0
    %v2686 = vadd.f32 0.0, %v2685
    %2687 = vmatmul.f32.gmra.mxu0 %v2096
    %v2688 = vpop.f32.mrf.mxu0
    %v2689 = vadd.f32 0.0, %v2688
    %2690 = vmatmul.f32.gmra.mxu0 %v2099
    %v2691 = vpop.f32.mrf.mxu0
    %v2692 = vadd.f32 0.0, %v2691
    %2693 = vmatmul.f32.gmra.mxu0 %v2102
    %v2694 = vpop.f32.mrf.mxu0
    %v2695 = vadd.f32 0.0, %v2694
    %2696 = vmatmul.f32.gmra.mxu0 %v2105
    %v2697 = vpop.f32.mrf.mxu0
    %v2698 = vadd.f32 0.0, %v2697
    %2699 = vmatmul.f32.gmra.mxu0 %v2108
    %v2700 = vpop.f32.mrf.mxu0
    %v2701 = vadd.f32 0.0, %v2700
    %2702 = vmatmul.f32.gmra.mxu0 %v2111
    %v2703 = vpop.f32.mrf.mxu0
    %v2704 = vadd.f32 0.0, %v2703
    %2705 = vmatmul.f32.gmra.mxu0 %v2114
    %v2706 = vpop.f32.mrf.mxu0
    %v2707 = vadd.f32 0.0, %v2706
    %2708 = vmatmul.f32.gmra.mxu0 %v2117
    %v2709 = vpop.f32.mrf.mxu0
    %v2710 = vadd.f32 0.0, %v2709
    %2711 = vmatmul.f32.gmra.mxu0 %v2120
    %v2712 = vpop.f32.mrf.mxu0
    %v2713 = vadd.f32 0.0, %v2712
    %2714 = vmatmul.f32.gmra.mxu0 %v2123
    %v2715 = vpop.f32.mrf.mxu0
    %v2716 = vadd.f32 0.0, %v2715
    %2717 = vmatmul.f32.gmra.mxu0 %v2126
    %v2718 = vpop.f32.mrf.mxu0
    %v2719 = vadd.f32 0.0, %v2718
    %2720 = vmatmul.f32.gmra.mxu0 %v2129
    %v2721 = vpop.f32.mrf.mxu0
    %v2722 = vadd.f32 0.0, %v2721
    %2723 = vmatmul.f32.gmra.mxu0 %v2132
    %v2724 = vpop.f32.mrf.mxu0
    %v2725 = vadd.f32 0.0, %v2724
    %2726 = vmatmul.f32.gmra.mxu0 %v2135
    %v2727 = vpop.f32.mrf.mxu0
    %v2728 = vadd.f32 0.0, %v2727
    %2729 = vmatmul.f32.gmra.mxu0 %v2138
    %v2730 = vpop.f32.mrf.mxu0
    %v2731 = vadd.f32 0.0, %v2730
    %2732 = vmatmul.f32.gmra.mxu0 %v2141
    %v2733 = vpop.f32.mrf.mxu0
    %v2734 = vadd.f32 0.0, %v2733
    %2735 = vmatmul.f32.gmra.mxu0 %v2144
    %v2736 = vpop.f32.mrf.mxu0
    %v2737 = vadd.f32 0.0, %v2736
    %2738 = vmatmul.f32.gmra.mxu0 %v2147
    %v2739 = vpop.f32.mrf.mxu0
    %v2740 = vadd.f32 0.0, %v2739
    %2741 = vmatmul.f32.gmra.mxu0 %v2150
    %v2742 = vpop.f32.mrf.mxu0
    %v2743 = vadd.f32 0.0, %v2742
    %2744 = vmatmul.f32.gmra.mxu0 %v2153
    %v2745 = vpop.f32.mrf.mxu0
    %v2746 = vadd.f32 0.0, %v2745
    %2747 = vmatmul.f32.gmra.mxu0 %v2156
    %v2748 = vpop.f32.mrf.mxu0
    %v2749 = vadd.f32 0.0, %v2748
    %2750 = vmatmul.f32.gmra.mxu0 %v2159
    %v2751 = vpop.f32.mrf.mxu0
    %v2752 = vadd.f32 0.0, %v2751
    %2753 = vmatmul.f32.gmra.mxu0 %v2162
    %v2754 = vpop.f32.mrf.mxu0
    %v2755 = vadd.f32 0.0, %v2754
    %2756 = vmatmul.f32.gmra.mxu0 %v2165
    %v2757 = vpop.f32.mrf.mxu0
    %v2758 = vadd.f32 0.0, %v2757
    %2759 = vmatmul.f32.gmra.mxu0 %v2168
    %v2760 = vpop.f32.mrf.mxu0
    %v2761 = vadd.f32 0.0, %v2760
    %2762 = vmatmul.f32.gmra.mxu0 %v2171
    %v2763 = vpop.f32.mrf.mxu0
    %v2764 = vadd.f32 0.0, %v2763
    %2765 = vmatmul.f32.gmra.mxu0 %v2174
    %v2766 = vpop.f32.mrf.mxu0
    %v2767 = vadd.f32 0.0, %v2766
    %2768 = vmatmul.f32.gmra.mxu0 %v2177
    %v2769 = vpop.f32.mrf.mxu0
    %v2770 = vadd.f32 0.0, %v2769
    %2771 = vmatmul.f32.gmra.mxu0 %v2180
    %v2772 = vpop.f32.mrf.mxu0
    %v2773 = vadd.f32 0.0, %v2772
    %2774 = vmatmul.f32.gmra.mxu0 %v2183
    %v2775 = vpop.f32.mrf.mxu0
    %v2776 = vadd.f32 0.0, %v2775
    %2777 = vmatmul.f32.gmra.mxu0 %v2186
    %v2778 = vpop.f32.mrf.mxu0
    %v2779 = vadd.f32 0.0, %v2778
    %2780 = vmatmul.f32.gmra.mxu0 %v2189
    %v2781 = vpop.f32.mrf.mxu0
    %v2782 = vadd.f32 0.0, %v2781
    %2783 = vmatmul.f32.gmra.mxu0 %v2192
    %v2784 = vpop.f32.mrf.mxu0
    %v2785 = vadd.f32 0.0, %v2784
    %2786 = vmatmul.f32.gmra.mxu0 %v2195
    %v2787 = vpop.f32.mrf.mxu0
    %v2788 = vadd.f32 0.0, %v2787
    %2789 = vmatmul.f32.gmra.mxu0 %v2198
    %v2790 = vpop.f32.mrf.mxu0
    %v2791 = vadd.f32 0.0, %v2790
    %2792 = vmatmul.f32.gmra.mxu0 %v2201
    %v2793 = vpop.f32.mrf.mxu0
    %v2794 = vadd.f32 0.0, %v2793
    %2795 = vmatmul.f32.gmra.mxu0 %v2204
    %v2796 = vpop.f32.mrf.mxu0
    %v2797 = vadd.f32 0.0, %v2796
    %2798 = vmatmul.f32.gmra.mxu0 %v2207
    %v2799 = vpop.f32.mrf.mxu0
    %v2800 = vadd.f32 0.0, %v2799
    %2801 = vmatmul.f32.gmra.mxu0 %v2210
    %v2802 = vpop.f32.mrf.mxu0
    %v2803 = vadd.f32 0.0, %v2802
    %2804 = vmatmul.f32.gmra.mxu0 %v2213
    %v2805 = vpop.f32.mrf.mxu0
    %v2806 = vadd.f32 0.0, %v2805
    %2807 = vdwg.mxu0
    %v2808 = vsub.f32 %v2233, %v2617
    %v2809 = vsub.f32 %v2236, %v2620
    %v2810 = vsub.f32 %v2239, %v2623
    %v2811 = vsub.f32 %v2242, %v2626
    %v2812 = vsub.f32 %v2245, %v2629
    %v2813 = vsub.f32 %v2248, %v2632
    %v2814 = vsub.f32 %v2251, %v2635
    %v2815 = vsub.f32 %v2254, %v2638
    %v2816 = vsub.f32 %v2257, %v2641
    %v2817 = vsub.f32 %v2260, %v2644
    %v2818 = vsub.f32 %v2263, %v2647
    %v2819 = vsub.f32 %v2266, %v2650
    %v2820 = vsub.f32 %v2269, %v2653
    %v2821 = vsub.f32 %v2272, %v2656
    %v2822 = vsub.f32 %v2275, %v2659
    %v2823 = vsub.f32 %v2278, %v2662
    %v2824 = vsub.f32 %v2281, %v2665
    %v2825 = vsub.f32 %v2284, %v2668
    %v2826 = vsub.f32 %v2287, %v2671
    %v2827 = vsub.f32 %v2290, %v2674
    %v2828 = vsub.f32 %v2293, %v2677
    %v2829 = vsub.f32 %v2296, %v2680
    %v2830 = vsub.f32 %v2299, %v2683
    %v2831 = vsub.f32 %v2302, %v2686
    %v2832 = vsub.f32 %v2305, %v2689
    %v2833 = vsub.f32 %v2308, %v2692
    %v2834 = vsub.f32 %v2311, %v2695
    %v2835 = vsub.f32 %v2314, %v2698
    %v2836 = vsub.f32 %v2317, %v2701
    %v2837 = vsub.f32 %v2320, %v2704
    %v2838 = vsub.f32 %v2323, %v2707
    %v2839 = vsub.f32 %v2326, %v2710
    %v2840 = vsub.f32 %v2329, %v2713
    %v2841 = vsub.f32 %v2332, %v2716
    %v2842 = vsub.f32 %v2335, %v2719
    %v2843 = vsub.f32 %v2338, %v2722
    %v2844 = vsub.f32 %v2341, %v2725
    %v2845 = vsub.f32 %v2344, %v2728
    %v2846 = vsub.f32 %v2347, %v2731
    %v2847 = vsub.f32 %v2350, %v2734
    %v2848 = vsub.f32 %v2353, %v2737
    %v2849 = vsub.f32 %v2356, %v2740
    %v2850 = vsub.f32 %v2359, %v2743
    %v2851 = vsub.f32 %v2362, %v2746
    %v2852 = vsub.f32 %v2365, %v2749
    %v2853 = vsub.f32 %v2368, %v2752
    %v2854 = vsub.f32 %v2371, %v2755
    %v2855 = vsub.f32 %v2374, %v2758
    %v2856 = vsub.f32 %v2377, %v2761
    %v2857 = vsub.f32 %v2380, %v2764
    %v2858 = vsub.f32 %v2383, %v2767
    %v2859 = vsub.f32 %v2386, %v2770
    %v2860 = vsub.f32 %v2389, %v2773
    %v2861 = vsub.f32 %v2392, %v2776
    %v2862 = vsub.f32 %v2395, %v2779
    %v2863 = vsub.f32 %v2398, %v2782
    %v2864 = vsub.f32 %v2401, %v2785
    %v2865 = vsub.f32 %v2404, %v2788
    %v2866 = vsub.f32 %v2407, %v2791
    %v2867 = vsub.f32 %v2410, %v2794
    %v2868 = vsub.f32 %v2413, %v2797
    %v2869 = vsub.f32 %v2416, %v2800
    %v2870 = vsub.f32 %v2419, %v2803
    %v2871 = vsub.f32 %v2422, %v2806
    %v2872 = vsub.f32 %v2425, %v2617
    %v2873 = vsub.f32 %v2428, %v2620
    %v2874 = vsub.f32 %v2431, %v2623
    %v2875 = vsub.f32 %v2434, %v2626
    %v2876 = vsub.f32 %v2437, %v2629
    %v2877 = vsub.f32 %v2440, %v2632
    %v2878 = vsub.f32 %v2443, %v2635
    %v2879 = vsub.f32 %v2446, %v2638
    %v2880 = vsub.f32 %v2449, %v2641
    %v2881 = vsub.f32 %v2452, %v2644
    %v2882 = vsub.f32 %v2455, %v2647
    %v2883 = vsub.f32 %v2458, %v2650
    %v2884 = vsub.f32 %v2461, %v2653
    %v2885 = vsub.f32 %v2464, %v2656
    %v2886 = vsub.f32 %v2467, %v2659
    %v2887 = vsub.f32 %v2470, %v2662
    %v2888 = vsub.f32 %v2473, %v2665
    %v2889 = vsub.f32 %v2476, %v2668
    %v2890 = vsub.f32 %v2479, %v2671
    %v2891 = vsub.f32 %v2482, %v2674
    %v2892 = vsub.f32 %v2485, %v2677
    %v2893 = vsub.f32 %v2488, %v2680
    %v2894 = vsub.f32 %v2491, %v2683
    %v2895 = vsub.f32 %v2494, %v2686
    %v2896 = vsub.f32 %v2497, %v2689
    %v2897 = vsub.f32 %v2500, %v2692
    %v2898 = vsub.f32 %v2503, %v2695
    %v2899 = vsub.f32 %v2506, %v2698
    %v2900 = vsub.f32 %v2509, %v2701
    %v2901 = vsub.f32 %v2512, %v2704
    %v2902 = vsub.f32 %v2515, %v2707
    %v2903 = vsub.f32 %v2518, %v2710
    %v2904 = vsub.f32 %v2521, %v2713
    %v2905 = vsub.f32 %v2524, %v2716
    %v2906 = vsub.f32 %v2527, %v2719
    %v2907 = vsub.f32 %v2530, %v2722
    %v2908 = vsub.f32 %v2533, %v2725
    %v2909 = vsub.f32 %v2536, %v2728
    %v2910 = vsub.f32 %v2539, %v2731
    %v2911 = vsub.f32 %v2542, %v2734
    %v2912 = vsub.f32 %v2545, %v2737
    %v2913 = vsub.f32 %v2548, %v2740
    %v2914 = vsub.f32 %v2551, %v2743
    %v2915 = vsub.f32 %v2554, %v2746
    %v2916 = vsub.f32 %v2557, %v2749
    %v2917 = vsub.f32 %v2560, %v2752
    %v2918 = vsub.f32 %v2563, %v2755
    %v2919 = vsub.f32 %v2566, %v2758
    %v2920 = vsub.f32 %v2569, %v2761
    %v2921 = vsub.f32 %v2572, %v2764
    %v2922 = vsub.f32 %v2575, %v2767
    %v2923 = vsub.f32 %v2578, %v2770
    %v2924 = vsub.f32 %v2581, %v2773
    %v2925 = vsub.f32 %v2584, %v2776
    %v2926 = vsub.f32 %v2587, %v2779
    %v2927 = vsub.f32 %v2590, %v2782
    %v2928 = vsub.f32 %v2593, %v2785
    %v2929 = vsub.f32 %v2596, %v2788
    %v2930 = vsub.f32 %v2599, %v2791
    %v2931 = vsub.f32 %v2602, %v2794
    %v2932 = vsub.f32 %v2605, %v2797
    %v2933 = vsub.f32 %v2608, %v2800
    %v2934 = vsub.f32 %v2611, %v2803
    %v2935 = vsub.f32 %v2614, %v2806
    %v2936 = vmul.f32 %v2808, %v2808
    %v2937 = vmul.f32 %v2809, %v2809
    %v2938 = vmul.f32 %v2810, %v2810
    %v2939 = vmul.f32 %v2811, %v2811
    %v2940 = vmul.f32 %v2812, %v2812
    %v2941 = vmul.f32 %v2813, %v2813
    %v2942 = vmul.f32 %v2814, %v2814
    %v2943 = vmul.f32 %v2815, %v2815
    %v2944 = vmul.f32 %v2816, %v2816
    %v2945 = vmul.f32 %v2817, %v2817
    %v2946 = vmul.f32 %v2818, %v2818
    %v2947 = vmul.f32 %v2819, %v2819
    %v2948 = vmul.f32 %v2820, %v2820
    %v2949 = vmul.f32 %v2821, %v2821
    %v2950 = vmul.f32 %v2822, %v2822
    %v2951 = vmul.f32 %v2823, %v2823
    %v2952 = vmul.f32 %v2824, %v2824
    %v2953 = vmul.f32 %v2825, %v2825
    %v2954 = vmul.f32 %v2826, %v2826
    %v2955 = vmul.f32 %v2827, %v2827
    %v2956 = vmul.f32 %v2828, %v2828
    %v2957 = vmul.f32 %v2829, %v2829
    %v2958 = vmul.f32 %v2830, %v2830
    %v2959 = vmul.f32 %v2831, %v2831
    %v2960 = vmul.f32 %v2832, %v2832
    %v2961 = vmul.f32 %v2833, %v2833
    %v2962 = vmul.f32 %v2834, %v2834
    %v2963 = vmul.f32 %v2835, %v2835
    %v2964 = vmul.f32 %v2836, %v2836
    %v2965 = vmul.f32 %v2837, %v2837
    %v2966 = vmul.f32 %v2838, %v2838
    %v2967 = vmul.f32 %v2839, %v2839
    %v2968 = vmul.f32 %v2840, %v2840
    %v2969 = vmul.f32 %v2841, %v2841
    %v2970 = vmul.f32 %v2842, %v2842
    %v2971 = vmul.f32 %v2843, %v2843
    %v2972 = vmul.f32 %v2844, %v2844
    %v2973 = vmul.f32 %v2845, %v2845
    %v2974 = vmul.f32 %v2846, %v2846
    %v2975 = vmul.f32 %v2847, %v2847
    %v2976 = vmul.f32 %v2848, %v2848
    %v2977 = vmul.f32 %v2849, %v2849
    %v2978 = vmul.f32 %v2850, %v2850
    %v2979 = vmul.f32 %v2851, %v2851
    %v2980 = vmul.f32 %v2852, %v2852
    %v2981 = vmul.f32 %v2853, %v2853
    %v2982 = vmul.f32 %v2854, %v2854
    %v2983 = vmul.f32 %v2855, %v2855
    %v2984 = vmul.f32 %v2856, %v2856
    %v2985 = vmul.f32 %v2857, %v2857
    %v2986 = vmul.f32 %v2858, %v2858
    %v2987 = vmul.f32 %v2859, %v2859
    %v2988 = vmul.f32 %v2860, %v2860
    %v2989 = vmul.f32 %v2861, %v2861
    %v2990 = vmul.f32 %v2862, %v2862
    %v2991 = vmul.f32 %v2863, %v2863
    %v2992 = vmul.f32 %v2864, %v2864
    %v2993 = vmul.f32 %v2865, %v2865
    %v2994 = vmul.f32 %v2866, %v2866
    %v2995 = vmul.f32 %v2867, %v2867
    %v2996 = vmul.f32 %v2868, %v2868
    %v2997 = vmul.f32 %v2869, %v2869
    %v2998 = vmul.f32 %v2870, %v2870
    %v2999 = vmul.f32 %v2871, %v2871
    %3000 = vadd.xlane.f32.xlu0 %v2936
    %v3001 = vpop.xlane.xlu0 %3000
    %3002 = vadd.xlane.f32.xlu0 %v2937
    %v3003 = vpop.xlane.xlu0 %3002
    %3004 = vadd.xlane.f32.xlu0 %v2938
    %v3005 = vpop.xlane.xlu0 %3004
    %3006 = vadd.xlane.f32.xlu0 %v2939
    %v3007 = vpop.xlane.xlu0 %3006
    %3008 = vadd.xlane.f32.xlu0 %v2940
    %v3009 = vpop.xlane.xlu0 %3008
    %3010 = vadd.xlane.f32.xlu0 %v2941
    %v3011 = vpop.xlane.xlu0 %3010
    %3012 = vadd.xlane.f32.xlu0 %v2942
    %v3013 = vpop.xlane.xlu0 %3012
    %3014 = vadd.xlane.f32.xlu0 %v2943
    %v3015 = vpop.xlane.xlu0 %3014
    %3016 = vadd.xlane.f32.xlu0 %v2944
    %v3017 = vpop.xlane.xlu0 %3016
    %3018 = vadd.xlane.f32.xlu0 %v2945
    %v3019 = vpop.xlane.xlu0 %3018
    %3020 = vadd.xlane.f32.xlu0 %v2946
    %v3021 = vpop.xlane.xlu0 %3020
    %3022 = vadd.xlane.f32.xlu0 %v2947
    %v3023 = vpop.xlane.xlu0 %3022
    %3024 = vadd.xlane.f32.xlu0 %v2948
    %v3025 = vpop.xlane.xlu0 %3024
    %3026 = vadd.xlane.f32.xlu0 %v2949
    %v3027 = vpop.xlane.xlu0 %3026
    %3028 = vadd.xlane.f32.xlu0 %v2950
    %v3029 = vpop.xlane.xlu0 %3028
    %3030 = vadd.xlane.f32.xlu0 %v2951
    %v3031 = vpop.xlane.xlu0 %3030
    %3032 = vadd.xlane.f32.xlu0 %v2952
    %v3033 = vpop.xlane.xlu0 %3032
    %3034 = vadd.xlane.f32.xlu0 %v2953
    %v3035 = vpop.xlane.xlu0 %3034
    %3036 = vadd.xlane.f32.xlu0 %v2954
    %v3037 = vpop.xlane.xlu0 %3036
    %3038 = vadd.xlane.f32.xlu0 %v2955
    %v3039 = vpop.xlane.xlu0 %3038
    %3040 = vadd.xlane.f32.xlu0 %v2956
    %v3041 = vpop.xlane.xlu0 %3040
    %3042 = vadd.xlane.f32.xlu0 %v2957
    %v3043 = vpop.xlane.xlu0 %3042
    %3044 = vadd.xlane.f32.xlu0 %v2958
    %v3045 = vpop.xlane.xlu0 %3044
    %3046 = vadd.xlane.f32.xlu0 %v2959
    %v3047 = vpop.xlane.xlu0 %3046
    %3048 = vadd.xlane.f32.xlu0 %v2960
    %v3049 = vpop.xlane.xlu0 %3048
    %3050 = vadd.xlane.f32.xlu0 %v2961
    %v3051 = vpop.xlane.xlu0 %3050
    %3052 = vadd.xlane.f32.xlu0 %v2962
    %v3053 = vpop.xlane.xlu0 %3052
    %3054 = vadd.xlane.f32.xlu0 %v2963
    %v3055 = vpop.xlane.xlu0 %3054
    %3056 = vadd.xlane.f32.xlu0 %v2964
    %v3057 = vpop.xlane.xlu0 %3056
    %3058 = vadd.xlane.f32.xlu0 %v2965
    %v3059 = vpop.xlane.xlu0 %3058
    %3060 = vadd.xlane.f32.xlu0 %v2966
    %v3061 = vpop.xlane.xlu0 %3060
    %3062 = vadd.xlane.f32.xlu0 %v2967
    %v3063 = vpop.xlane.xlu0 %3062
    %3064 = vadd.xlane.f32.xlu0 %v2968
    %v3065 = vpop.xlane.xlu0 %3064
    %3066 = vadd.xlane.f32.xlu0 %v2969
    %v3067 = vpop.xlane.xlu0 %3066
    %3068 = vadd.xlane.f32.xlu0 %v2970
    %v3069 = vpop.xlane.xlu0 %3068
    %3070 = vadd.xlane.f32.xlu0 %v2971
    %v3071 = vpop.xlane.xlu0 %3070
    %3072 = vadd.xlane.f32.xlu0 %v2972
    %v3073 = vpop.xlane.xlu0 %3072
    %3074 = vadd.xlane.f32.xlu0 %v2973
    %v3075 = vpop.xlane.xlu0 %3074
    %3076 = vadd.xlane.f32.xlu0 %v2974
    %v3077 = vpop.xlane.xlu0 %3076
    %3078 = vadd.xlane.f32.xlu0 %v2975
    %v3079 = vpop.xlane.xlu0 %3078
    %3080 = vadd.xlane.f32.xlu0 %v2976
    %v3081 = vpop.xlane.xlu0 %3080
    %3082 = vadd.xlane.f32.xlu0 %v2977
    %v3083 = vpop.xlane.xlu0 %3082
    %3084 = vadd.xlane.f32.xlu0 %v2978
    %v3085 = vpop.xlane.xlu0 %3084
    %3086 = vadd.xlane.f32.xlu0 %v2979
    %v3087 = vpop.xlane.xlu0 %3086
    %3088 = vadd.xlane.f32.xlu0 %v2980
    %v3089 = vpop.xlane.xlu0 %3088
    %3090 = vadd.xlane.f32.xlu0 %v2981
    %v3091 = vpop.xlane.xlu0 %3090
    %3092 = vadd.xlane.f32.xlu0 %v2982
    %v3093 = vpop.xlane.xlu0 %3092
    %3094 = vadd.xlane.f32.xlu0 %v2983
    %v3095 = vpop.xlane.xlu0 %3094
    %3096 = vadd.xlane.f32.xlu0 %v2984
    %v3097 = vpop.xlane.xlu0 %3096
    %3098 = vadd.xlane.f32.xlu0 %v2985
    %v3099 = vpop.xlane.xlu0 %3098
    %3100 = vadd.xlane.f32.xlu0 %v2986
    %v3101 = vpop.xlane.xlu0 %3100
    %3102 = vadd.xlane.f32.xlu0 %v2987
    %v3103 = vpop.xlane.xlu0 %3102
    %3104 = vadd.xlane.f32.xlu0 %v2988
    %v3105 = vpop.xlane.xlu0 %3104
    %3106 = vadd.xlane.f32.xlu0 %v2989
    %v3107 = vpop.xlane.xlu0 %3106
    %3108 = vadd.xlane.f32.xlu0 %v2990
    %v3109 = vpop.xlane.xlu0 %3108
    %3110 = vadd.xlane.f32.xlu0 %v2991
    %v3111 = vpop.xlane.xlu0 %3110
    %3112 = vadd.xlane.f32.xlu0 %v2992
    %v3113 = vpop.xlane.xlu0 %3112
    %3114 = vadd.xlane.f32.xlu0 %v2993
    %v3115 = vpop.xlane.xlu0 %3114
    %3116 = vadd.xlane.f32.xlu0 %v2994
    %v3117 = vpop.xlane.xlu0 %3116
    %3118 = vadd.xlane.f32.xlu0 %v2995
    %v3119 = vpop.xlane.xlu0 %3118
    %3120 = vadd.xlane.f32.xlu0 %v2996
    %v3121 = vpop.xlane.xlu0 %3120
    %3122 = vadd.xlane.f32.xlu0 %v2997
    %v3123 = vpop.xlane.xlu0 %3122
    %3124 = vadd.xlane.f32.xlu0 %v2998
    %v3125 = vpop.xlane.xlu0 %3124
    %3126 = vadd.xlane.f32.xlu0 %v2999
    %v3127 = vpop.xlane.xlu0 %3126
    %v3128 = vrsqrt.pop %v3001
    %v3129 = vmul.f32 %v3128, %v3001
    %v3130 = vmul.f32 %v3129, %v3128
    %v3131 = vmul.f32 0.5, %v3130
    %v3132 = vsub.f32 1.5, %v3131
    %v3133 = vmul.f32 %v3128, %v3132
    %v3134 = vmul.f32 %v3001, %v3133
    %vm3135 = vcmp.eq.f32.partialorder %v3001, inf
    %v3136 = vsel %vm3135, %v3001, %v3134
    %vm3137 = vcmp.eq.f32.partialorder %v3001, 0.0
    %v3138 = vand.u32 %v3001, 2147483648
    %v3139 = vsel %vm3137, %v3138, %v3136
    %v3140 = vrsqrt.pop %v3003
    %v3141 = vmul.f32 %v3140, %v3003
    %v3142 = vmul.f32 %v3141, %v3140
    %v3143 = vmul.f32 0.5, %v3142
    %v3144 = vsub.f32 1.5, %v3143
    %v3145 = vmul.f32 %v3140, %v3144
    %v3146 = vmul.f32 %v3003, %v3145
    %vm3147 = vcmp.eq.f32.partialorder %v3003, inf
    %v3148 = vsel %vm3147, %v3003, %v3146
    %vm3149 = vcmp.eq.f32.partialorder %v3003, 0.0
    %v3150 = vand.u32 %v3003, 2147483648
    %v3151 = vsel %vm3149, %v3150, %v3148
    %v3152 = vrsqrt.pop %v3005
    %v3153 = vmul.f32 %v3152, %v3005
    %v3154 = vmul.f32 %v3153, %v3152
    %v3155 = vmul.f32 0.5, %v3154
    %v3156 = vsub.f32 1.5, %v3155
    %v3157 = vmul.f32 %v3152, %v3156
    %v3158 = vmul.f32 %v3005, %v3157
    %vm3159 = vcmp.eq.f32.partialorder %v3005, inf
    %v3160 = vsel %vm3159, %v3005, %v3158
    %vm3161 = vcmp.eq.f32.partialorder %v3005, 0.0
    %v3162 = vand.u32 %v3005, 2147483648
    %v3163 = vsel %vm3161, %v3162, %v3160
    %v3164 = vrsqrt.pop %v3007
    %v3165 = vmul.f32 %v3164, %v3007
    %v3166 = vmul.f32 %v3165, %v3164
    %v3167 = vmul.f32 0.5, %v3166
    %v3168 = vsub.f32 1.5, %v3167
    %v3169 = vmul.f32 %v3164, %v3168
    %v3170 = vmul.f32 %v3007, %v3169
    %vm3171 = vcmp.eq.f32.partialorder %v3007, inf
    %v3172 = vsel %vm3171, %v3007, %v3170
    %vm3173 = vcmp.eq.f32.partialorder %v3007, 0.0
    %v3174 = vand.u32 %v3007, 2147483648
    %v3175 = vsel %vm3173, %v3174, %v3172
    %v3176 = vrsqrt.pop %v3009
    %v3177 = vmul.f32 %v3176, %v3009
    %v3178 = vmul.f32 %v3177, %v3176
    %v3179 = vmul.f32 0.5, %v3178
    %v3180 = vsub.f32 1.5, %v3179
    %v3181 = vmul.f32 %v3176, %v3180
    %v3182 = vmul.f32 %v3009, %v3181
    %vm3183 = vcmp.eq.f32.partialorder %v3009, inf
    %v3184 = vsel %vm3183, %v3009, %v3182
    %vm3185 = vcmp.eq.f32.partialorder %v3009, 0.0
    %v3186 = vand.u32 %v3009, 2147483648
    %v3187 = vsel %vm3185, %v3186, %v3184
    %v3188 = vrsqrt.pop %v3011
    %v3189 = vmul.f32 %v3188, %v3011
    %v3190 = vmul.f32 %v3189, %v3188
    %v3191 = vmul.f32 0.5, %v3190
    %v3192 = vsub.f32 1.5, %v3191
    %v3193 = vmul.f32 %v3188, %v3192
    %v3194 = vmul.f32 %v3011, %v3193
    %vm3195 = vcmp.eq.f32.partialorder %v3011, inf
    %v3196 = vsel %vm3195, %v3011, %v3194
    %vm3197 = vcmp.eq.f32.partialorder %v3011, 0.0
    %v3198 = vand.u32 %v3011, 2147483648
    %v3199 = vsel %vm3197, %v3198, %v3196
    %v3200 = vrsqrt.pop %v3013
    %v3201 = vmul.f32 %v3200, %v3013
    %v3202 = vmul.f32 %v3201, %v3200
    %v3203 = vmul.f32 0.5, %v3202
    %v3204 = vsub.f32 1.5, %v3203
    %v3205 = vmul.f32 %v3200, %v3204
    %v3206 = vmul.f32 %v3013, %v3205
    %vm3207 = vcmp.eq.f32.partialorder %v3013, inf
    %v3208 = vsel %vm3207, %v3013, %v3206
    %vm3209 = vcmp.eq.f32.partialorder %v3013, 0.0
    %v3210 = vand.u32 %v3013, 2147483648
    %v3211 = vsel %vm3209, %v3210, %v3208
    %v3212 = vrsqrt.pop %v3015
    %v3213 = vmul.f32 %v3212, %v3015
    %v3214 = vmul.f32 %v3213, %v3212
    %v3215 = vmul.f32 0.5, %v3214
    %v3216 = vsub.f32 1.5, %v3215
    %v3217 = vmul.f32 %v3212, %v3216
    %v3218 = vmul.f32 %v3015, %v3217
    %vm3219 = vcmp.eq.f32.partialorder %v3015, inf
    %v3220 = vsel %vm3219, %v3015, %v3218
    %vm3221 = vcmp.eq.f32.partialorder %v3015, 0.0
    %v3222 = vand.u32 %v3015, 2147483648
    %v3223 = vsel %vm3221, %v3222, %v3220
    %v3224 = vrsqrt.pop %v3017
    %v3225 = vmul.f32 %v3224, %v3017
    %v3226 = vmul.f32 %v3225, %v3224
    %v3227 = vmul.f32 0.5, %v3226
    %v3228 = vsub.f32 1.5, %v3227
    %v3229 = vmul.f32 %v3224, %v3228
    %v3230 = vmul.f32 %v3017, %v3229
    %vm3231 = vcmp.eq.f32.partialorder %v3017, inf
    %v3232 = vsel %vm3231, %v3017, %v3230
    %vm3233 = vcmp.eq.f32.partialorder %v3017, 0.0
    %v3234 = vand.u32 %v3017, 2147483648
    %v3235 = vsel %vm3233, %v3234, %v3232
    %v3236 = vrsqrt.pop %v3019
    %v3237 = vmul.f32 %v3236, %v3019
    %v3238 = vmul.f32 %v3237, %v3236
    %v3239 = vmul.f32 0.5, %v3238
    %v3240 = vsub.f32 1.5, %v3239
    %v3241 = vmul.f32 %v3236, %v3240
    %v3242 = vmul.f32 %v3019, %v3241
    %vm3243 = vcmp.eq.f32.partialorder %v3019, inf
    %v3244 = vsel %vm3243, %v3019, %v3242
    %vm3245 = vcmp.eq.f32.partialorder %v3019, 0.0
    %v3246 = vand.u32 %v3019, 2147483648
    %v3247 = vsel %vm3245, %v3246, %v3244
    %v3248 = vrsqrt.pop %v3021
    %v3249 = vmul.f32 %v3248, %v3021
    %v3250 = vmul.f32 %v3249, %v3248
    %v3251 = vmul.f32 0.5, %v3250
    %v3252 = vsub.f32 1.5, %v3251
    %v3253 = vmul.f32 %v3248, %v3252
    %v3254 = vmul.f32 %v3021, %v3253
    %vm3255 = vcmp.eq.f32.partialorder %v3021, inf
    %v3256 = vsel %vm3255, %v3021, %v3254
    %vm3257 = vcmp.eq.f32.partialorder %v3021, 0.0
    %v3258 = vand.u32 %v3021, 2147483648
    %v3259 = vsel %vm3257, %v3258, %v3256
    %v3260 = vrsqrt.pop %v3023
    %v3261 = vmul.f32 %v3260, %v3023
    %v3262 = vmul.f32 %v3261, %v3260
    %v3263 = vmul.f32 0.5, %v3262
    %v3264 = vsub.f32 1.5, %v3263
    %v3265 = vmul.f32 %v3260, %v3264
    %v3266 = vmul.f32 %v3023, %v3265
    %vm3267 = vcmp.eq.f32.partialorder %v3023, inf
    %v3268 = vsel %vm3267, %v3023, %v3266
    %vm3269 = vcmp.eq.f32.partialorder %v3023, 0.0
    %v3270 = vand.u32 %v3023, 2147483648
    %v3271 = vsel %vm3269, %v3270, %v3268
    %v3272 = vrsqrt.pop %v3025
    %v3273 = vmul.f32 %v3272, %v3025
    %v3274 = vmul.f32 %v3273, %v3272
    %v3275 = vmul.f32 0.5, %v3274
    %v3276 = vsub.f32 1.5, %v3275
    %v3277 = vmul.f32 %v3272, %v3276
    %v3278 = vmul.f32 %v3025, %v3277
    %vm3279 = vcmp.eq.f32.partialorder %v3025, inf
    %v3280 = vsel %vm3279, %v3025, %v3278
    %vm3281 = vcmp.eq.f32.partialorder %v3025, 0.0
    %v3282 = vand.u32 %v3025, 2147483648
    %v3283 = vsel %vm3281, %v3282, %v3280
    %v3284 = vrsqrt.pop %v3027
    %v3285 = vmul.f32 %v3284, %v3027
    %v3286 = vmul.f32 %v3285, %v3284
    %v3287 = vmul.f32 0.5, %v3286
    %v3288 = vsub.f32 1.5, %v3287
    %v3289 = vmul.f32 %v3284, %v3288
    %v3290 = vmul.f32 %v3027, %v3289
    %vm3291 = vcmp.eq.f32.partialorder %v3027, inf
    %v3292 = vsel %vm3291, %v3027, %v3290
    %vm3293 = vcmp.eq.f32.partialorder %v3027, 0.0
    %v3294 = vand.u32 %v3027, 2147483648
    %v3295 = vsel %vm3293, %v3294, %v3292
    %v3296 = vrsqrt.pop %v3029
    %v3297 = vmul.f32 %v3296, %v3029
    %v3298 = vmul.f32 %v3297, %v3296
    %v3299 = vmul.f32 0.5, %v3298
    %v3300 = vsub.f32 1.5, %v3299
    %v3301 = vmul.f32 %v3296, %v3300
    %v3302 = vmul.f32 %v3029, %v3301
    %vm3303 = vcmp.eq.f32.partialorder %v3029, inf
    %v3304 = vsel %vm3303, %v3029, %v3302
    %vm3305 = vcmp.eq.f32.partialorder %v3029, 0.0
    %v3306 = vand.u32 %v3029, 2147483648
    %v3307 = vsel %vm3305, %v3306, %v3304
    %v3308 = vrsqrt.pop %v3031
    %v3309 = vmul.f32 %v3308, %v3031
    %v3310 = vmul.f32 %v3309, %v3308
    %v3311 = vmul.f32 0.5, %v3310
    %v3312 = vsub.f32 1.5, %v3311
    %v3313 = vmul.f32 %v3308, %v3312
    %v3314 = vmul.f32 %v3031, %v3313
    %vm3315 = vcmp.eq.f32.partialorder %v3031, inf
    %v3316 = vsel %vm3315, %v3031, %v3314
    %vm3317 = vcmp.eq.f32.partialorder %v3031, 0.0
    %v3318 = vand.u32 %v3031, 2147483648
    %v3319 = vsel %vm3317, %v3318, %v3316
    %v3320 = vrsqrt.pop %v3033
    %v3321 = vmul.f32 %v3320, %v3033
    %v3322 = vmul.f32 %v3321, %v3320
    %v3323 = vmul.f32 0.5, %v3322
    %v3324 = vsub.f32 1.5, %v3323
    %v3325 = vmul.f32 %v3320, %v3324
    %v3326 = vmul.f32 %v3033, %v3325
    %vm3327 = vcmp.eq.f32.partialorder %v3033, inf
    %v3328 = vsel %vm3327, %v3033, %v3326
    %vm3329 = vcmp.eq.f32.partialorder %v3033, 0.0
    %v3330 = vand.u32 %v3033, 2147483648
    %v3331 = vsel %vm3329, %v3330, %v3328
    %v3332 = vrsqrt.pop %v3035
    %v3333 = vmul.f32 %v3332, %v3035
    %v3334 = vmul.f32 %v3333, %v3332
    %v3335 = vmul.f32 0.5, %v3334
    %v3336 = vsub.f32 1.5, %v3335
    %v3337 = vmul.f32 %v3332, %v3336
    %v3338 = vmul.f32 %v3035, %v3337
    %vm3339 = vcmp.eq.f32.partialorder %v3035, inf
    %v3340 = vsel %vm3339, %v3035, %v3338
    %vm3341 = vcmp.eq.f32.partialorder %v3035, 0.0
    %v3342 = vand.u32 %v3035, 2147483648
    %v3343 = vsel %vm3341, %v3342, %v3340
    %v3344 = vrsqrt.pop %v3037
    %v3345 = vmul.f32 %v3344, %v3037
    %v3346 = vmul.f32 %v3345, %v3344
    %v3347 = vmul.f32 0.5, %v3346
    %v3348 = vsub.f32 1.5, %v3347
    %v3349 = vmul.f32 %v3344, %v3348
    %v3350 = vmul.f32 %v3037, %v3349
    %vm3351 = vcmp.eq.f32.partialorder %v3037, inf
    %v3352 = vsel %vm3351, %v3037, %v3350
    %vm3353 = vcmp.eq.f32.partialorder %v3037, 0.0
    %v3354 = vand.u32 %v3037, 2147483648
    %v3355 = vsel %vm3353, %v3354, %v3352
    %v3356 = vrsqrt.pop %v3039
    %v3357 = vmul.f32 %v3356, %v3039
    %v3358 = vmul.f32 %v3357, %v3356
    %v3359 = vmul.f32 0.5, %v3358
    %v3360 = vsub.f32 1.5, %v3359
    %v3361 = vmul.f32 %v3356, %v3360
    %v3362 = vmul.f32 %v3039, %v3361
    %vm3363 = vcmp.eq.f32.partialorder %v3039, inf
    %v3364 = vsel %vm3363, %v3039, %v3362
    %vm3365 = vcmp.eq.f32.partialorder %v3039, 0.0
    %v3366 = vand.u32 %v3039, 2147483648
    %v3367 = vsel %vm3365, %v3366, %v3364
    %v3368 = vrsqrt.pop %v3041
    %v3369 = vmul.f32 %v3368, %v3041
    %v3370 = vmul.f32 %v3369, %v3368
    %v3371 = vmul.f32 0.5, %v3370
    %v3372 = vsub.f32 1.5, %v3371
    %v3373 = vmul.f32 %v3368, %v3372
    %v3374 = vmul.f32 %v3041, %v3373
    %vm3375 = vcmp.eq.f32.partialorder %v3041, inf
    %v3376 = vsel %vm3375, %v3041, %v3374
    %vm3377 = vcmp.eq.f32.partialorder %v3041, 0.0
    %v3378 = vand.u32 %v3041, 2147483648
    %v3379 = vsel %vm3377, %v3378, %v3376
    %v3380 = vrsqrt.pop %v3043
    %v3381 = vmul.f32 %v3380, %v3043
    %v3382 = vmul.f32 %v3381, %v3380
    %v3383 = vmul.f32 0.5, %v3382
    %v3384 = vsub.f32 1.5, %v3383
    %v3385 = vmul.f32 %v3380, %v3384
    %v3386 = vmul.f32 %v3043, %v3385
    %vm3387 = vcmp.eq.f32.partialorder %v3043, inf
    %v3388 = vsel %vm3387, %v3043, %v3386
    %vm3389 = vcmp.eq.f32.partialorder %v3043, 0.0
    %v3390 = vand.u32 %v3043, 2147483648
    %v3391 = vsel %vm3389, %v3390, %v3388
    %v3392 = vrsqrt.pop %v3045
    %v3393 = vmul.f32 %v3392, %v3045
    %v3394 = vmul.f32 %v3393, %v3392
    %v3395 = vmul.f32 0.5, %v3394
    %v3396 = vsub.f32 1.5, %v3395
    %v3397 = vmul.f32 %v3392, %v3396
    %v3398 = vmul.f32 %v3045, %v3397
    %vm3399 = vcmp.eq.f32.partialorder %v3045, inf
    %v3400 = vsel %vm3399, %v3045, %v3398
    %vm3401 = vcmp.eq.f32.partialorder %v3045, 0.0
    %v3402 = vand.u32 %v3045, 2147483648
    %v3403 = vsel %vm3401, %v3402, %v3400
    %v3404 = vrsqrt.pop %v3047
    %v3405 = vmul.f32 %v3404, %v3047
    %v3406 = vmul.f32 %v3405, %v3404
    %v3407 = vmul.f32 0.5, %v3406
    %v3408 = vsub.f32 1.5, %v3407
    %v3409 = vmul.f32 %v3404, %v3408
    %v3410 = vmul.f32 %v3047, %v3409
    %vm3411 = vcmp.eq.f32.partialorder %v3047, inf
    %v3412 = vsel %vm3411, %v3047, %v3410
    %vm3413 = vcmp.eq.f32.partialorder %v3047, 0.0
    %v3414 = vand.u32 %v3047, 2147483648
    %v3415 = vsel %vm3413, %v3414, %v3412
    %v3416 = vrsqrt.pop %v3049
    %v3417 = vmul.f32 %v3416, %v3049
    %v3418 = vmul.f32 %v3417, %v3416
    %v3419 = vmul.f32 0.5, %v3418
    %v3420 = vsub.f32 1.5, %v3419
    %v3421 = vmul.f32 %v3416, %v3420
    %v3422 = vmul.f32 %v3049, %v3421
    %vm3423 = vcmp.eq.f32.partialorder %v3049, inf
    %v3424 = vsel %vm3423, %v3049, %v3422
    %vm3425 = vcmp.eq.f32.partialorder %v3049, 0.0
    %v3426 = vand.u32 %v3049, 2147483648
    %v3427 = vsel %vm3425, %v3426, %v3424
    %v3428 = vrsqrt.pop %v3051
    %v3429 = vmul.f32 %v3428, %v3051
    %v3430 = vmul.f32 %v3429, %v3428
    %v3431 = vmul.f32 0.5, %v3430
    %v3432 = vsub.f32 1.5, %v3431
    %v3433 = vmul.f32 %v3428, %v3432
    %v3434 = vmul.f32 %v3051, %v3433
    %vm3435 = vcmp.eq.f32.partialorder %v3051, inf
    %v3436 = vsel %vm3435, %v3051, %v3434
    %vm3437 = vcmp.eq.f32.partialorder %v3051, 0.0
    %v3438 = vand.u32 %v3051, 2147483648
    %v3439 = vsel %vm3437, %v3438, %v3436
    %v3440 = vrsqrt.pop %v3053
    %v3441 = vmul.f32 %v3440, %v3053
    %v3442 = vmul.f32 %v3441, %v3440
    %v3443 = vmul.f32 0.5, %v3442
    %v3444 = vsub.f32 1.5, %v3443
    %v3445 = vmul.f32 %v3440, %v3444
    %v3446 = vmul.f32 %v3053, %v3445
    %vm3447 = vcmp.eq.f32.partialorder %v3053, inf
    %v3448 = vsel %vm3447, %v3053, %v3446
    %vm3449 = vcmp.eq.f32.partialorder %v3053, 0.0
    %v3450 = vand.u32 %v3053, 2147483648
    %v3451 = vsel %vm3449, %v3450, %v3448
    %v3452 = vrsqrt.pop %v3055
    %v3453 = vmul.f32 %v3452, %v3055
    %v3454 = vmul.f32 %v3453, %v3452
    %v3455 = vmul.f32 0.5, %v3454
    %v3456 = vsub.f32 1.5, %v3455
    %v3457 = vmul.f32 %v3452, %v3456
    %v3458 = vmul.f32 %v3055, %v3457
    %vm3459 = vcmp.eq.f32.partialorder %v3055, inf
    %v3460 = vsel %vm3459, %v3055, %v3458
    %vm3461 = vcmp.eq.f32.partialorder %v3055, 0.0
    %v3462 = vand.u32 %v3055, 2147483648
    %v3463 = vsel %vm3461, %v3462, %v3460
    %v3464 = vrsqrt.pop %v3057
    %v3465 = vmul.f32 %v3464, %v3057
    %v3466 = vmul.f32 %v3465, %v3464
    %v3467 = vmul.f32 0.5, %v3466
    %v3468 = vsub.f32 1.5, %v3467
    %v3469 = vmul.f32 %v3464, %v3468
    %v3470 = vmul.f32 %v3057, %v3469
    %vm3471 = vcmp.eq.f32.partialorder %v3057, inf
    %v3472 = vsel %vm3471, %v3057, %v3470
    %vm3473 = vcmp.eq.f32.partialorder %v3057, 0.0
    %v3474 = vand.u32 %v3057, 2147483648
    %v3475 = vsel %vm3473, %v3474, %v3472
    %v3476 = vrsqrt.pop %v3059
    %v3477 = vmul.f32 %v3476, %v3059
    %v3478 = vmul.f32 %v3477, %v3476
    %v3479 = vmul.f32 0.5, %v3478
    %v3480 = vsub.f32 1.5, %v3479
    %v3481 = vmul.f32 %v3476, %v3480
    %v3482 = vmul.f32 %v3059, %v3481
    %vm3483 = vcmp.eq.f32.partialorder %v3059, inf
    %v3484 = vsel %vm3483, %v3059, %v3482
    %vm3485 = vcmp.eq.f32.partialorder %v3059, 0.0
    %v3486 = vand.u32 %v3059, 2147483648
    %v3487 = vsel %vm3485, %v3486, %v3484
    %v3488 = vrsqrt.pop %v3061
    %v3489 = vmul.f32 %v3488, %v3061
    %v3490 = vmul.f32 %v3489, %v3488
    %v3491 = vmul.f32 0.5, %v3490
    %v3492 = vsub.f32 1.5, %v3491
    %v3493 = vmul.f32 %v3488, %v3492
    %v3494 = vmul.f32 %v3061, %v3493
    %vm3495 = vcmp.eq.f32.partialorder %v3061, inf
    %v3496 = vsel %vm3495, %v3061, %v3494
    %vm3497 = vcmp.eq.f32.partialorder %v3061, 0.0
    %v3498 = vand.u32 %v3061, 2147483648
    %v3499 = vsel %vm3497, %v3498, %v3496
    %v3500 = vrsqrt.pop %v3063
    %v3501 = vmul.f32 %v3500, %v3063
    %v3502 = vmul.f32 %v3501, %v3500
    %v3503 = vmul.f32 0.5, %v3502
    %v3504 = vsub.f32 1.5, %v3503
    %v3505 = vmul.f32 %v3500, %v3504
    %v3506 = vmul.f32 %v3063, %v3505
    %vm3507 = vcmp.eq.f32.partialorder %v3063, inf
    %v3508 = vsel %vm3507, %v3063, %v3506
    %vm3509 = vcmp.eq.f32.partialorder %v3063, 0.0
    %v3510 = vand.u32 %v3063, 2147483648
    %v3511 = vsel %vm3509, %v3510, %v3508
    %v3512 = vrsqrt.pop %v3065
    %v3513 = vmul.f32 %v3512, %v3065
    %v3514 = vmul.f32 %v3513, %v3512
    %v3515 = vmul.f32 0.5, %v3514
    %v3516 = vsub.f32 1.5, %v3515
    %v3517 = vmul.f32 %v3512, %v3516
    %v3518 = vmul.f32 %v3065, %v3517
    %vm3519 = vcmp.eq.f32.partialorder %v3065, inf
    %v3520 = vsel %vm3519, %v3065, %v3518
    %vm3521 = vcmp.eq.f32.partialorder %v3065, 0.0
    %v3522 = vand.u32 %v3065, 2147483648
    %v3523 = vsel %vm3521, %v3522, %v3520
    %v3524 = vrsqrt.pop %v3067
    %v3525 = vmul.f32 %v3524, %v3067
    %v3526 = vmul.f32 %v3525, %v3524
    %v3527 = vmul.f32 0.5, %v3526
    %v3528 = vsub.f32 1.5, %v3527
    %v3529 = vmul.f32 %v3524, %v3528
    %v3530 = vmul.f32 %v3067, %v3529
    %vm3531 = vcmp.eq.f32.partialorder %v3067, inf
    %v3532 = vsel %vm3531, %v3067, %v3530
    %vm3533 = vcmp.eq.f32.partialorder %v3067, 0.0
    %v3534 = vand.u32 %v3067, 2147483648
    %v3535 = vsel %vm3533, %v3534, %v3532
    %v3536 = vrsqrt.pop %v3069
    %v3537 = vmul.f32 %v3536, %v3069
    %v3538 = vmul.f32 %v3537, %v3536
    %v3539 = vmul.f32 0.5, %v3538
    %v3540 = vsub.f32 1.5, %v3539
    %v3541 = vmul.f32 %v3536, %v3540
    %v3542 = vmul.f32 %v3069, %v3541
    %vm3543 = vcmp.eq.f32.partialorder %v3069, inf
    %v3544 = vsel %vm3543, %v3069, %v3542
    %vm3545 = vcmp.eq.f32.partialorder %v3069, 0.0
    %v3546 = vand.u32 %v3069, 2147483648
    %v3547 = vsel %vm3545, %v3546, %v3544
    %v3548 = vrsqrt.pop %v3071
    %v3549 = vmul.f32 %v3548, %v3071
    %v3550 = vmul.f32 %v3549, %v3548
    %v3551 = vmul.f32 0.5, %v3550
    %v3552 = vsub.f32 1.5, %v3551
    %v3553 = vmul.f32 %v3548, %v3552
    %v3554 = vmul.f32 %v3071, %v3553
    %vm3555 = vcmp.eq.f32.partialorder %v3071, inf
    %v3556 = vsel %vm3555, %v3071, %v3554
    %vm3557 = vcmp.eq.f32.partialorder %v3071, 0.0
    %v3558 = vand.u32 %v3071, 2147483648
    %v3559 = vsel %vm3557, %v3558, %v3556
    %v3560 = vrsqrt.pop %v3073
    %v3561 = vmul.f32 %v3560, %v3073
    %v3562 = vmul.f32 %v3561, %v3560
    %v3563 = vmul.f32 0.5, %v3562
    %v3564 = vsub.f32 1.5, %v3563
    %v3565 = vmul.f32 %v3560, %v3564
    %v3566 = vmul.f32 %v3073, %v3565
    %vm3567 = vcmp.eq.f32.partialorder %v3073, inf
    %v3568 = vsel %vm3567, %v3073, %v3566
    %vm3569 = vcmp.eq.f32.partialorder %v3073, 0.0
    %v3570 = vand.u32 %v3073, 2147483648
    %v3571 = vsel %vm3569, %v3570, %v3568
    %v3572 = vrsqrt.pop %v3075
    %v3573 = vmul.f32 %v3572, %v3075
    %v3574 = vmul.f32 %v3573, %v3572
    %v3575 = vmul.f32 0.5, %v3574
    %v3576 = vsub.f32 1.5, %v3575
    %v3577 = vmul.f32 %v3572, %v3576
    %v3578 = vmul.f32 %v3075, %v3577
    %vm3579 = vcmp.eq.f32.partialorder %v3075, inf
    %v3580 = vsel %vm3579, %v3075, %v3578
    %vm3581 = vcmp.eq.f32.partialorder %v3075, 0.0
    %v3582 = vand.u32 %v3075, 2147483648
    %v3583 = vsel %vm3581, %v3582, %v3580
    %v3584 = vrsqrt.pop %v3077
    %v3585 = vmul.f32 %v3584, %v3077
    %v3586 = vmul.f32 %v3585, %v3584
    %v3587 = vmul.f32 0.5, %v3586
    %v3588 = vsub.f32 1.5, %v3587
    %v3589 = vmul.f32 %v3584, %v3588
    %v3590 = vmul.f32 %v3077, %v3589
    %vm3591 = vcmp.eq.f32.partialorder %v3077, inf
    %v3592 = vsel %vm3591, %v3077, %v3590
    %vm3593 = vcmp.eq.f32.partialorder %v3077, 0.0
    %v3594 = vand.u32 %v3077, 2147483648
    %v3595 = vsel %vm3593, %v3594, %v3592
    %v3596 = vrsqrt.pop %v3079
    %v3597 = vmul.f32 %v3596, %v3079
    %v3598 = vmul.f32 %v3597, %v3596
    %v3599 = vmul.f32 0.5, %v3598
    %v3600 = vsub.f32 1.5, %v3599
    %v3601 = vmul.f32 %v3596, %v3600
    %v3602 = vmul.f32 %v3079, %v3601
    %vm3603 = vcmp.eq.f32.partialorder %v3079, inf
    %v3604 = vsel %vm3603, %v3079, %v3602
    %vm3605 = vcmp.eq.f32.partialorder %v3079, 0.0
    %v3606 = vand.u32 %v3079, 2147483648
    %v3607 = vsel %vm3605, %v3606, %v3604
    %v3608 = vrsqrt.pop %v3081
    %v3609 = vmul.f32 %v3608, %v3081
    %v3610 = vmul.f32 %v3609, %v3608
    %v3611 = vmul.f32 0.5, %v3610
    %v3612 = vsub.f32 1.5, %v3611
    %v3613 = vmul.f32 %v3608, %v3612
    %v3614 = vmul.f32 %v3081, %v3613
    %vm3615 = vcmp.eq.f32.partialorder %v3081, inf
    %v3616 = vsel %vm3615, %v3081, %v3614
    %vm3617 = vcmp.eq.f32.partialorder %v3081, 0.0
    %v3618 = vand.u32 %v3081, 2147483648
    %v3619 = vsel %vm3617, %v3618, %v3616
    %v3620 = vrsqrt.pop %v3083
    %v3621 = vmul.f32 %v3620, %v3083
    %v3622 = vmul.f32 %v3621, %v3620
    %v3623 = vmul.f32 0.5, %v3622
    %v3624 = vsub.f32 1.5, %v3623
    %v3625 = vmul.f32 %v3620, %v3624
    %v3626 = vmul.f32 %v3083, %v3625
    %vm3627 = vcmp.eq.f32.partialorder %v3083, inf
    %v3628 = vsel %vm3627, %v3083, %v3626
    %vm3629 = vcmp.eq.f32.partialorder %v3083, 0.0
    %v3630 = vand.u32 %v3083, 2147483648
    %v3631 = vsel %vm3629, %v3630, %v3628
    %v3632 = vrsqrt.pop %v3085
    %v3633 = vmul.f32 %v3632, %v3085
    %v3634 = vmul.f32 %v3633, %v3632
    %v3635 = vmul.f32 0.5, %v3634
    %v3636 = vsub.f32 1.5, %v3635
    %v3637 = vmul.f32 %v3632, %v3636
    %v3638 = vmul.f32 %v3085, %v3637
    %vm3639 = vcmp.eq.f32.partialorder %v3085, inf
    %v3640 = vsel %vm3639, %v3085, %v3638
    %vm3641 = vcmp.eq.f32.partialorder %v3085, 0.0
    %v3642 = vand.u32 %v3085, 2147483648
    %v3643 = vsel %vm3641, %v3642, %v3640
    %v3644 = vrsqrt.pop %v3087
    %v3645 = vmul.f32 %v3644, %v3087
    %v3646 = vmul.f32 %v3645, %v3644
    %v3647 = vmul.f32 0.5, %v3646
    %v3648 = vsub.f32 1.5, %v3647
    %v3649 = vmul.f32 %v3644, %v3648
    %v3650 = vmul.f32 %v3087, %v3649
    %vm3651 = vcmp.eq.f32.partialorder %v3087, inf
    %v3652 = vsel %vm3651, %v3087, %v3650
    %vm3653 = vcmp.eq.f32.partialorder %v3087, 0.0
    %v3654 = vand.u32 %v3087, 2147483648
    %v3655 = vsel %vm3653, %v3654, %v3652
    %v3656 = vrsqrt.pop %v3089
    %v3657 = vmul.f32 %v3656, %v3089
    %v3658 = vmul.f32 %v3657, %v3656
    %v3659 = vmul.f32 0.5, %v3658
    %v3660 = vsub.f32 1.5, %v3659
    %v3661 = vmul.f32 %v3656, %v3660
    %v3662 = vmul.f32 %v3089, %v3661
    %vm3663 = vcmp.eq.f32.partialorder %v3089, inf
    %v3664 = vsel %vm3663, %v3089, %v3662
    %vm3665 = vcmp.eq.f32.partialorder %v3089, 0.0
    %v3666 = vand.u32 %v3089, 2147483648
    %v3667 = vsel %vm3665, %v3666, %v3664
    %v3668 = vrsqrt.pop %v3091
    %v3669 = vmul.f32 %v3668, %v3091
    %v3670 = vmul.f32 %v3669, %v3668
    %v3671 = vmul.f32 0.5, %v3670
    %v3672 = vsub.f32 1.5, %v3671
    %v3673 = vmul.f32 %v3668, %v3672
    %v3674 = vmul.f32 %v3091, %v3673
    %vm3675 = vcmp.eq.f32.partialorder %v3091, inf
    %v3676 = vsel %vm3675, %v3091, %v3674
    %vm3677 = vcmp.eq.f32.partialorder %v3091, 0.0
    %v3678 = vand.u32 %v3091, 2147483648
    %v3679 = vsel %vm3677, %v3678, %v3676
    %v3680 = vrsqrt.pop %v3093
    %v3681 = vmul.f32 %v3680, %v3093
    %v3682 = vmul.f32 %v3681, %v3680
    %v3683 = vmul.f32 0.5, %v3682
    %v3684 = vsub.f32 1.5, %v3683
    %v3685 = vmul.f32 %v3680, %v3684
    %v3686 = vmul.f32 %v3093, %v3685
    %vm3687 = vcmp.eq.f32.partialorder %v3093, inf
    %v3688 = vsel %vm3687, %v3093, %v3686
    %vm3689 = vcmp.eq.f32.partialorder %v3093, 0.0
    %v3690 = vand.u32 %v3093, 2147483648
    %v3691 = vsel %vm3689, %v3690, %v3688
    %v3692 = vrsqrt.pop %v3095
    %v3693 = vmul.f32 %v3692, %v3095
    %v3694 = vmul.f32 %v3693, %v3692
    %v3695 = vmul.f32 0.5, %v3694
    %v3696 = vsub.f32 1.5, %v3695
    %v3697 = vmul.f32 %v3692, %v3696
    %v3698 = vmul.f32 %v3095, %v3697
    %vm3699 = vcmp.eq.f32.partialorder %v3095, inf
    %v3700 = vsel %vm3699, %v3095, %v3698
    %vm3701 = vcmp.eq.f32.partialorder %v3095, 0.0
    %v3702 = vand.u32 %v3095, 2147483648
    %v3703 = vsel %vm3701, %v3702, %v3700
    %v3704 = vrsqrt.pop %v3097
    %v3705 = vmul.f32 %v3704, %v3097
    %v3706 = vmul.f32 %v3705, %v3704
    %v3707 = vmul.f32 0.5, %v3706
    %v3708 = vsub.f32 1.5, %v3707
    %v3709 = vmul.f32 %v3704, %v3708
    %v3710 = vmul.f32 %v3097, %v3709
    %vm3711 = vcmp.eq.f32.partialorder %v3097, inf
    %v3712 = vsel %vm3711, %v3097, %v3710
    %vm3713 = vcmp.eq.f32.partialorder %v3097, 0.0
    %v3714 = vand.u32 %v3097, 2147483648
    %v3715 = vsel %vm3713, %v3714, %v3712
    %v3716 = vrsqrt.pop %v3099
    %v3717 = vmul.f32 %v3716, %v3099
    %v3718 = vmul.f32 %v3717, %v3716
    %v3719 = vmul.f32 0.5, %v3718
    %v3720 = vsub.f32 1.5, %v3719
    %v3721 = vmul.f32 %v3716, %v3720
    %v3722 = vmul.f32 %v3099, %v3721
    %vm3723 = vcmp.eq.f32.partialorder %v3099, inf
    %v3724 = vsel %vm3723, %v3099, %v3722
    %vm3725 = vcmp.eq.f32.partialorder %v3099, 0.0
    %v3726 = vand.u32 %v3099, 2147483648
    %v3727 = vsel %vm3725, %v3726, %v3724
    %v3728 = vrsqrt.pop %v3101
    %v3729 = vmul.f32 %v3728, %v3101
    %v3730 = vmul.f32 %v3729, %v3728
    %v3731 = vmul.f32 0.5, %v3730
    %v3732 = vsub.f32 1.5, %v3731
    %v3733 = vmul.f32 %v3728, %v3732
    %v3734 = vmul.f32 %v3101, %v3733
    %vm3735 = vcmp.eq.f32.partialorder %v3101, inf
    %v3736 = vsel %vm3735, %v3101, %v3734
    %vm3737 = vcmp.eq.f32.partialorder %v3101, 0.0
    %v3738 = vand.u32 %v3101, 2147483648
    %v3739 = vsel %vm3737, %v3738, %v3736
    %v3740 = vrsqrt.pop %v3103
    %v3741 = vmul.f32 %v3740, %v3103
    %v3742 = vmul.f32 %v3741, %v3740
    %v3743 = vmul.f32 0.5, %v3742
    %v3744 = vsub.f32 1.5, %v3743
    %v3745 = vmul.f32 %v3740, %v3744
    %v3746 = vmul.f32 %v3103, %v3745
    %vm3747 = vcmp.eq.f32.partialorder %v3103, inf
    %v3748 = vsel %vm3747, %v3103, %v3746
    %vm3749 = vcmp.eq.f32.partialorder %v3103, 0.0
    %v3750 = vand.u32 %v3103, 2147483648
    %v3751 = vsel %vm3749, %v3750, %v3748
    %v3752 = vrsqrt.pop %v3105
    %v3753 = vmul.f32 %v3752, %v3105
    %v3754 = vmul.f32 %v3753, %v3752
    %v3755 = vmul.f32 0.5, %v3754
    %v3756 = vsub.f32 1.5, %v3755
    %v3757 = vmul.f32 %v3752, %v3756
    %v3758 = vmul.f32 %v3105, %v3757
    %vm3759 = vcmp.eq.f32.partialorder %v3105, inf
    %v3760 = vsel %vm3759, %v3105, %v3758
    %vm3761 = vcmp.eq.f32.partialorder %v3105, 0.0
    %v3762 = vand.u32 %v3105, 2147483648
    %v3763 = vsel %vm3761, %v3762, %v3760
    %v3764 = vrsqrt.pop %v3107
    %v3765 = vmul.f32 %v3764, %v3107
    %v3766 = vmul.f32 %v3765, %v3764
    %v3767 = vmul.f32 0.5, %v3766
    %v3768 = vsub.f32 1.5, %v3767
    %v3769 = vmul.f32 %v3764, %v3768
    %v3770 = vmul.f32 %v3107, %v3769
    %vm3771 = vcmp.eq.f32.partialorder %v3107, inf
    %v3772 = vsel %vm3771, %v3107, %v3770
    %vm3773 = vcmp.eq.f32.partialorder %v3107, 0.0
    %v3774 = vand.u32 %v3107, 2147483648
    %v3775 = vsel %vm3773, %v3774, %v3772
    %v3776 = vrsqrt.pop %v3109
    %v3777 = vmul.f32 %v3776, %v3109
    %v3778 = vmul.f32 %v3777, %v3776
    %v3779 = vmul.f32 0.5, %v3778
    %v3780 = vsub.f32 1.5, %v3779
    %v3781 = vmul.f32 %v3776, %v3780
    %v3782 = vmul.f32 %v3109, %v3781
    %vm3783 = vcmp.eq.f32.partialorder %v3109, inf
    %v3784 = vsel %vm3783, %v3109, %v3782
    %vm3785 = vcmp.eq.f32.partialorder %v3109, 0.0
    %v3786 = vand.u32 %v3109, 2147483648
    %v3787 = vsel %vm3785, %v3786, %v3784
    %v3788 = vrsqrt.pop %v3111
    %v3789 = vmul.f32 %v3788, %v3111
    %v3790 = vmul.f32 %v3789, %v3788
    %v3791 = vmul.f32 0.5, %v3790
    %v3792 = vsub.f32 1.5, %v3791
    %v3793 = vmul.f32 %v3788, %v3792
    %v3794 = vmul.f32 %v3111, %v3793
    %vm3795 = vcmp.eq.f32.partialorder %v3111, inf
    %v3796 = vsel %vm3795, %v3111, %v3794
    %vm3797 = vcmp.eq.f32.partialorder %v3111, 0.0
    %v3798 = vand.u32 %v3111, 2147483648
    %v3799 = vsel %vm3797, %v3798, %v3796
    %v3800 = vrsqrt.pop %v3113
    %v3801 = vmul.f32 %v3800, %v3113
    %v3802 = vmul.f32 %v3801, %v3800
    %v3803 = vmul.f32 0.5, %v3802
    %v3804 = vsub.f32 1.5, %v3803
    %v3805 = vmul.f32 %v3800, %v3804
    %v3806 = vmul.f32 %v3113, %v3805
    %vm3807 = vcmp.eq.f32.partialorder %v3113, inf
    %v3808 = vsel %vm3807, %v3113, %v3806
    %vm3809 = vcmp.eq.f32.partialorder %v3113, 0.0
    %v3810 = vand.u32 %v3113, 2147483648
    %v3811 = vsel %vm3809, %v3810, %v3808
    %v3812 = vrsqrt.pop %v3115
    %v3813 = vmul.f32 %v3812, %v3115
    %v3814 = vmul.f32 %v3813, %v3812
    %v3815 = vmul.f32 0.5, %v3814
    %v3816 = vsub.f32 1.5, %v3815
    %v3817 = vmul.f32 %v3812, %v3816
    %v3818 = vmul.f32 %v3115, %v3817
    %vm3819 = vcmp.eq.f32.partialorder %v3115, inf
    %v3820 = vsel %vm3819, %v3115, %v3818
    %vm3821 = vcmp.eq.f32.partialorder %v3115, 0.0
    %v3822 = vand.u32 %v3115, 2147483648
    %v3823 = vsel %vm3821, %v3822, %v3820
    %v3824 = vrsqrt.pop %v3117
    %v3825 = vmul.f32 %v3824, %v3117
    %v3826 = vmul.f32 %v3825, %v3824
    %v3827 = vmul.f32 0.5, %v3826
    %v3828 = vsub.f32 1.5, %v3827
    %v3829 = vmul.f32 %v3824, %v3828
    %v3830 = vmul.f32 %v3117, %v3829
    %vm3831 = vcmp.eq.f32.partialorder %v3117, inf
    %v3832 = vsel %vm3831, %v3117, %v3830
    %vm3833 = vcmp.eq.f32.partialorder %v3117, 0.0
    %v3834 = vand.u32 %v3117, 2147483648
    %v3835 = vsel %vm3833, %v3834, %v3832
    %v3836 = vrsqrt.pop %v3119
    %v3837 = vmul.f32 %v3836, %v3119
    %v3838 = vmul.f32 %v3837, %v3836
    %v3839 = vmul.f32 0.5, %v3838
    %v3840 = vsub.f32 1.5, %v3839
    %v3841 = vmul.f32 %v3836, %v3840
    %v3842 = vmul.f32 %v3119, %v3841
    %vm3843 = vcmp.eq.f32.partialorder %v3119, inf
    %v3844 = vsel %vm3843, %v3119, %v3842
    %vm3845 = vcmp.eq.f32.partialorder %v3119, 0.0
    %v3846 = vand.u32 %v3119, 2147483648
    %v3847 = vsel %vm3845, %v3846, %v3844
    %v3848 = vrsqrt.pop %v3121
    %v3849 = vmul.f32 %v3848, %v3121
    %v3850 = vmul.f32 %v3849, %v3848
    %v3851 = vmul.f32 0.5, %v3850
    %v3852 = vsub.f32 1.5, %v3851
    %v3853 = vmul.f32 %v3848, %v3852
    %v3854 = vmul.f32 %v3121, %v3853
    %vm3855 = vcmp.eq.f32.partialorder %v3121, inf
    %v3856 = vsel %vm3855, %v3121, %v3854
    %vm3857 = vcmp.eq.f32.partialorder %v3121, 0.0
    %v3858 = vand.u32 %v3121, 2147483648
    %v3859 = vsel %vm3857, %v3858, %v3856
    %v3860 = vrsqrt.pop %v3123
    %v3861 = vmul.f32 %v3860, %v3123
    %v3862 = vmul.f32 %v3861, %v3860
    %v3863 = vmul.f32 0.5, %v3862
    %v3864 = vsub.f32 1.5, %v3863
    %v3865 = vmul.f32 %v3860, %v3864
    %v3866 = vmul.f32 %v3123, %v3865
    %vm3867 = vcmp.eq.f32.partialorder %v3123, inf
    %v3868 = vsel %vm3867, %v3123, %v3866
    %vm3869 = vcmp.eq.f32.partialorder %v3123, 0.0
    %v3870 = vand.u32 %v3123, 2147483648
    %v3871 = vsel %vm3869, %v3870, %v3868
    %v3872 = vrsqrt.pop %v3125
    %v3873 = vmul.f32 %v3872, %v3125
    %v3874 = vmul.f32 %v3873, %v3872
    %v3875 = vmul.f32 0.5, %v3874
    %v3876 = vsub.f32 1.5, %v3875
    %v3877 = vmul.f32 %v3872, %v3876
    %v3878 = vmul.f32 %v3125, %v3877
    %vm3879 = vcmp.eq.f32.partialorder %v3125, inf
    %v3880 = vsel %vm3879, %v3125, %v3878
    %vm3881 = vcmp.eq.f32.partialorder %v3125, 0.0
    %v3882 = vand.u32 %v3125, 2147483648
    %v3883 = vsel %vm3881, %v3882, %v3880
    %v3884 = vrsqrt.pop %v3127
    %v3885 = vmul.f32 %v3884, %v3127
    %v3886 = vmul.f32 %v3885, %v3884
    %v3887 = vmul.f32 0.5, %v3886
    %v3888 = vsub.f32 1.5, %v3887
    %v3889 = vmul.f32 %v3884, %v3888
    %v3890 = vmul.f32 %v3127, %v3889
    %vm3891 = vcmp.eq.f32.partialorder %v3127, inf
    %v3892 = vsel %vm3891, %v3127, %v3890
    %vm3893 = vcmp.eq.f32.partialorder %v3127, 0.0
    %v3894 = vand.u32 %v3127, 2147483648
    %v3895 = vsel %vm3893, %v3894, %v3892
    %v3896 = vmul.f32 %v2872, %v2872
    %v3897 = vmul.f32 %v2873, %v2873
    %v3898 = vmul.f32 %v2874, %v2874
    %v3899 = vmul.f32 %v2875, %v2875
    %v3900 = vmul.f32 %v2876, %v2876
    %v3901 = vmul.f32 %v2877, %v2877
    %v3902 = vmul.f32 %v2878, %v2878
    %v3903 = vmul.f32 %v2879, %v2879
    %v3904 = vmul.f32 %v2880, %v2880
    %v3905 = vmul.f32 %v2881, %v2881
    %v3906 = vmul.f32 %v2882, %v2882
    %v3907 = vmul.f32 %v2883, %v2883
    %v3908 = vmul.f32 %v2884, %v2884
    %v3909 = vmul.f32 %v2885, %v2885
    %v3910 = vmul.f32 %v2886, %v2886
    %v3911 = vmul.f32 %v2887, %v2887
    %v3912 = vmul.f32 %v2888, %v2888
    %v3913 = vmul.f32 %v2889, %v2889
    %v3914 = vmul.f32 %v2890, %v2890
    %v3915 = vmul.f32 %v2891, %v2891
    %v3916 = vmul.f32 %v2892, %v2892
    %v3917 = vmul.f32 %v2893, %v2893
    %v3918 = vmul.f32 %v2894, %v2894
    %v3919 = vmul.f32 %v2895, %v2895
    %v3920 = vmul.f32 %v2896, %v2896
    %v3921 = vmul.f32 %v2897, %v2897
    %v3922 = vmul.f32 %v2898, %v2898
    %v3923 = vmul.f32 %v2899, %v2899
    %v3924 = vmul.f32 %v2900, %v2900
    %v3925 = vmul.f32 %v2901, %v2901
    %v3926 = vmul.f32 %v2902, %v2902
    %v3927 = vmul.f32 %v2903, %v2903
    %v3928 = vmul.f32 %v2904, %v2904
    %v3929 = vmul.f32 %v2905, %v2905
    %v3930 = vmul.f32 %v2906, %v2906
    %v3931 = vmul.f32 %v2907, %v2907
    %v3932 = vmul.f32 %v2908, %v2908
    %v3933 = vmul.f32 %v2909, %v2909
    %v3934 = vmul.f32 %v2910, %v2910
    %v3935 = vmul.f32 %v2911, %v2911
    %v3936 = vmul.f32 %v2912, %v2912
    %v3937 = vmul.f32 %v2913, %v2913
    %v3938 = vmul.f32 %v2914, %v2914
    %v3939 = vmul.f32 %v2915, %v2915
    %v3940 = vmul.f32 %v2916, %v2916
    %v3941 = vmul.f32 %v2917, %v2917
    %v3942 = vmul.f32 %v2918, %v2918
    %v3943 = vmul.f32 %v2919, %v2919
    %v3944 = vmul.f32 %v2920, %v2920
    %v3945 = vmul.f32 %v2921, %v2921
    %v3946 = vmul.f32 %v2922, %v2922
    %v3947 = vmul.f32 %v2923, %v2923
    %v3948 = vmul.f32 %v2924, %v2924
    %v3949 = vmul.f32 %v2925, %v2925
    %v3950 = vmul.f32 %v2926, %v2926
    %v3951 = vmul.f32 %v2927, %v2927
    %v3952 = vmul.f32 %v2928, %v2928
    %v3953 = vmul.f32 %v2929, %v2929
    %v3954 = vmul.f32 %v2930, %v2930
    %v3955 = vmul.f32 %v2931, %v2931
    %v3956 = vmul.f32 %v2932, %v2932
    %v3957 = vmul.f32 %v2933, %v2933
    %v3958 = vmul.f32 %v2934, %v2934
    %v3959 = vmul.f32 %v2935, %v2935
    %3960 = vadd.xlane.f32.xlu0 %v3896
    %v3961 = vpop.xlane.xlu0 %3960
    %3962 = vadd.xlane.f32.xlu0 %v3897
    %v3963 = vpop.xlane.xlu0 %3962
    %3964 = vadd.xlane.f32.xlu0 %v3898
    %v3965 = vpop.xlane.xlu0 %3964
    %3966 = vadd.xlane.f32.xlu0 %v3899
    %v3967 = vpop.xlane.xlu0 %3966
    %3968 = vadd.xlane.f32.xlu0 %v3900
    %v3969 = vpop.xlane.xlu0 %3968
    %3970 = vadd.xlane.f32.xlu0 %v3901
    %v3971 = vpop.xlane.xlu0 %3970
    %3972 = vadd.xlane.f32.xlu0 %v3902
    %v3973 = vpop.xlane.xlu0 %3972
    %3974 = vadd.xlane.f32.xlu0 %v3903
    %v3975 = vpop.xlane.xlu0 %3974
    %3976 = vadd.xlane.f32.xlu0 %v3904
    %v3977 = vpop.xlane.xlu0 %3976
    %3978 = vadd.xlane.f32.xlu0 %v3905
    %v3979 = vpop.xlane.xlu0 %3978
    %3980 = vadd.xlane.f32.xlu0 %v3906
    %v3981 = vpop.xlane.xlu0 %3980
    %3982 = vadd.xlane.f32.xlu0 %v3907
    %v3983 = vpop.xlane.xlu0 %3982
    %3984 = vadd.xlane.f32.xlu0 %v3908
    %v3985 = vpop.xlane.xlu0 %3984
    %3986 = vadd.xlane.f32.xlu0 %v3909
    %v3987 = vpop.xlane.xlu0 %3986
    %3988 = vadd.xlane.f32.xlu0 %v3910
    %v3989 = vpop.xlane.xlu0 %3988
    %3990 = vadd.xlane.f32.xlu0 %v3911
    %v3991 = vpop.xlane.xlu0 %3990
    %3992 = vadd.xlane.f32.xlu0 %v3912
    %v3993 = vpop.xlane.xlu0 %3992
    %3994 = vadd.xlane.f32.xlu0 %v3913
    %v3995 = vpop.xlane.xlu0 %3994
    %3996 = vadd.xlane.f32.xlu0 %v3914
    %v3997 = vpop.xlane.xlu0 %3996
    %3998 = vadd.xlane.f32.xlu0 %v3915
    %v3999 = vpop.xlane.xlu0 %3998
    %4000 = vadd.xlane.f32.xlu0 %v3916
    %v4001 = vpop.xlane.xlu0 %4000
    %4002 = vadd.xlane.f32.xlu0 %v3917
    %v4003 = vpop.xlane.xlu0 %4002
    %4004 = vadd.xlane.f32.xlu0 %v3918
    %v4005 = vpop.xlane.xlu0 %4004
    %4006 = vadd.xlane.f32.xlu0 %v3919
    %v4007 = vpop.xlane.xlu0 %4006
    %4008 = vadd.xlane.f32.xlu0 %v3920
    %v4009 = vpop.xlane.xlu0 %4008
    %4010 = vadd.xlane.f32.xlu0 %v3921
    %v4011 = vpop.xlane.xlu0 %4010
    %4012 = vadd.xlane.f32.xlu0 %v3922
    %v4013 = vpop.xlane.xlu0 %4012
    %4014 = vadd.xlane.f32.xlu0 %v3923
    %v4015 = vpop.xlane.xlu0 %4014
    %4016 = vadd.xlane.f32.xlu0 %v3924
    %v4017 = vpop.xlane.xlu0 %4016
    %4018 = vadd.xlane.f32.xlu0 %v3925
    %v4019 = vpop.xlane.xlu0 %4018
    %4020 = vadd.xlane.f32.xlu0 %v3926
    %v4021 = vpop.xlane.xlu0 %4020
    %4022 = vadd.xlane.f32.xlu0 %v3927
    %v4023 = vpop.xlane.xlu0 %4022
    %4024 = vadd.xlane.f32.xlu0 %v3928
    %v4025 = vpop.xlane.xlu0 %4024
    %4026 = vadd.xlane.f32.xlu0 %v3929
    %v4027 = vpop.xlane.xlu0 %4026
    %4028 = vadd.xlane.f32.xlu0 %v3930
    %v4029 = vpop.xlane.xlu0 %4028
    %4030 = vadd.xlane.f32.xlu0 %v3931
    %v4031 = vpop.xlane.xlu0 %4030
    %4032 = vadd.xlane.f32.xlu0 %v3932
    %v4033 = vpop.xlane.xlu0 %4032
    %4034 = vadd.xlane.f32.xlu0 %v3933
    %v4035 = vpop.xlane.xlu0 %4034
    %4036 = vadd.xlane.f32.xlu0 %v3934
    %v4037 = vpop.xlane.xlu0 %4036
    %4038 = vadd.xlane.f32.xlu0 %v3935
    %v4039 = vpop.xlane.xlu0 %4038
    %4040 = vadd.xlane.f32.xlu0 %v3936
    %v4041 = vpop.xlane.xlu0 %4040
    %4042 = vadd.xlane.f32.xlu0 %v3937
    %v4043 = vpop.xlane.xlu0 %4042
    %4044 = vadd.xlane.f32.xlu0 %v3938
    %v4045 = vpop.xlane.xlu0 %4044
    %4046 = vadd.xlane.f32.xlu0 %v3939
    %v4047 = vpop.xlane.xlu0 %4046
    %4048 = vadd.xlane.f32.xlu0 %v3940
    %v4049 = vpop.xlane.xlu0 %4048
    %4050 = vadd.xlane.f32.xlu0 %v3941
    %v4051 = vpop.xlane.xlu0 %4050
    %4052 = vadd.xlane.f32.xlu0 %v3942
    %v4053 = vpop.xlane.xlu0 %4052
    %4054 = vadd.xlane.f32.xlu0 %v3943
    %v4055 = vpop.xlane.xlu0 %4054
    %4056 = vadd.xlane.f32.xlu0 %v3944
    %v4057 = vpop.xlane.xlu0 %4056
    %4058 = vadd.xlane.f32.xlu0 %v3945
    %v4059 = vpop.xlane.xlu0 %4058
    %4060 = vadd.xlane.f32.xlu0 %v3946
    %v4061 = vpop.xlane.xlu0 %4060
    %4062 = vadd.xlane.f32.xlu0 %v3947
    %v4063 = vpop.xlane.xlu0 %4062
    %4064 = vadd.xlane.f32.xlu0 %v3948
    %v4065 = vpop.xlane.xlu0 %4064
    %4066 = vadd.xlane.f32.xlu0 %v3949
    %v4067 = vpop.xlane.xlu0 %4066
    %4068 = vadd.xlane.f32.xlu0 %v3950
    %v4069 = vpop.xlane.xlu0 %4068
    %4070 = vadd.xlane.f32.xlu0 %v3951
    %v4071 = vpop.xlane.xlu0 %4070
    %4072 = vadd.xlane.f32.xlu0 %v3952
    %v4073 = vpop.xlane.xlu0 %4072
    %4074 = vadd.xlane.f32.xlu0 %v3953
    %v4075 = vpop.xlane.xlu0 %4074
    %4076 = vadd.xlane.f32.xlu0 %v3954
    %v4077 = vpop.xlane.xlu0 %4076
    %4078 = vadd.xlane.f32.xlu0 %v3955
    %v4079 = vpop.xlane.xlu0 %4078
    %4080 = vadd.xlane.f32.xlu0 %v3956
    %v4081 = vpop.xlane.xlu0 %4080
    %4082 = vadd.xlane.f32.xlu0 %v3957
    %v4083 = vpop.xlane.xlu0 %4082
    %4084 = vadd.xlane.f32.xlu0 %v3958
    %v4085 = vpop.xlane.xlu0 %4084
    %4086 = vadd.xlane.f32.xlu0 %v3959
    %v4087 = vpop.xlane.xlu0 %4086
    %v4088 = vrsqrt.pop %v3961
    %v4089 = vmul.f32 %v4088, %v3961
    %v4090 = vmul.f32 %v4089, %v4088
    %v4091 = vmul.f32 0.5, %v4090
    %v4092 = vsub.f32 1.5, %v4091
    %v4093 = vmul.f32 %v4088, %v4092
    %v4094 = vmul.f32 %v3961, %v4093
    %vm4095 = vcmp.eq.f32.partialorder %v3961, inf
    %v4096 = vsel %vm4095, %v3961, %v4094
    %vm4097 = vcmp.eq.f32.partialorder %v3961, 0.0
    %v4098 = vand.u32 %v3961, 2147483648
    %v4099 = vsel %vm4097, %v4098, %v4096
    %v4100 = vrsqrt.pop %v3963
    %v4101 = vmul.f32 %v4100, %v3963
    %v4102 = vmul.f32 %v4101, %v4100
    %v4103 = vmul.f32 0.5, %v4102
    %v4104 = vsub.f32 1.5, %v4103
    %v4105 = vmul.f32 %v4100, %v4104
    %v4106 = vmul.f32 %v3963, %v4105
    %vm4107 = vcmp.eq.f32.partialorder %v3963, inf
    %v4108 = vsel %vm4107, %v3963, %v4106
    %vm4109 = vcmp.eq.f32.partialorder %v3963, 0.0
    %v4110 = vand.u32 %v3963, 2147483648
    %v4111 = vsel %vm4109, %v4110, %v4108
    %v4112 = vrsqrt.pop %v3965
    %v4113 = vmul.f32 %v4112, %v3965
    %v4114 = vmul.f32 %v4113, %v4112
    %v4115 = vmul.f32 0.5, %v4114
    %v4116 = vsub.f32 1.5, %v4115
    %v4117 = vmul.f32 %v4112, %v4116
    %v4118 = vmul.f32 %v3965, %v4117
    %vm4119 = vcmp.eq.f32.partialorder %v3965, inf
    %v4120 = vsel %vm4119, %v3965, %v4118
    %vm4121 = vcmp.eq.f32.partialorder %v3965, 0.0
    %v4122 = vand.u32 %v3965, 2147483648
    %v4123 = vsel %vm4121, %v4122, %v4120
    %v4124 = vrsqrt.pop %v3967
    %v4125 = vmul.f32 %v4124, %v3967
    %v4126 = vmul.f32 %v4125, %v4124
    %v4127 = vmul.f32 0.5, %v4126
    %v4128 = vsub.f32 1.5, %v4127
    %v4129 = vmul.f32 %v4124, %v4128
    %v4130 = vmul.f32 %v3967, %v4129
    %vm4131 = vcmp.eq.f32.partialorder %v3967, inf
    %v4132 = vsel %vm4131, %v3967, %v4130
    %vm4133 = vcmp.eq.f32.partialorder %v3967, 0.0
    %v4134 = vand.u32 %v3967, 2147483648
    %v4135 = vsel %vm4133, %v4134, %v4132
    %v4136 = vrsqrt.pop %v3969
    %v4137 = vmul.f32 %v4136, %v3969
    %v4138 = vmul.f32 %v4137, %v4136
    %v4139 = vmul.f32 0.5, %v4138
    %v4140 = vsub.f32 1.5, %v4139
    %v4141 = vmul.f32 %v4136, %v4140
    %v4142 = vmul.f32 %v3969, %v4141
    %vm4143 = vcmp.eq.f32.partialorder %v3969, inf
    %v4144 = vsel %vm4143, %v3969, %v4142
    %vm4145 = vcmp.eq.f32.partialorder %v3969, 0.0
    %v4146 = vand.u32 %v3969, 2147483648
    %v4147 = vsel %vm4145, %v4146, %v4144
    %v4148 = vrsqrt.pop %v3971
    %v4149 = vmul.f32 %v4148, %v3971
    %v4150 = vmul.f32 %v4149, %v4148
    %v4151 = vmul.f32 0.5, %v4150
    %v4152 = vsub.f32 1.5, %v4151
    %v4153 = vmul.f32 %v4148, %v4152
    %v4154 = vmul.f32 %v3971, %v4153
    %vm4155 = vcmp.eq.f32.partialorder %v3971, inf
    %v4156 = vsel %vm4155, %v3971, %v4154
    %vm4157 = vcmp.eq.f32.partialorder %v3971, 0.0
    %v4158 = vand.u32 %v3971, 2147483648
    %v4159 = vsel %vm4157, %v4158, %v4156
    %v4160 = vrsqrt.pop %v3973
    %v4161 = vmul.f32 %v4160, %v3973
    %v4162 = vmul.f32 %v4161, %v4160
    %v4163 = vmul.f32 0.5, %v4162
    %v4164 = vsub.f32 1.5, %v4163
    %v4165 = vmul.f32 %v4160, %v4164
    %v4166 = vmul.f32 %v3973, %v4165
    %vm4167 = vcmp.eq.f32.partialorder %v3973, inf
    %v4168 = vsel %vm4167, %v3973, %v4166
    %vm4169 = vcmp.eq.f32.partialorder %v3973, 0.0
    %v4170 = vand.u32 %v3973, 2147483648
    %v4171 = vsel %vm4169, %v4170, %v4168
    %v4172 = vrsqrt.pop %v3975
    %v4173 = vmul.f32 %v4172, %v3975
    %v4174 = vmul.f32 %v4173, %v4172
    %v4175 = vmul.f32 0.5, %v4174
    %v4176 = vsub.f32 1.5, %v4175
    %v4177 = vmul.f32 %v4172, %v4176
    %v4178 = vmul.f32 %v3975, %v4177
    %vm4179 = vcmp.eq.f32.partialorder %v3975, inf
    %v4180 = vsel %vm4179, %v3975, %v4178
    %vm4181 = vcmp.eq.f32.partialorder %v3975, 0.0
    %v4182 = vand.u32 %v3975, 2147483648
    %v4183 = vsel %vm4181, %v4182, %v4180
    %v4184 = vrsqrt.pop %v3977
    %v4185 = vmul.f32 %v4184, %v3977
    %v4186 = vmul.f32 %v4185, %v4184
    %v4187 = vmul.f32 0.5, %v4186
    %v4188 = vsub.f32 1.5, %v4187
    %v4189 = vmul.f32 %v4184, %v4188
    %v4190 = vmul.f32 %v3977, %v4189
    %vm4191 = vcmp.eq.f32.partialorder %v3977, inf
    %v4192 = vsel %vm4191, %v3977, %v4190
    %vm4193 = vcmp.eq.f32.partialorder %v3977, 0.0
    %v4194 = vand.u32 %v3977, 2147483648
    %v4195 = vsel %vm4193, %v4194, %v4192
    %v4196 = vrsqrt.pop %v3979
    %v4197 = vmul.f32 %v4196, %v3979
    %v4198 = vmul.f32 %v4197, %v4196
    %v4199 = vmul.f32 0.5, %v4198
    %v4200 = vsub.f32 1.5, %v4199
    %v4201 = vmul.f32 %v4196, %v4200
    %v4202 = vmul.f32 %v3979, %v4201
    %vm4203 = vcmp.eq.f32.partialorder %v3979, inf
    %v4204 = vsel %vm4203, %v3979, %v4202
    %vm4205 = vcmp.eq.f32.partialorder %v3979, 0.0
    %v4206 = vand.u32 %v3979, 2147483648
    %v4207 = vsel %vm4205, %v4206, %v4204
    %v4208 = vrsqrt.pop %v3981
    %v4209 = vmul.f32 %v4208, %v3981
    %v4210 = vmul.f32 %v4209, %v4208
    %v4211 = vmul.f32 0.5, %v4210
    %v4212 = vsub.f32 1.5, %v4211
    %v4213 = vmul.f32 %v4208, %v4212
    %v4214 = vmul.f32 %v3981, %v4213
    %vm4215 = vcmp.eq.f32.partialorder %v3981, inf
    %v4216 = vsel %vm4215, %v3981, %v4214
    %vm4217 = vcmp.eq.f32.partialorder %v3981, 0.0
    %v4218 = vand.u32 %v3981, 2147483648
    %v4219 = vsel %vm4217, %v4218, %v4216
    %v4220 = vrsqrt.pop %v3983
    %v4221 = vmul.f32 %v4220, %v3983
    %v4222 = vmul.f32 %v4221, %v4220
    %v4223 = vmul.f32 0.5, %v4222
    %v4224 = vsub.f32 1.5, %v4223
    %v4225 = vmul.f32 %v4220, %v4224
    %v4226 = vmul.f32 %v3983, %v4225
    %vm4227 = vcmp.eq.f32.partialorder %v3983, inf
    %v4228 = vsel %vm4227, %v3983, %v4226
    %vm4229 = vcmp.eq.f32.partialorder %v3983, 0.0
    %v4230 = vand.u32 %v3983, 2147483648
    %v4231 = vsel %vm4229, %v4230, %v4228
    %v4232 = vrsqrt.pop %v3985
    %v4233 = vmul.f32 %v4232, %v3985
    %v4234 = vmul.f32 %v4233, %v4232
    %v4235 = vmul.f32 0.5, %v4234
    %v4236 = vsub.f32 1.5, %v4235
    %v4237 = vmul.f32 %v4232, %v4236
    %v4238 = vmul.f32 %v3985, %v4237
    %vm4239 = vcmp.eq.f32.partialorder %v3985, inf
    %v4240 = vsel %vm4239, %v3985, %v4238
    %vm4241 = vcmp.eq.f32.partialorder %v3985, 0.0
    %v4242 = vand.u32 %v3985, 2147483648
    %v4243 = vsel %vm4241, %v4242, %v4240
    %v4244 = vrsqrt.pop %v3987
    %v4245 = vmul.f32 %v4244, %v3987
    %v4246 = vmul.f32 %v4245, %v4244
    %v4247 = vmul.f32 0.5, %v4246
    %v4248 = vsub.f32 1.5, %v4247
    %v4249 = vmul.f32 %v4244, %v4248
    %v4250 = vmul.f32 %v3987, %v4249
    %vm4251 = vcmp.eq.f32.partialorder %v3987, inf
    %v4252 = vsel %vm4251, %v3987, %v4250
    %vm4253 = vcmp.eq.f32.partialorder %v3987, 0.0
    %v4254 = vand.u32 %v3987, 2147483648
    %v4255 = vsel %vm4253, %v4254, %v4252
    %v4256 = vrsqrt.pop %v3989
    %v4257 = vmul.f32 %v4256, %v3989
    %v4258 = vmul.f32 %v4257, %v4256
    %v4259 = vmul.f32 0.5, %v4258
    %v4260 = vsub.f32 1.5, %v4259
    %v4261 = vmul.f32 %v4256, %v4260
    %v4262 = vmul.f32 %v3989, %v4261
    %vm4263 = vcmp.eq.f32.partialorder %v3989, inf
    %v4264 = vsel %vm4263, %v3989, %v4262
    %vm4265 = vcmp.eq.f32.partialorder %v3989, 0.0
    %v4266 = vand.u32 %v3989, 2147483648
    %v4267 = vsel %vm4265, %v4266, %v4264
    %v4268 = vrsqrt.pop %v3991
    %v4269 = vmul.f32 %v4268, %v3991
    %v4270 = vmul.f32 %v4269, %v4268
    %v4271 = vmul.f32 0.5, %v4270
    %v4272 = vsub.f32 1.5, %v4271
    %v4273 = vmul.f32 %v4268, %v4272
    %v4274 = vmul.f32 %v3991, %v4273
    %vm4275 = vcmp.eq.f32.partialorder %v3991, inf
    %v4276 = vsel %vm4275, %v3991, %v4274
    %vm4277 = vcmp.eq.f32.partialorder %v3991, 0.0
    %v4278 = vand.u32 %v3991, 2147483648
    %v4279 = vsel %vm4277, %v4278, %v4276
    %v4280 = vrsqrt.pop %v3993
    %v4281 = vmul.f32 %v4280, %v3993
    %v4282 = vmul.f32 %v4281, %v4280
    %v4283 = vmul.f32 0.5, %v4282
    %v4284 = vsub.f32 1.5, %v4283
    %v4285 = vmul.f32 %v4280, %v4284
    %v4286 = vmul.f32 %v3993, %v4285
    %vm4287 = vcmp.eq.f32.partialorder %v3993, inf
    %v4288 = vsel %vm4287, %v3993, %v4286
    %vm4289 = vcmp.eq.f32.partialorder %v3993, 0.0
    %v4290 = vand.u32 %v3993, 2147483648
    %v4291 = vsel %vm4289, %v4290, %v4288
    %v4292 = vrsqrt.pop %v3995
    %v4293 = vmul.f32 %v4292, %v3995
    %v4294 = vmul.f32 %v4293, %v4292
    %v4295 = vmul.f32 0.5, %v4294
    %v4296 = vsub.f32 1.5, %v4295
    %v4297 = vmul.f32 %v4292, %v4296
    %v4298 = vmul.f32 %v3995, %v4297
    %vm4299 = vcmp.eq.f32.partialorder %v3995, inf
    %v4300 = vsel %vm4299, %v3995, %v4298
    %vm4301 = vcmp.eq.f32.partialorder %v3995, 0.0
    %v4302 = vand.u32 %v3995, 2147483648
    %v4303 = vsel %vm4301, %v4302, %v4300
    %v4304 = vrsqrt.pop %v3997
    %v4305 = vmul.f32 %v4304, %v3997
    %v4306 = vmul.f32 %v4305, %v4304
    %v4307 = vmul.f32 0.5, %v4306
    %v4308 = vsub.f32 1.5, %v4307
    %v4309 = vmul.f32 %v4304, %v4308
    %v4310 = vmul.f32 %v3997, %v4309
    %vm4311 = vcmp.eq.f32.partialorder %v3997, inf
    %v4312 = vsel %vm4311, %v3997, %v4310
    %vm4313 = vcmp.eq.f32.partialorder %v3997, 0.0
    %v4314 = vand.u32 %v3997, 2147483648
    %v4315 = vsel %vm4313, %v4314, %v4312
    %v4316 = vrsqrt.pop %v3999
    %v4317 = vmul.f32 %v4316, %v3999
    %v4318 = vmul.f32 %v4317, %v4316
    %v4319 = vmul.f32 0.5, %v4318
    %v4320 = vsub.f32 1.5, %v4319
    %v4321 = vmul.f32 %v4316, %v4320
    %v4322 = vmul.f32 %v3999, %v4321
    %vm4323 = vcmp.eq.f32.partialorder %v3999, inf
    %v4324 = vsel %vm4323, %v3999, %v4322
    %vm4325 = vcmp.eq.f32.partialorder %v3999, 0.0
    %v4326 = vand.u32 %v3999, 2147483648
    %v4327 = vsel %vm4325, %v4326, %v4324
    %v4328 = vrsqrt.pop %v4001
    %v4329 = vmul.f32 %v4328, %v4001
    %v4330 = vmul.f32 %v4329, %v4328
    %v4331 = vmul.f32 0.5, %v4330
    %v4332 = vsub.f32 1.5, %v4331
    %v4333 = vmul.f32 %v4328, %v4332
    %v4334 = vmul.f32 %v4001, %v4333
    %vm4335 = vcmp.eq.f32.partialorder %v4001, inf
    %v4336 = vsel %vm4335, %v4001, %v4334
    %vm4337 = vcmp.eq.f32.partialorder %v4001, 0.0
    %v4338 = vand.u32 %v4001, 2147483648
    %v4339 = vsel %vm4337, %v4338, %v4336
    %v4340 = vrsqrt.pop %v4003
    %v4341 = vmul.f32 %v4340, %v4003
    %v4342 = vmul.f32 %v4341, %v4340
    %v4343 = vmul.f32 0.5, %v4342
    %v4344 = vsub.f32 1.5, %v4343
    %v4345 = vmul.f32 %v4340, %v4344
    %v4346 = vmul.f32 %v4003, %v4345
    %vm4347 = vcmp.eq.f32.partialorder %v4003, inf
    %v4348 = vsel %vm4347, %v4003, %v4346
    %vm4349 = vcmp.eq.f32.partialorder %v4003, 0.0
    %v4350 = vand.u32 %v4003, 2147483648
    %v4351 = vsel %vm4349, %v4350, %v4348
    %v4352 = vrsqrt.pop %v4005
    %v4353 = vmul.f32 %v4352, %v4005
    %v4354 = vmul.f32 %v4353, %v4352
    %v4355 = vmul.f32 0.5, %v4354
    %v4356 = vsub.f32 1.5, %v4355
    %v4357 = vmul.f32 %v4352, %v4356
    %v4358 = vmul.f32 %v4005, %v4357
    %vm4359 = vcmp.eq.f32.partialorder %v4005, inf
    %v4360 = vsel %vm4359, %v4005, %v4358
    %vm4361 = vcmp.eq.f32.partialorder %v4005, 0.0
    %v4362 = vand.u32 %v4005, 2147483648
    %v4363 = vsel %vm4361, %v4362, %v4360
    %v4364 = vrsqrt.pop %v4007
    %v4365 = vmul.f32 %v4364, %v4007
    %v4366 = vmul.f32 %v4365, %v4364
    %v4367 = vmul.f32 0.5, %v4366
    %v4368 = vsub.f32 1.5, %v4367
    %v4369 = vmul.f32 %v4364, %v4368
    %v4370 = vmul.f32 %v4007, %v4369
    %vm4371 = vcmp.eq.f32.partialorder %v4007, inf
    %v4372 = vsel %vm4371, %v4007, %v4370
    %vm4373 = vcmp.eq.f32.partialorder %v4007, 0.0
    %v4374 = vand.u32 %v4007, 2147483648
    %v4375 = vsel %vm4373, %v4374, %v4372
    %v4376 = vrsqrt.pop %v4009
    %v4377 = vmul.f32 %v4376, %v4009
    %v4378 = vmul.f32 %v4377, %v4376
    %v4379 = vmul.f32 0.5, %v4378
    %v4380 = vsub.f32 1.5, %v4379
    %v4381 = vmul.f32 %v4376, %v4380
    %v4382 = vmul.f32 %v4009, %v4381
    %vm4383 = vcmp.eq.f32.partialorder %v4009, inf
    %v4384 = vsel %vm4383, %v4009, %v4382
    %vm4385 = vcmp.eq.f32.partialorder %v4009, 0.0
    %v4386 = vand.u32 %v4009, 2147483648
    %v4387 = vsel %vm4385, %v4386, %v4384
    %v4388 = vrsqrt.pop %v4011
    %v4389 = vmul.f32 %v4388, %v4011
    %v4390 = vmul.f32 %v4389, %v4388
    %v4391 = vmul.f32 0.5, %v4390
    %v4392 = vsub.f32 1.5, %v4391
    %v4393 = vmul.f32 %v4388, %v4392
    %v4394 = vmul.f32 %v4011, %v4393
    %vm4395 = vcmp.eq.f32.partialorder %v4011, inf
    %v4396 = vsel %vm4395, %v4011, %v4394
    %vm4397 = vcmp.eq.f32.partialorder %v4011, 0.0
    %v4398 = vand.u32 %v4011, 2147483648
    %v4399 = vsel %vm4397, %v4398, %v4396
    %v4400 = vrsqrt.pop %v4013
    %v4401 = vmul.f32 %v4400, %v4013
    %v4402 = vmul.f32 %v4401, %v4400
    %v4403 = vmul.f32 0.5, %v4402
    %v4404 = vsub.f32 1.5, %v4403
    %v4405 = vmul.f32 %v4400, %v4404
    %v4406 = vmul.f32 %v4013, %v4405
    %vm4407 = vcmp.eq.f32.partialorder %v4013, inf
    %v4408 = vsel %vm4407, %v4013, %v4406
    %vm4409 = vcmp.eq.f32.partialorder %v4013, 0.0
    %v4410 = vand.u32 %v4013, 2147483648
    %v4411 = vsel %vm4409, %v4410, %v4408
    %v4412 = vrsqrt.pop %v4015
    %v4413 = vmul.f32 %v4412, %v4015
    %v4414 = vmul.f32 %v4413, %v4412
    %v4415 = vmul.f32 0.5, %v4414
    %v4416 = vsub.f32 1.5, %v4415
    %v4417 = vmul.f32 %v4412, %v4416
    %v4418 = vmul.f32 %v4015, %v4417
    %vm4419 = vcmp.eq.f32.partialorder %v4015, inf
    %v4420 = vsel %vm4419, %v4015, %v4418
    %vm4421 = vcmp.eq.f32.partialorder %v4015, 0.0
    %v4422 = vand.u32 %v4015, 2147483648
    %v4423 = vsel %vm4421, %v4422, %v4420
    %v4424 = vrsqrt.pop %v4017
    %v4425 = vmul.f32 %v4424, %v4017
    %v4426 = vmul.f32 %v4425, %v4424
    %v4427 = vmul.f32 0.5, %v4426
    %v4428 = vsub.f32 1.5, %v4427
    %v4429 = vmul.f32 %v4424, %v4428
    %v4430 = vmul.f32 %v4017, %v4429
    %vm4431 = vcmp.eq.f32.partialorder %v4017, inf
    %v4432 = vsel %vm4431, %v4017, %v4430
    %vm4433 = vcmp.eq.f32.partialorder %v4017, 0.0
    %v4434 = vand.u32 %v4017, 2147483648
    %v4435 = vsel %vm4433, %v4434, %v4432
    %v4436 = vrsqrt.pop %v4019
    %v4437 = vmul.f32 %v4436, %v4019
    %v4438 = vmul.f32 %v4437, %v4436
    %v4439 = vmul.f32 0.5, %v4438
    %v4440 = vsub.f32 1.5, %v4439
    %v4441 = vmul.f32 %v4436, %v4440
    %v4442 = vmul.f32 %v4019, %v4441
    %vm4443 = vcmp.eq.f32.partialorder %v4019, inf
    %v4444 = vsel %vm4443, %v4019, %v4442
    %vm4445 = vcmp.eq.f32.partialorder %v4019, 0.0
    %v4446 = vand.u32 %v4019, 2147483648
    %v4447 = vsel %vm4445, %v4446, %v4444
    %v4448 = vrsqrt.pop %v4021
    %v4449 = vmul.f32 %v4448, %v4021
    %v4450 = vmul.f32 %v4449, %v4448
    %v4451 = vmul.f32 0.5, %v4450
    %v4452 = vsub.f32 1.5, %v4451
    %v4453 = vmul.f32 %v4448, %v4452
    %v4454 = vmul.f32 %v4021, %v4453
    %vm4455 = vcmp.eq.f32.partialorder %v4021, inf
    %v4456 = vsel %vm4455, %v4021, %v4454
    %vm4457 = vcmp.eq.f32.partialorder %v4021, 0.0
    %v4458 = vand.u32 %v4021, 2147483648
    %v4459 = vsel %vm4457, %v4458, %v4456
    %v4460 = vrsqrt.pop %v4023
    %v4461 = vmul.f32 %v4460, %v4023
    %v4462 = vmul.f32 %v4461, %v4460
    %v4463 = vmul.f32 0.5, %v4462
    %v4464 = vsub.f32 1.5, %v4463
    %v4465 = vmul.f32 %v4460, %v4464
    %v4466 = vmul.f32 %v4023, %v4465
    %vm4467 = vcmp.eq.f32.partialorder %v4023, inf
    %v4468 = vsel %vm4467, %v4023, %v4466
    %vm4469 = vcmp.eq.f32.partialorder %v4023, 0.0
    %v4470 = vand.u32 %v4023, 2147483648
    %v4471 = vsel %vm4469, %v4470, %v4468
    %v4472 = vrsqrt.pop %v4025
    %v4473 = vmul.f32 %v4472, %v4025
    %v4474 = vmul.f32 %v4473, %v4472
    %v4475 = vmul.f32 0.5, %v4474
    %v4476 = vsub.f32 1.5, %v4475
    %v4477 = vmul.f32 %v4472, %v4476
    %v4478 = vmul.f32 %v4025, %v4477
    %vm4479 = vcmp.eq.f32.partialorder %v4025, inf
    %v4480 = vsel %vm4479, %v4025, %v4478
    %vm4481 = vcmp.eq.f32.partialorder %v4025, 0.0
    %v4482 = vand.u32 %v4025, 2147483648
    %v4483 = vsel %vm4481, %v4482, %v4480
    %v4484 = vrsqrt.pop %v4027
    %v4485 = vmul.f32 %v4484, %v4027
    %v4486 = vmul.f32 %v4485, %v4484
    %v4487 = vmul.f32 0.5, %v4486
    %v4488 = vsub.f32 1.5, %v4487
    %v4489 = vmul.f32 %v4484, %v4488
    %v4490 = vmul.f32 %v4027, %v4489
    %vm4491 = vcmp.eq.f32.partialorder %v4027, inf
    %v4492 = vsel %vm4491, %v4027, %v4490
    %vm4493 = vcmp.eq.f32.partialorder %v4027, 0.0
    %v4494 = vand.u32 %v4027, 2147483648
    %v4495 = vsel %vm4493, %v4494, %v4492
    %v4496 = vrsqrt.pop %v4029
    %v4497 = vmul.f32 %v4496, %v4029
    %v4498 = vmul.f32 %v4497, %v4496
    %v4499 = vmul.f32 0.5, %v4498
    %v4500 = vsub.f32 1.5, %v4499
    %v4501 = vmul.f32 %v4496, %v4500
    %v4502 = vmul.f32 %v4029, %v4501
    %vm4503 = vcmp.eq.f32.partialorder %v4029, inf
    %v4504 = vsel %vm4503, %v4029, %v4502
    %vm4505 = vcmp.eq.f32.partialorder %v4029, 0.0
    %v4506 = vand.u32 %v4029, 2147483648
    %v4507 = vsel %vm4505, %v4506, %v4504
    %v4508 = vrsqrt.pop %v4031
    %v4509 = vmul.f32 %v4508, %v4031
    %v4510 = vmul.f32 %v4509, %v4508
    %v4511 = vmul.f32 0.5, %v4510
    %v4512 = vsub.f32 1.5, %v4511
    %v4513 = vmul.f32 %v4508, %v4512
    %v4514 = vmul.f32 %v4031, %v4513
    %vm4515 = vcmp.eq.f32.partialorder %v4031, inf
    %v4516 = vsel %vm4515, %v4031, %v4514
    %vm4517 = vcmp.eq.f32.partialorder %v4031, 0.0
    %v4518 = vand.u32 %v4031, 2147483648
    %v4519 = vsel %vm4517, %v4518, %v4516
    %v4520 = vrsqrt.pop %v4033
    %v4521 = vmul.f32 %v4520, %v4033
    %v4522 = vmul.f32 %v4521, %v4520
    %v4523 = vmul.f32 0.5, %v4522
    %v4524 = vsub.f32 1.5, %v4523
    %v4525 = vmul.f32 %v4520, %v4524
    %v4526 = vmul.f32 %v4033, %v4525
    %vm4527 = vcmp.eq.f32.partialorder %v4033, inf
    %v4528 = vsel %vm4527, %v4033, %v4526
    %vm4529 = vcmp.eq.f32.partialorder %v4033, 0.0
    %v4530 = vand.u32 %v4033, 2147483648
    %v4531 = vsel %vm4529, %v4530, %v4528
    %v4532 = vrsqrt.pop %v4035
    %v4533 = vmul.f32 %v4532, %v4035
    %v4534 = vmul.f32 %v4533, %v4532
    %v4535 = vmul.f32 0.5, %v4534
    %v4536 = vsub.f32 1.5, %v4535
    %v4537 = vmul.f32 %v4532, %v4536
    %v4538 = vmul.f32 %v4035, %v4537
    %vm4539 = vcmp.eq.f32.partialorder %v4035, inf
    %v4540 = vsel %vm4539, %v4035, %v4538
    %vm4541 = vcmp.eq.f32.partialorder %v4035, 0.0
    %v4542 = vand.u32 %v4035, 2147483648
    %v4543 = vsel %vm4541, %v4542, %v4540
    %v4544 = vrsqrt.pop %v4037
    %v4545 = vmul.f32 %v4544, %v4037
    %v4546 = vmul.f32 %v4545, %v4544
    %v4547 = vmul.f32 0.5, %v4546
    %v4548 = vsub.f32 1.5, %v4547
    %v4549 = vmul.f32 %v4544, %v4548
    %v4550 = vmul.f32 %v4037, %v4549
    %vm4551 = vcmp.eq.f32.partialorder %v4037, inf
    %v4552 = vsel %vm4551, %v4037, %v4550
    %vm4553 = vcmp.eq.f32.partialorder %v4037, 0.0
    %v4554 = vand.u32 %v4037, 2147483648
    %v4555 = vsel %vm4553, %v4554, %v4552
    %v4556 = vrsqrt.pop %v4039
    %v4557 = vmul.f32 %v4556, %v4039
    %v4558 = vmul.f32 %v4557, %v4556
    %v4559 = vmul.f32 0.5, %v4558
    %v4560 = vsub.f32 1.5, %v4559
    %v4561 = vmul.f32 %v4556, %v4560
    %v4562 = vmul.f32 %v4039, %v4561
    %vm4563 = vcmp.eq.f32.partialorder %v4039, inf
    %v4564 = vsel %vm4563, %v4039, %v4562
    %vm4565 = vcmp.eq.f32.partialorder %v4039, 0.0
    %v4566 = vand.u32 %v4039, 2147483648
    %v4567 = vsel %vm4565, %v4566, %v4564
    %v4568 = vrsqrt.pop %v4041
    %v4569 = vmul.f32 %v4568, %v4041
    %v4570 = vmul.f32 %v4569, %v4568
    %v4571 = vmul.f32 0.5, %v4570
    %v4572 = vsub.f32 1.5, %v4571
    %v4573 = vmul.f32 %v4568, %v4572
    %v4574 = vmul.f32 %v4041, %v4573
    %vm4575 = vcmp.eq.f32.partialorder %v4041, inf
    %v4576 = vsel %vm4575, %v4041, %v4574
    %vm4577 = vcmp.eq.f32.partialorder %v4041, 0.0
    %v4578 = vand.u32 %v4041, 2147483648
    %v4579 = vsel %vm4577, %v4578, %v4576
    %v4580 = vrsqrt.pop %v4043
    %v4581 = vmul.f32 %v4580, %v4043
    %v4582 = vmul.f32 %v4581, %v4580
    %v4583 = vmul.f32 0.5, %v4582
    %v4584 = vsub.f32 1.5, %v4583
    %v4585 = vmul.f32 %v4580, %v4584
    %v4586 = vmul.f32 %v4043, %v4585
    %vm4587 = vcmp.eq.f32.partialorder %v4043, inf
    %v4588 = vsel %vm4587, %v4043, %v4586
    %vm4589 = vcmp.eq.f32.partialorder %v4043, 0.0
    %v4590 = vand.u32 %v4043, 2147483648
    %v4591 = vsel %vm4589, %v4590, %v4588
    %v4592 = vrsqrt.pop %v4045
    %v4593 = vmul.f32 %v4592, %v4045
    %v4594 = vmul.f32 %v4593, %v4592
    %v4595 = vmul.f32 0.5, %v4594
    %v4596 = vsub.f32 1.5, %v4595
    %v4597 = vmul.f32 %v4592, %v4596
    %v4598 = vmul.f32 %v4045, %v4597
    %vm4599 = vcmp.eq.f32.partialorder %v4045, inf
    %v4600 = vsel %vm4599, %v4045, %v4598
    %vm4601 = vcmp.eq.f32.partialorder %v4045, 0.0
    %v4602 = vand.u32 %v4045, 2147483648
    %v4603 = vsel %vm4601, %v4602, %v4600
    %v4604 = vrsqrt.pop %v4047
    %v4605 = vmul.f32 %v4604, %v4047
    %v4606 = vmul.f32 %v4605, %v4604
    %v4607 = vmul.f32 0.5, %v4606
    %v4608 = vsub.f32 1.5, %v4607
    %v4609 = vmul.f32 %v4604, %v4608
    %v4610 = vmul.f32 %v4047, %v4609
    %vm4611 = vcmp.eq.f32.partialorder %v4047, inf
    %v4612 = vsel %vm4611, %v4047, %v4610
    %vm4613 = vcmp.eq.f32.partialorder %v4047, 0.0
    %v4614 = vand.u32 %v4047, 2147483648
    %v4615 = vsel %vm4613, %v4614, %v4612
    %v4616 = vrsqrt.pop %v4049
    %v4617 = vmul.f32 %v4616, %v4049
    %v4618 = vmul.f32 %v4617, %v4616
    %v4619 = vmul.f32 0.5, %v4618
    %v4620 = vsub.f32 1.5, %v4619
    %v4621 = vmul.f32 %v4616, %v4620
    %v4622 = vmul.f32 %v4049, %v4621
    %vm4623 = vcmp.eq.f32.partialorder %v4049, inf
    %v4624 = vsel %vm4623, %v4049, %v4622
    %vm4625 = vcmp.eq.f32.partialorder %v4049, 0.0
    %v4626 = vand.u32 %v4049, 2147483648
    %v4627 = vsel %vm4625, %v4626, %v4624
    %v4628 = vrsqrt.pop %v4051
    %v4629 = vmul.f32 %v4628, %v4051
    %v4630 = vmul.f32 %v4629, %v4628
    %v4631 = vmul.f32 0.5, %v4630
    %v4632 = vsub.f32 1.5, %v4631
    %v4633 = vmul.f32 %v4628, %v4632
    %v4634 = vmul.f32 %v4051, %v4633
    %vm4635 = vcmp.eq.f32.partialorder %v4051, inf
    %v4636 = vsel %vm4635, %v4051, %v4634
    %vm4637 = vcmp.eq.f32.partialorder %v4051, 0.0
    %v4638 = vand.u32 %v4051, 2147483648
    %v4639 = vsel %vm4637, %v4638, %v4636
    %v4640 = vrsqrt.pop %v4053
    %v4641 = vmul.f32 %v4640, %v4053
    %v4642 = vmul.f32 %v4641, %v4640
    %v4643 = vmul.f32 0.5, %v4642
    %v4644 = vsub.f32 1.5, %v4643
    %v4645 = vmul.f32 %v4640, %v4644
    %v4646 = vmul.f32 %v4053, %v4645
    %vm4647 = vcmp.eq.f32.partialorder %v4053, inf
    %v4648 = vsel %vm4647, %v4053, %v4646
    %vm4649 = vcmp.eq.f32.partialorder %v4053, 0.0
    %v4650 = vand.u32 %v4053, 2147483648
    %v4651 = vsel %vm4649, %v4650, %v4648
    %v4652 = vrsqrt.pop %v4055
    %v4653 = vmul.f32 %v4652, %v4055
    %v4654 = vmul.f32 %v4653, %v4652
    %v4655 = vmul.f32 0.5, %v4654
    %v4656 = vsub.f32 1.5, %v4655
    %v4657 = vmul.f32 %v4652, %v4656
    %v4658 = vmul.f32 %v4055, %v4657
    %vm4659 = vcmp.eq.f32.partialorder %v4055, inf
    %v4660 = vsel %vm4659, %v4055, %v4658
    %vm4661 = vcmp.eq.f32.partialorder %v4055, 0.0
    %v4662 = vand.u32 %v4055, 2147483648
    %v4663 = vsel %vm4661, %v4662, %v4660
    %v4664 = vrsqrt.pop %v4057
    %v4665 = vmul.f32 %v4664, %v4057
    %v4666 = vmul.f32 %v4665, %v4664
    %v4667 = vmul.f32 0.5, %v4666
    %v4668 = vsub.f32 1.5, %v4667
    %v4669 = vmul.f32 %v4664, %v4668
    %v4670 = vmul.f32 %v4057, %v4669
    %vm4671 = vcmp.eq.f32.partialorder %v4057, inf
    %v4672 = vsel %vm4671, %v4057, %v4670
    %vm4673 = vcmp.eq.f32.partialorder %v4057, 0.0
    %v4674 = vand.u32 %v4057, 2147483648
    %v4675 = vsel %vm4673, %v4674, %v4672
    %v4676 = vrsqrt.pop %v4059
    %v4677 = vmul.f32 %v4676, %v4059
    %v4678 = vmul.f32 %v4677, %v4676
    %v4679 = vmul.f32 0.5, %v4678
    %v4680 = vsub.f32 1.5, %v4679
    %v4681 = vmul.f32 %v4676, %v4680
    %v4682 = vmul.f32 %v4059, %v4681
    %vm4683 = vcmp.eq.f32.partialorder %v4059, inf
    %v4684 = vsel %vm4683, %v4059, %v4682
    %vm4685 = vcmp.eq.f32.partialorder %v4059, 0.0
    %v4686 = vand.u32 %v4059, 2147483648
    %v4687 = vsel %vm4685, %v4686, %v4684
    %v4688 = vrsqrt.pop %v4061
    %v4689 = vmul.f32 %v4688, %v4061
    %v4690 = vmul.f32 %v4689, %v4688
    %v4691 = vmul.f32 0.5, %v4690
    %v4692 = vsub.f32 1.5, %v4691
    %v4693 = vmul.f32 %v4688, %v4692
    %v4694 = vmul.f32 %v4061, %v4693
    %vm4695 = vcmp.eq.f32.partialorder %v4061, inf
    %v4696 = vsel %vm4695, %v4061, %v4694
    %vm4697 = vcmp.eq.f32.partialorder %v4061, 0.0
    %v4698 = vand.u32 %v4061, 2147483648
    %v4699 = vsel %vm4697, %v4698, %v4696
    %v4700 = vrsqrt.pop %v4063
    %v4701 = vmul.f32 %v4700, %v4063
    %v4702 = vmul.f32 %v4701, %v4700
    %v4703 = vmul.f32 0.5, %v4702
    %v4704 = vsub.f32 1.5, %v4703
    %v4705 = vmul.f32 %v4700, %v4704
    %v4706 = vmul.f32 %v4063, %v4705
    %vm4707 = vcmp.eq.f32.partialorder %v4063, inf
    %v4708 = vsel %vm4707, %v4063, %v4706
    %vm4709 = vcmp.eq.f32.partialorder %v4063, 0.0
    %v4710 = vand.u32 %v4063, 2147483648
    %v4711 = vsel %vm4709, %v4710, %v4708
    %v4712 = vrsqrt.pop %v4065
    %v4713 = vmul.f32 %v4712, %v4065
    %v4714 = vmul.f32 %v4713, %v4712
    %v4715 = vmul.f32 0.5, %v4714
    %v4716 = vsub.f32 1.5, %v4715
    %v4717 = vmul.f32 %v4712, %v4716
    %v4718 = vmul.f32 %v4065, %v4717
    %vm4719 = vcmp.eq.f32.partialorder %v4065, inf
    %v4720 = vsel %vm4719, %v4065, %v4718
    %vm4721 = vcmp.eq.f32.partialorder %v4065, 0.0
    %v4722 = vand.u32 %v4065, 2147483648
    %v4723 = vsel %vm4721, %v4722, %v4720
    %v4724 = vrsqrt.pop %v4067
    %v4725 = vmul.f32 %v4724, %v4067
    %v4726 = vmul.f32 %v4725, %v4724
    %v4727 = vmul.f32 0.5, %v4726
    %v4728 = vsub.f32 1.5, %v4727
    %v4729 = vmul.f32 %v4724, %v4728
    %v4730 = vmul.f32 %v4067, %v4729
    %vm4731 = vcmp.eq.f32.partialorder %v4067, inf
    %v4732 = vsel %vm4731, %v4067, %v4730
    %vm4733 = vcmp.eq.f32.partialorder %v4067, 0.0
    %v4734 = vand.u32 %v4067, 2147483648
    %v4735 = vsel %vm4733, %v4734, %v4732
    %v4736 = vrsqrt.pop %v4069
    %v4737 = vmul.f32 %v4736, %v4069
    %v4738 = vmul.f32 %v4737, %v4736
    %v4739 = vmul.f32 0.5, %v4738
    %v4740 = vsub.f32 1.5, %v4739
    %v4741 = vmul.f32 %v4736, %v4740
    %v4742 = vmul.f32 %v4069, %v4741
    %vm4743 = vcmp.eq.f32.partialorder %v4069, inf
    %v4744 = vsel %vm4743, %v4069, %v4742
    %vm4745 = vcmp.eq.f32.partialorder %v4069, 0.0
    %v4746 = vand.u32 %v4069, 2147483648
    %v4747 = vsel %vm4745, %v4746, %v4744
    %v4748 = vrsqrt.pop %v4071
    %v4749 = vmul.f32 %v4748, %v4071
    %v4750 = vmul.f32 %v4749, %v4748
    %v4751 = vmul.f32 0.5, %v4750
    %v4752 = vsub.f32 1.5, %v4751
    %v4753 = vmul.f32 %v4748, %v4752
    %v4754 = vmul.f32 %v4071, %v4753
    %vm4755 = vcmp.eq.f32.partialorder %v4071, inf
    %v4756 = vsel %vm4755, %v4071, %v4754
    %vm4757 = vcmp.eq.f32.partialorder %v4071, 0.0
    %v4758 = vand.u32 %v4071, 2147483648
    %v4759 = vsel %vm4757, %v4758, %v4756
    %v4760 = vrsqrt.pop %v4073
    %v4761 = vmul.f32 %v4760, %v4073
    %v4762 = vmul.f32 %v4761, %v4760
    %v4763 = vmul.f32 0.5, %v4762
    %v4764 = vsub.f32 1.5, %v4763
    %v4765 = vmul.f32 %v4760, %v4764
    %v4766 = vmul.f32 %v4073, %v4765
    %vm4767 = vcmp.eq.f32.partialorder %v4073, inf
    %v4768 = vsel %vm4767, %v4073, %v4766
    %vm4769 = vcmp.eq.f32.partialorder %v4073, 0.0
    %v4770 = vand.u32 %v4073, 2147483648
    %v4771 = vsel %vm4769, %v4770, %v4768
    %v4772 = vrsqrt.pop %v4075
    %v4773 = vmul.f32 %v4772, %v4075
    %v4774 = vmul.f32 %v4773, %v4772
    %v4775 = vmul.f32 0.5, %v4774
    %v4776 = vsub.f32 1.5, %v4775
    %v4777 = vmul.f32 %v4772, %v4776
    %v4778 = vmul.f32 %v4075, %v4777
    %vm4779 = vcmp.eq.f32.partialorder %v4075, inf
    %v4780 = vsel %vm4779, %v4075, %v4778
    %vm4781 = vcmp.eq.f32.partialorder %v4075, 0.0
    %v4782 = vand.u32 %v4075, 2147483648
    %v4783 = vsel %vm4781, %v4782, %v4780
    %v4784 = vrsqrt.pop %v4077
    %v4785 = vmul.f32 %v4784, %v4077
    %v4786 = vmul.f32 %v4785, %v4784
    %v4787 = vmul.f32 0.5, %v4786
    %v4788 = vsub.f32 1.5, %v4787
    %v4789 = vmul.f32 %v4784, %v4788
    %v4790 = vmul.f32 %v4077, %v4789
    %vm4791 = vcmp.eq.f32.partialorder %v4077, inf
    %v4792 = vsel %vm4791, %v4077, %v4790
    %vm4793 = vcmp.eq.f32.partialorder %v4077, 0.0
    %v4794 = vand.u32 %v4077, 2147483648
    %v4795 = vsel %vm4793, %v4794, %v4792
    %v4796 = vrsqrt.pop %v4079
    %v4797 = vmul.f32 %v4796, %v4079
    %v4798 = vmul.f32 %v4797, %v4796
    %v4799 = vmul.f32 0.5, %v4798
    %v4800 = vsub.f32 1.5, %v4799
    %v4801 = vmul.f32 %v4796, %v4800
    %v4802 = vmul.f32 %v4079, %v4801
    %vm4803 = vcmp.eq.f32.partialorder %v4079, inf
    %v4804 = vsel %vm4803, %v4079, %v4802
    %vm4805 = vcmp.eq.f32.partialorder %v4079, 0.0
    %v4806 = vand.u32 %v4079, 2147483648
    %v4807 = vsel %vm4805, %v4806, %v4804
    %v4808 = vrsqrt.pop %v4081
    %v4809 = vmul.f32 %v4808, %v4081
    %v4810 = vmul.f32 %v4809, %v4808
    %v4811 = vmul.f32 0.5, %v4810
    %v4812 = vsub.f32 1.5, %v4811
    %v4813 = vmul.f32 %v4808, %v4812
    %v4814 = vmul.f32 %v4081, %v4813
    %vm4815 = vcmp.eq.f32.partialorder %v4081, inf
    %v4816 = vsel %vm4815, %v4081, %v4814
    %vm4817 = vcmp.eq.f32.partialorder %v4081, 0.0
    %v4818 = vand.u32 %v4081, 2147483648
    %v4819 = vsel %vm4817, %v4818, %v4816
    %v4820 = vrsqrt.pop %v4083
    %v4821 = vmul.f32 %v4820, %v4083
    %v4822 = vmul.f32 %v4821, %v4820
    %v4823 = vmul.f32 0.5, %v4822
    %v4824 = vsub.f32 1.5, %v4823
    %v4825 = vmul.f32 %v4820, %v4824
    %v4826 = vmul.f32 %v4083, %v4825
    %vm4827 = vcmp.eq.f32.partialorder %v4083, inf
    %v4828 = vsel %vm4827, %v4083, %v4826
    %vm4829 = vcmp.eq.f32.partialorder %v4083, 0.0
    %v4830 = vand.u32 %v4083, 2147483648
    %v4831 = vsel %vm4829, %v4830, %v4828
    %v4832 = vrsqrt.pop %v4085
    %v4833 = vmul.f32 %v4832, %v4085
    %v4834 = vmul.f32 %v4833, %v4832
    %v4835 = vmul.f32 0.5, %v4834
    %v4836 = vsub.f32 1.5, %v4835
    %v4837 = vmul.f32 %v4832, %v4836
    %v4838 = vmul.f32 %v4085, %v4837
    %vm4839 = vcmp.eq.f32.partialorder %v4085, inf
    %v4840 = vsel %vm4839, %v4085, %v4838
    %vm4841 = vcmp.eq.f32.partialorder %v4085, 0.0
    %v4842 = vand.u32 %v4085, 2147483648
    %v4843 = vsel %vm4841, %v4842, %v4840
    %v4844 = vrsqrt.pop %v4087
    %v4845 = vmul.f32 %v4844, %v4087
    %v4846 = vmul.f32 %v4845, %v4844
    %v4847 = vmul.f32 0.5, %v4846
    %v4848 = vsub.f32 1.5, %v4847
    %v4849 = vmul.f32 %v4844, %v4848
    %v4850 = vmul.f32 %v4087, %v4849
    %vm4851 = vcmp.eq.f32.partialorder %v4087, inf
    %v4852 = vsel %vm4851, %v4087, %v4850
    %vm4853 = vcmp.eq.f32.partialorder %v4087, 0.0
    %v4854 = vand.u32 %v4087, 2147483648
    %v4855 = vsel %vm4853, %v4854, %v4852
    %v4856 = vsub.f32 %v4099, %v3139
    %v4857 = vsub.f32 %v4111, %v3151
    %v4858 = vsub.f32 %v4123, %v3163
    %v4859 = vsub.f32 %v4135, %v3175
    %v4860 = vsub.f32 %v4147, %v3187
    %v4861 = vsub.f32 %v4159, %v3199
    %v4862 = vsub.f32 %v4171, %v3211
    %v4863 = vsub.f32 %v4183, %v3223
    %v4864 = vsub.f32 %v4195, %v3235
    %v4865 = vsub.f32 %v4207, %v3247
    %v4866 = vsub.f32 %v4219, %v3259
    %v4867 = vsub.f32 %v4231, %v3271
    %v4868 = vsub.f32 %v4243, %v3283
    %v4869 = vsub.f32 %v4255, %v3295
    %v4870 = vsub.f32 %v4267, %v3307
    %v4871 = vsub.f32 %v4279, %v3319
    %v4872 = vsub.f32 %v4291, %v3331
    %v4873 = vsub.f32 %v4303, %v3343
    %v4874 = vsub.f32 %v4315, %v3355
    %v4875 = vsub.f32 %v4327, %v3367
    %v4876 = vsub.f32 %v4339, %v3379
    %v4877 = vsub.f32 %v4351, %v3391
    %v4878 = vsub.f32 %v4363, %v3403
    %v4879 = vsub.f32 %v4375, %v3415
    %v4880 = vsub.f32 %v4387, %v3427
    %v4881 = vsub.f32 %v4399, %v3439
    %v4882 = vsub.f32 %v4411, %v3451
    %v4883 = vsub.f32 %v4423, %v3463
    %v4884 = vsub.f32 %v4435, %v3475
    %v4885 = vsub.f32 %v4447, %v3487
    %v4886 = vsub.f32 %v4459, %v3499
    %v4887 = vsub.f32 %v4471, %v3511
    %v4888 = vsub.f32 %v4483, %v3523
    %v4889 = vsub.f32 %v4495, %v3535
    %v4890 = vsub.f32 %v4507, %v3547
    %v4891 = vsub.f32 %v4519, %v3559
    %v4892 = vsub.f32 %v4531, %v3571
    %v4893 = vsub.f32 %v4543, %v3583
    %v4894 = vsub.f32 %v4555, %v3595
    %v4895 = vsub.f32 %v4567, %v3607
    %v4896 = vsub.f32 %v4579, %v3619
    %v4897 = vsub.f32 %v4591, %v3631
    %v4898 = vsub.f32 %v4603, %v3643
    %v4899 = vsub.f32 %v4615, %v3655
    %v4900 = vsub.f32 %v4627, %v3667
    %v4901 = vsub.f32 %v4639, %v3679
    %v4902 = vsub.f32 %v4651, %v3691
    %v4903 = vsub.f32 %v4663, %v3703
    %v4904 = vsub.f32 %v4675, %v3715
    %v4905 = vsub.f32 %v4687, %v3727
    %v4906 = vsub.f32 %v4699, %v3739
    %v4907 = vsub.f32 %v4711, %v3751
    %v4908 = vsub.f32 %v4723, %v3763
    %v4909 = vsub.f32 %v4735, %v3775
    %v4910 = vsub.f32 %v4747, %v3787
    %v4911 = vsub.f32 %v4759, %v3799
    %v4912 = vsub.f32 %v4771, %v3811
    %v4913 = vsub.f32 %v4783, %v3823
    %v4914 = vsub.f32 %v4795, %v3835
    %v4915 = vsub.f32 %v4807, %v3847
    %v4916 = vsub.f32 %v4819, %v3859
    %v4917 = vsub.f32 %v4831, %v3871
    %v4918 = vsub.f32 %v4843, %v3883
    %v4919 = vsub.f32 %v4855, %v3895
    %v4920 = vmin.f32 %v4856, 0.0
    %v4921 = vmin.f32 %v4857, 0.0
    %v4922 = vmin.f32 %v4858, 0.0
    %v4923 = vmin.f32 %v4859, 0.0
    %v4924 = vmin.f32 %v4860, 0.0
    %v4925 = vmin.f32 %v4861, 0.0
    %v4926 = vmin.f32 %v4862, 0.0
    %v4927 = vmin.f32 %v4863, 0.0
    %v4928 = vmin.f32 %v4864, 0.0
    %v4929 = vmin.f32 %v4865, 0.0
    %v4930 = vmin.f32 %v4866, 0.0
    %v4931 = vmin.f32 %v4867, 0.0
    %v4932 = vmin.f32 %v4868, 0.0
    %v4933 = vmin.f32 %v4869, 0.0
    %v4934 = vmin.f32 %v4870, 0.0
    %v4935 = vmin.f32 %v4871, 0.0
    %v4936 = vmin.f32 %v4872, 0.0
    %v4937 = vmin.f32 %v4873, 0.0
    %v4938 = vmin.f32 %v4874, 0.0
    %v4939 = vmin.f32 %v4875, 0.0
    %v4940 = vmin.f32 %v4876, 0.0
    %v4941 = vmin.f32 %v4877, 0.0
    %v4942 = vmin.f32 %v4878, 0.0
    %v4943 = vmin.f32 %v4879, 0.0
    %v4944 = vmin.f32 %v4880, 0.0
    %v4945 = vmin.f32 %v4881, 0.0
    %v4946 = vmin.f32 %v4882, 0.0
    %v4947 = vmin.f32 %v4883, 0.0
    %v4948 = vmin.f32 %v4884, 0.0
    %v4949 = vmin.f32 %v4885, 0.0
    %v4950 = vmin.f32 %v4886, 0.0
    %v4951 = vmin.f32 %v4887, 0.0
    %v4952 = vmin.f32 %v4888, 0.0
    %v4953 = vmin.f32 %v4889, 0.0
    %v4954 = vmin.f32 %v4890, 0.0
    %v4955 = vmin.f32 %v4891, 0.0
    %v4956 = vmin.f32 %v4892, 0.0
    %v4957 = vmin.f32 %v4893, 0.0
    %v4958 = vmin.f32 %v4894, 0.0
    %v4959 = vmin.f32 %v4895, 0.0
    %v4960 = vmin.f32 %v4896, 0.0
    %v4961 = vmin.f32 %v4897, 0.0
    %v4962 = vmin.f32 %v4898, 0.0
    %v4963 = vmin.f32 %v4899, 0.0
    %v4964 = vmin.f32 %v4900, 0.0
    %v4965 = vmin.f32 %v4901, 0.0
    %v4966 = vmin.f32 %v4902, 0.0
    %v4967 = vmin.f32 %v4903, 0.0
    %v4968 = vmin.f32 %v4904, 0.0
    %v4969 = vmin.f32 %v4905, 0.0
    %v4970 = vmin.f32 %v4906, 0.0
    %v4971 = vmin.f32 %v4907, 0.0
    %v4972 = vmin.f32 %v4908, 0.0
    %v4973 = vmin.f32 %v4909, 0.0
    %v4974 = vmin.f32 %v4910, 0.0
    %v4975 = vmin.f32 %v4911, 0.0
    %v4976 = vmin.f32 %v4912, 0.0
    %v4977 = vmin.f32 %v4913, 0.0
    %v4978 = vmin.f32 %v4914, 0.0
    %v4979 = vmin.f32 %v4915, 0.0
    %v4980 = vmin.f32 %v4916, 0.0
    %v4981 = vmin.f32 %v4917, 0.0
    %v4982 = vmin.f32 %v4918, 0.0
    %v4983 = vmin.f32 %v4919, 0.0
    %v4984 = vand.u32 2147483647, %v4856
    %v4985 = vand.u32 2147483647, %v4857
    %v4986 = vand.u32 2147483647, %v4858
    %v4987 = vand.u32 2147483647, %v4859
    %v4988 = vand.u32 2147483647, %v4860
    %v4989 = vand.u32 2147483647, %v4861
    %v4990 = vand.u32 2147483647, %v4862
    %v4991 = vand.u32 2147483647, %v4863
    %v4992 = vand.u32 2147483647, %v4864
    %v4993 = vand.u32 2147483647, %v4865
    %v4994 = vand.u32 2147483647, %v4866
    %v4995 = vand.u32 2147483647, %v4867
    %v4996 = vand.u32 2147483647, %v4868
    %v4997 = vand.u32 2147483647, %v4869
    %v4998 = vand.u32 2147483647, %v4870
    %v4999 = vand.u32 2147483647, %v4871
    %v5000 = vand.u32 2147483647, %v4872
    %v5001 = vand.u32 2147483647, %v4873
    %v5002 = vand.u32 2147483647, %v4874
    %v5003 = vand.u32 2147483647, %v4875
    %v5004 = vand.u32 2147483647, %v4876
    %v5005 = vand.u32 2147483647, %v4877
    %v5006 = vand.u32 2147483647, %v4878
    %v5007 = vand.u32 2147483647, %v4879
    %v5008 = vand.u32 2147483647, %v4880
    %v5009 = vand.u32 2147483647, %v4881
    %v5010 = vand.u32 2147483647, %v4882
    %v5011 = vand.u32 2147483647, %v4883
    %v5012 = vand.u32 2147483647, %v4884
    %v5013 = vand.u32 2147483647, %v4885
    %v5014 = vand.u32 2147483647, %v4886
    %v5015 = vand.u32 2147483647, %v4887
    %v5016 = vand.u32 2147483647, %v4888
    %v5017 = vand.u32 2147483647, %v4889
    %v5018 = vand.u32 2147483647, %v4890
    %v5019 = vand.u32 2147483647, %v4891
    %v5020 = vand.u32 2147483647, %v4892
    %v5021 = vand.u32 2147483647, %v4893
    %v5022 = vand.u32 2147483647, %v4894
    %v5023 = vand.u32 2147483647, %v4895
    %v5024 = vand.u32 2147483647, %v4896
    %v5025 = vand.u32 2147483647, %v4897
    %v5026 = vand.u32 2147483647, %v4898
    %v5027 = vand.u32 2147483647, %v4899
    %v5028 = vand.u32 2147483647, %v4900
    %v5029 = vand.u32 2147483647, %v4901
    %v5030 = vand.u32 2147483647, %v4902
    %v5031 = vand.u32 2147483647, %v4903
    %v5032 = vand.u32 2147483647, %v4904
    %v5033 = vand.u32 2147483647, %v4905
    %v5034 = vand.u32 2147483647, %v4906
    %v5035 = vand.u32 2147483647, %v4907
    %v5036 = vand.u32 2147483647, %v4908
    %v5037 = vand.u32 2147483647, %v4909
    %v5038 = vand.u32 2147483647, %v4910
    %v5039 = vand.u32 2147483647, %v4911
    %v5040 = vand.u32 2147483647, %v4912
    %v5041 = vand.u32 2147483647, %v4913
    %v5042 = vand.u32 2147483647, %v4914
    %v5043 = vand.u32 2147483647, %v4915
    %v5044 = vand.u32 2147483647, %v4916
    %v5045 = vand.u32 2147483647, %v4917
    %v5046 = vand.u32 2147483647, %v4918
    %v5047 = vand.u32 2147483647, %v4919
    %v5048 = vsub.f32 0.0, %v4984
    %v5049 = vsub.f32 0.0, %v4985
    %v5050 = vsub.f32 0.0, %v4986
    %v5051 = vsub.f32 0.0, %v4987
    %v5052 = vsub.f32 0.0, %v4988
    %v5053 = vsub.f32 0.0, %v4989
    %v5054 = vsub.f32 0.0, %v4990
    %v5055 = vsub.f32 0.0, %v4991
    %v5056 = vsub.f32 0.0, %v4992
    %v5057 = vsub.f32 0.0, %v4993
    %v5058 = vsub.f32 0.0, %v4994
    %v5059 = vsub.f32 0.0, %v4995
    %v5060 = vsub.f32 0.0, %v4996
    %v5061 = vsub.f32 0.0, %v4997
    %v5062 = vsub.f32 0.0, %v4998
    %v5063 = vsub.f32 0.0, %v4999
    %v5064 = vsub.f32 0.0, %v5000
    %v5065 = vsub.f32 0.0, %v5001
    %v5066 = vsub.f32 0.0, %v5002
    %v5067 = vsub.f32 0.0, %v5003
    %v5068 = vsub.f32 0.0, %v5004
    %v5069 = vsub.f32 0.0, %v5005
    %v5070 = vsub.f32 0.0, %v5006
    %v5071 = vsub.f32 0.0, %v5007
    %v5072 = vsub.f32 0.0, %v5008
    %v5073 = vsub.f32 0.0, %v5009
    %v5074 = vsub.f32 0.0, %v5010
    %v5075 = vsub.f32 0.0, %v5011
    %v5076 = vsub.f32 0.0, %v5012
    %v5077 = vsub.f32 0.0, %v5013
    %v5078 = vsub.f32 0.0, %v5014
    %v5079 = vsub.f32 0.0, %v5015
    %v5080 = vsub.f32 0.0, %v5016
    %v5081 = vsub.f32 0.0, %v5017
    %v5082 = vsub.f32 0.0, %v5018
    %v5083 = vsub.f32 0.0, %v5019
    %v5084 = vsub.f32 0.0, %v5020
    %v5085 = vsub.f32 0.0, %v5021
    %v5086 = vsub.f32 0.0, %v5022
    %v5087 = vsub.f32 0.0, %v5023
    %v5088 = vsub.f32 0.0, %v5024
    %v5089 = vsub.f32 0.0, %v5025
    %v5090 = vsub.f32 0.0, %v5026
    %v5091 = vsub.f32 0.0, %v5027
    %v5092 = vsub.f32 0.0, %v5028
    %v5093 = vsub.f32 0.0, %v5029
    %v5094 = vsub.f32 0.0, %v5030
    %v5095 = vsub.f32 0.0, %v5031
    %v5096 = vsub.f32 0.0, %v5032
    %v5097 = vsub.f32 0.0, %v5033
    %v5098 = vsub.f32 0.0, %v5034
    %v5099 = vsub.f32 0.0, %v5035
    %v5100 = vsub.f32 0.0, %v5036
    %v5101 = vsub.f32 0.0, %v5037
    %v5102 = vsub.f32 0.0, %v5038
    %v5103 = vsub.f32 0.0, %v5039
    %v5104 = vsub.f32 0.0, %v5040
    %v5105 = vsub.f32 0.0, %v5041
    %v5106 = vsub.f32 0.0, %v5042
    %v5107 = vsub.f32 0.0, %v5043
    %v5108 = vsub.f32 0.0, %v5044
    %v5109 = vsub.f32 0.0, %v5045
    %v5110 = vsub.f32 0.0, %v5046
    %v5111 = vsub.f32 0.0, %v5047
    %v5112 = vmul.f32 %v5048, 1.442695
    %v5113 = vpow.pop %v5112
    %v5114 = vmul.f32 %v5049, 1.442695
    %v5115 = vpow.pop %v5114
    %v5116 = vmul.f32 %v5050, 1.442695
    %v5117 = vpow.pop %v5116
    %v5118 = vmul.f32 %v5051, 1.442695
    %v5119 = vpow.pop %v5118
    %v5120 = vmul.f32 %v5052, 1.442695
    %v5121 = vpow.pop %v5120
    %v5122 = vmul.f32 %v5053, 1.442695
    %v5123 = vpow.pop %v5122
    %v5124 = vmul.f32 %v5054, 1.442695
    %v5125 = vpow.pop %v5124
    %v5126 = vmul.f32 %v5055, 1.442695
    %v5127 = vpow.pop %v5126
    %v5128 = vmul.f32 %v5056, 1.442695
    %v5129 = vpow.pop %v5128
    %v5130 = vmul.f32 %v5057, 1.442695
    %v5131 = vpow.pop %v5130
    %v5132 = vmul.f32 %v5058, 1.442695
    %v5133 = vpow.pop %v5132
    %v5134 = vmul.f32 %v5059, 1.442695
    %v5135 = vpow.pop %v5134
    %v5136 = vmul.f32 %v5060, 1.442695
    %v5137 = vpow.pop %v5136
    %v5138 = vmul.f32 %v5061, 1.442695
    %v5139 = vpow.pop %v5138
    %v5140 = vmul.f32 %v5062, 1.442695
    %v5141 = vpow.pop %v5140
    %v5142 = vmul.f32 %v5063, 1.442695
    %v5143 = vpow.pop %v5142
    %v5144 = vmul.f32 %v5064, 1.442695
    %v5145 = vpow.pop %v5144
    %v5146 = vmul.f32 %v5065, 1.442695
    %v5147 = vpow.pop %v5146
    %v5148 = vmul.f32 %v5066, 1.442695
    %v5149 = vpow.pop %v5148
    %v5150 = vmul.f32 %v5067, 1.442695
    %v5151 = vpow.pop %v5150
    %v5152 = vmul.f32 %v5068, 1.442695
    %v5153 = vpow.pop %v5152
    %v5154 = vmul.f32 %v5069, 1.442695
    %v5155 = vpow.pop %v5154
    %v5156 = vmul.f32 %v5070, 1.442695
    %v5157 = vpow.pop %v5156
    %v5158 = vmul.f32 %v5071, 1.442695
    %v5159 = vpow.pop %v5158
    %v5160 = vmul.f32 %v5072, 1.442695
    %v5161 = vpow.pop %v5160
    %v5162 = vmul.f32 %v5073, 1.442695
    %v5163 = vpow.pop %v5162
    %v5164 = vmul.f32 %v5074, 1.442695
    %v5165 = vpow.pop %v5164
    %v5166 = vmul.f32 %v5075, 1.442695
    %v5167 = vpow.pop %v5166
    %v5168 = vmul.f32 %v5076, 1.442695
    %v5169 = vpow.pop %v5168
    %v5170 = vmul.f32 %v5077, 1.442695
    %v5171 = vpow.pop %v5170
    %v5172 = vmul.f32 %v5078, 1.442695
    %v5173 = vpow.pop %v5172
    %v5174 = vmul.f32 %v5079, 1.442695
    %v5175 = vpow.pop %v5174
    %v5176 = vmul.f32 %v5080, 1.442695
    %v5177 = vpow.pop %v5176
    %v5178 = vmul.f32 %v5081, 1.442695
    %v5179 = vpow.pop %v5178
    %v5180 = vmul.f32 %v5082, 1.442695
    %v5181 = vpow.pop %v5180
    %v5182 = vmul.f32 %v5083, 1.442695
    %v5183 = vpow.pop %v5182
    %v5184 = vmul.f32 %v5084, 1.442695
    %v5185 = vpow.pop %v5184
    %v5186 = vmul.f32 %v5085, 1.442695
    %v5187 = vpow.pop %v5186
    %v5188 = vmul.f32 %v5086, 1.442695
    %v5189 = vpow.pop %v5188
    %v5190 = vmul.f32 %v5087, 1.442695
    %v5191 = vpow.pop %v5190
    %v5192 = vmul.f32 %v5088, 1.442695
    %v5193 = vpow.pop %v5192
    %v5194 = vmul.f32 %v5089, 1.442695
    %v5195 = vpow.pop %v5194
    %v5196 = vmul.f32 %v5090, 1.442695
    %v5197 = vpow.pop %v5196
    %v5198 = vmul.f32 %v5091, 1.442695
    %v5199 = vpow.pop %v5198
    %v5200 = vmul.f32 %v5092, 1.442695
    %v5201 = vpow.pop %v5200
    %v5202 = vmul.f32 %v5093, 1.442695
    %v5203 = vpow.pop %v5202
    %v5204 = vmul.f32 %v5094, 1.442695
    %v5205 = vpow.pop %v5204
    %v5206 = vmul.f32 %v5095, 1.442695
    %v5207 = vpow.pop %v5206
    %v5208 = vmul.f32 %v5096, 1.442695
    %v5209 = vpow.pop %v5208
    %v5210 = vmul.f32 %v5097, 1.442695
    %v5211 = vpow.pop %v5210
    %v5212 = vmul.f32 %v5098, 1.442695
    %v5213 = vpow.pop %v5212
    %v5214 = vmul.f32 %v5099, 1.442695
    %v5215 = vpow.pop %v5214
    %v5216 = vmul.f32 %v5100, 1.442695
    %v5217 = vpow.pop %v5216
    %v5218 = vmul.f32 %v5101, 1.442695
    %v5219 = vpow.pop %v5218
    %v5220 = vmul.f32 %v5102, 1.442695
    %v5221 = vpow.pop %v5220
    %v5222 = vmul.f32 %v5103, 1.442695
    %v5223 = vpow.pop %v5222
    %v5224 = vmul.f32 %v5104, 1.442695
    %v5225 = vpow.pop %v5224
    %v5226 = vmul.f32 %v5105, 1.442695
    %v5227 = vpow.pop %v5226
    %v5228 = vmul.f32 %v5106, 1.442695
    %v5229 = vpow.pop %v5228
    %v5230 = vmul.f32 %v5107, 1.442695
    %v5231 = vpow.pop %v5230
    %v5232 = vmul.f32 %v5108, 1.442695
    %v5233 = vpow.pop %v5232
    %v5234 = vmul.f32 %v5109, 1.442695
    %v5235 = vpow.pop %v5234
    %v5236 = vmul.f32 %v5110, 1.442695
    %v5237 = vpow.pop %v5236
    %v5238 = vmul.f32 %v5111, 1.442695
    %v5239 = vpow.pop %v5238
    %v5240 = vadd.f32 %v5113, 1.0
    %v5241 = vlog2.pop %v5240
    %v5242 = vmul.f32 %v5241, 0.6931472
    %v5243 = vmul.f32 -0.5, %v5113
    %v5244 = vadd.f32 %v5243, 1.0
    %v5245 = vmul.f32 %v5244, %v5113
    %v5246 = vand.u32 2147483647, %v5113
    %vm5247 = vcmp.lt.f32.partialorder %v5246, 0.0004427343
    %v5248 = vsel %vm5247, %v5245, %v5242
    %v5249 = vadd.f32 %v5115, 1.0
    %v5250 = vlog2.pop %v5249
    %v5251 = vmul.f32 %v5250, 0.6931472
    %v5252 = vmul.f32 -0.5, %v5115
    %v5253 = vadd.f32 %v5252, 1.0
    %v5254 = vmul.f32 %v5253, %v5115
    %v5255 = vand.u32 2147483647, %v5115
    %vm5256 = vcmp.lt.f32.partialorder %v5255, 0.0004427343
    %v5257 = vsel %vm5256, %v5254, %v5251
    %v5258 = vadd.f32 %v5117, 1.0
    %v5259 = vlog2.pop %v5258
    %v5260 = vmul.f32 %v5259, 0.6931472
    %v5261 = vmul.f32 -0.5, %v5117
    %v5262 = vadd.f32 %v5261, 1.0
    %v5263 = vmul.f32 %v5262, %v5117
    %v5264 = vand.u32 2147483647, %v5117
    %vm5265 = vcmp.lt.f32.partialorder %v5264, 0.0004427343
    %v5266 = vsel %vm5265, %v5263, %v5260
    %v5267 = vadd.f32 %v5119, 1.0
    %v5268 = vlog2.pop %v5267
    %v5269 = vmul.f32 %v5268, 0.6931472
    %v5270 = vmul.f32 -0.5, %v5119
    %v5271 = vadd.f32 %v5270, 1.0
    %v5272 = vmul.f32 %v5271, %v5119
    %v5273 = vand.u32 2147483647, %v5119
    %vm5274 = vcmp.lt.f32.partialorder %v5273, 0.0004427343
    %v5275 = vsel %vm5274, %v5272, %v5269
    %v5276 = vadd.f32 %v5121, 1.0
    %v5277 = vlog2.pop %v5276
    %v5278 = vmul.f32 %v5277, 0.6931472
    %v5279 = vmul.f32 -0.5, %v5121
    %v5280 = vadd.f32 %v5279, 1.0
    %v5281 = vmul.f32 %v5280, %v5121
    %v5282 = vand.u32 2147483647, %v5121
    %vm5283 = vcmp.lt.f32.partialorder %v5282, 0.0004427343
    %v5284 = vsel %vm5283, %v5281, %v5278
    %v5285 = vadd.f32 %v5123, 1.0
    %v5286 = vlog2.pop %v5285
    %v5287 = vmul.f32 %v5286, 0.6931472
    %v5288 = vmul.f32 -0.5, %v5123
    %v5289 = vadd.f32 %v5288, 1.0
    %v5290 = vmul.f32 %v5289, %v5123
    %v5291 = vand.u32 2147483647, %v5123
    %vm5292 = vcmp.lt.f32.partialorder %v5291, 0.0004427343
    %v5293 = vsel %vm5292, %v5290, %v5287
    %v5294 = vadd.f32 %v5125, 1.0
    %v5295 = vlog2.pop %v5294
    %v5296 = vmul.f32 %v5295, 0.6931472
    %v5297 = vmul.f32 -0.5, %v5125
    %v5298 = vadd.f32 %v5297, 1.0
    %v5299 = vmul.f32 %v5298, %v5125
    %v5300 = vand.u32 2147483647, %v5125
    %vm5301 = vcmp.lt.f32.partialorder %v5300, 0.0004427343
    %v5302 = vsel %vm5301, %v5299, %v5296
    %v5303 = vadd.f32 %v5127, 1.0
    %v5304 = vlog2.pop %v5303
    %v5305 = vmul.f32 %v5304, 0.6931472
    %v5306 = vmul.f32 -0.5, %v5127
    %v5307 = vadd.f32 %v5306, 1.0
    %v5308 = vmul.f32 %v5307, %v5127
    %v5309 = vand.u32 2147483647, %v5127
    %vm5310 = vcmp.lt.f32.partialorder %v5309, 0.0004427343
    %v5311 = vsel %vm5310, %v5308, %v5305
    %v5312 = vadd.f32 %v5129, 1.0
    %v5313 = vlog2.pop %v5312
    %v5314 = vmul.f32 %v5313, 0.6931472
    %v5315 = vmul.f32 -0.5, %v5129
    %v5316 = vadd.f32 %v5315, 1.0
    %v5317 = vmul.f32 %v5316, %v5129
    %v5318 = vand.u32 2147483647, %v5129
    %vm5319 = vcmp.lt.f32.partialorder %v5318, 0.0004427343
    %v5320 = vsel %vm5319, %v5317, %v5314
    %v5321 = vadd.f32 %v5131, 1.0
    %v5322 = vlog2.pop %v5321
    %v5323 = vmul.f32 %v5322, 0.6931472
    %v5324 = vmul.f32 -0.5, %v5131
    %v5325 = vadd.f32 %v5324, 1.0
    %v5326 = vmul.f32 %v5325, %v5131
    %v5327 = vand.u32 2147483647, %v5131
    %vm5328 = vcmp.lt.f32.partialorder %v5327, 0.0004427343
    %v5329 = vsel %vm5328, %v5326, %v5323
    %v5330 = vadd.f32 %v5133, 1.0
    %v5331 = vlog2.pop %v5330
    %v5332 = vmul.f32 %v5331, 0.6931472
    %v5333 = vmul.f32 -0.5, %v5133
    %v5334 = vadd.f32 %v5333, 1.0
    %v5335 = vmul.f32 %v5334, %v5133
    %v5336 = vand.u32 2147483647, %v5133
    %vm5337 = vcmp.lt.f32.partialorder %v5336, 0.0004427343
    %v5338 = vsel %vm5337, %v5335, %v5332
    %v5339 = vadd.f32 %v5135, 1.0
    %v5340 = vlog2.pop %v5339
    %v5341 = vmul.f32 %v5340, 0.6931472
    %v5342 = vmul.f32 -0.5, %v5135
    %v5343 = vadd.f32 %v5342, 1.0
    %v5344 = vmul.f32 %v5343, %v5135
    %v5345 = vand.u32 2147483647, %v5135
    %vm5346 = vcmp.lt.f32.partialorder %v5345, 0.0004427343
    %v5347 = vsel %vm5346, %v5344, %v5341
    %v5348 = vadd.f32 %v5137, 1.0
    %v5349 = vlog2.pop %v5348
    %v5350 = vmul.f32 %v5349, 0.6931472
    %v5351 = vmul.f32 -0.5, %v5137
    %v5352 = vadd.f32 %v5351, 1.0
    %v5353 = vmul.f32 %v5352, %v5137
    %v5354 = vand.u32 2147483647, %v5137
    %vm5355 = vcmp.lt.f32.partialorder %v5354, 0.0004427343
    %v5356 = vsel %vm5355, %v5353, %v5350
    %v5357 = vadd.f32 %v5139, 1.0
    %v5358 = vlog2.pop %v5357
    %v5359 = vmul.f32 %v5358, 0.6931472
    %v5360 = vmul.f32 -0.5, %v5139
    %v5361 = vadd.f32 %v5360, 1.0
    %v5362 = vmul.f32 %v5361, %v5139
    %v5363 = vand.u32 2147483647, %v5139
    %vm5364 = vcmp.lt.f32.partialorder %v5363, 0.0004427343
    %v5365 = vsel %vm5364, %v5362, %v5359
    %v5366 = vadd.f32 %v5141, 1.0
    %v5367 = vlog2.pop %v5366
    %v5368 = vmul.f32 %v5367, 0.6931472
    %v5369 = vmul.f32 -0.5, %v5141
    %v5370 = vadd.f32 %v5369, 1.0
    %v5371 = vmul.f32 %v5370, %v5141
    %v5372 = vand.u32 2147483647, %v5141
    %vm5373 = vcmp.lt.f32.partialorder %v5372, 0.0004427343
    %v5374 = vsel %vm5373, %v5371, %v5368
    %v5375 = vadd.f32 %v5143, 1.0
    %v5376 = vlog2.pop %v5375
    %v5377 = vmul.f32 %v5376, 0.6931472
    %v5378 = vmul.f32 -0.5, %v5143
    %v5379 = vadd.f32 %v5378, 1.0
    %v5380 = vmul.f32 %v5379, %v5143
    %v5381 = vand.u32 2147483647, %v5143
    %vm5382 = vcmp.lt.f32.partialorder %v5381, 0.0004427343
    %v5383 = vsel %vm5382, %v5380, %v5377
    %v5384 = vadd.f32 %v5145, 1.0
    %v5385 = vlog2.pop %v5384
    %v5386 = vmul.f32 %v5385, 0.6931472
    %v5387 = vmul.f32 -0.5, %v5145
    %v5388 = vadd.f32 %v5387, 1.0
    %v5389 = vmul.f32 %v5388, %v5145
    %v5390 = vand.u32 2147483647, %v5145
    %vm5391 = vcmp.lt.f32.partialorder %v5390, 0.0004427343
    %v5392 = vsel %vm5391, %v5389, %v5386
    %v5393 = vadd.f32 %v5147, 1.0
    %v5394 = vlog2.pop %v5393
    %v5395 = vmul.f32 %v5394, 0.6931472
    %v5396 = vmul.f32 -0.5, %v5147
    %v5397 = vadd.f32 %v5396, 1.0
    %v5398 = vmul.f32 %v5397, %v5147
    %v5399 = vand.u32 2147483647, %v5147
    %vm5400 = vcmp.lt.f32.partialorder %v5399, 0.0004427343
    %v5401 = vsel %vm5400, %v5398, %v5395
    %v5402 = vadd.f32 %v5149, 1.0
    %v5403 = vlog2.pop %v5402
    %v5404 = vmul.f32 %v5403, 0.6931472
    %v5405 = vmul.f32 -0.5, %v5149
    %v5406 = vadd.f32 %v5405, 1.0
    %v5407 = vmul.f32 %v5406, %v5149
    %v5408 = vand.u32 2147483647, %v5149
    %vm5409 = vcmp.lt.f32.partialorder %v5408, 0.0004427343
    %v5410 = vsel %vm5409, %v5407, %v5404
    %v5411 = vadd.f32 %v5151, 1.0
    %v5412 = vlog2.pop %v5411
    %v5413 = vmul.f32 %v5412, 0.6931472
    %v5414 = vmul.f32 -0.5, %v5151
    %v5415 = vadd.f32 %v5414, 1.0
    %v5416 = vmul.f32 %v5415, %v5151
    %v5417 = vand.u32 2147483647, %v5151
    %vm5418 = vcmp.lt.f32.partialorder %v5417, 0.0004427343
    %v5419 = vsel %vm5418, %v5416, %v5413
    %v5420 = vadd.f32 %v5153, 1.0
    %v5421 = vlog2.pop %v5420
    %v5422 = vmul.f32 %v5421, 0.6931472
    %v5423 = vmul.f32 -0.5, %v5153
    %v5424 = vadd.f32 %v5423, 1.0
    %v5425 = vmul.f32 %v5424, %v5153
    %v5426 = vand.u32 2147483647, %v5153
    %vm5427 = vcmp.lt.f32.partialorder %v5426, 0.0004427343
    %v5428 = vsel %vm5427, %v5425, %v5422
    %v5429 = vadd.f32 %v5155, 1.0
    %v5430 = vlog2.pop %v5429
    %v5431 = vmul.f32 %v5430, 0.6931472
    %v5432 = vmul.f32 -0.5, %v5155
    %v5433 = vadd.f32 %v5432, 1.0
    %v5434 = vmul.f32 %v5433, %v5155
    %v5435 = vand.u32 2147483647, %v5155
    %vm5436 = vcmp.lt.f32.partialorder %v5435, 0.0004427343
    %v5437 = vsel %vm5436, %v5434, %v5431
    %v5438 = vadd.f32 %v5157, 1.0
    %v5439 = vlog2.pop %v5438
    %v5440 = vmul.f32 %v5439, 0.6931472
    %v5441 = vmul.f32 -0.5, %v5157
    %v5442 = vadd.f32 %v5441, 1.0
    %v5443 = vmul.f32 %v5442, %v5157
    %v5444 = vand.u32 2147483647, %v5157
    %vm5445 = vcmp.lt.f32.partialorder %v5444, 0.0004427343
    %v5446 = vsel %vm5445, %v5443, %v5440
    %v5447 = vadd.f32 %v5159, 1.0
    %v5448 = vlog2.pop %v5447
    %v5449 = vmul.f32 %v5448, 0.6931472
    %v5450 = vmul.f32 -0.5, %v5159
    %v5451 = vadd.f32 %v5450, 1.0
    %v5452 = vmul.f32 %v5451, %v5159
    %v5453 = vand.u32 2147483647, %v5159
    %vm5454 = vcmp.lt.f32.partialorder %v5453, 0.0004427343
    %v5455 = vsel %vm5454, %v5452, %v5449
    %v5456 = vadd.f32 %v5161, 1.0
    %v5457 = vlog2.pop %v5456
    %v5458 = vmul.f32 %v5457, 0.6931472
    %v5459 = vmul.f32 -0.5, %v5161
    %v5460 = vadd.f32 %v5459, 1.0
    %v5461 = vmul.f32 %v5460, %v5161
    %v5462 = vand.u32 2147483647, %v5161
    %vm5463 = vcmp.lt.f32.partialorder %v5462, 0.0004427343
    %v5464 = vsel %vm5463, %v5461, %v5458
    %v5465 = vadd.f32 %v5163, 1.0
    %v5466 = vlog2.pop %v5465
    %v5467 = vmul.f32 %v5466, 0.6931472
    %v5468 = vmul.f32 -0.5, %v5163
    %v5469 = vadd.f32 %v5468, 1.0
    %v5470 = vmul.f32 %v5469, %v5163
    %v5471 = vand.u32 2147483647, %v5163
    %vm5472 = vcmp.lt.f32.partialorder %v5471, 0.0004427343
    %v5473 = vsel %vm5472, %v5470, %v5467
    %v5474 = vadd.f32 %v5165, 1.0
    %v5475 = vlog2.pop %v5474
    %v5476 = vmul.f32 %v5475, 0.6931472
    %v5477 = vmul.f32 -0.5, %v5165
    %v5478 = vadd.f32 %v5477, 1.0
    %v5479 = vmul.f32 %v5478, %v5165
    %v5480 = vand.u32 2147483647, %v5165
    %vm5481 = vcmp.lt.f32.partialorder %v5480, 0.0004427343
    %v5482 = vsel %vm5481, %v5479, %v5476
    %v5483 = vadd.f32 %v5167, 1.0
    %v5484 = vlog2.pop %v5483
    %v5485 = vmul.f32 %v5484, 0.6931472
    %v5486 = vmul.f32 -0.5, %v5167
    %v5487 = vadd.f32 %v5486, 1.0
    %v5488 = vmul.f32 %v5487, %v5167
    %v5489 = vand.u32 2147483647, %v5167
    %vm5490 = vcmp.lt.f32.partialorder %v5489, 0.0004427343
    %v5491 = vsel %vm5490, %v5488, %v5485
    %v5492 = vadd.f32 %v5169, 1.0
    %v5493 = vlog2.pop %v5492
    %v5494 = vmul.f32 %v5493, 0.6931472
    %v5495 = vmul.f32 -0.5, %v5169
    %v5496 = vadd.f32 %v5495, 1.0
    %v5497 = vmul.f32 %v5496, %v5169
    %v5498 = vand.u32 2147483647, %v5169
    %vm5499 = vcmp.lt.f32.partialorder %v5498, 0.0004427343
    %v5500 = vsel %vm5499, %v5497, %v5494
    %v5501 = vadd.f32 %v5171, 1.0
    %v5502 = vlog2.pop %v5501
    %v5503 = vmul.f32 %v5502, 0.6931472
    %v5504 = vmul.f32 -0.5, %v5171
    %v5505 = vadd.f32 %v5504, 1.0
    %v5506 = vmul.f32 %v5505, %v5171
    %v5507 = vand.u32 2147483647, %v5171
    %vm5508 = vcmp.lt.f32.partialorder %v5507, 0.0004427343
    %v5509 = vsel %vm5508, %v5506, %v5503
    %v5510 = vadd.f32 %v5173, 1.0
    %v5511 = vlog2.pop %v5510
    %v5512 = vmul.f32 %v5511, 0.6931472
    %v5513 = vmul.f32 -0.5, %v5173
    %v5514 = vadd.f32 %v5513, 1.0
    %v5515 = vmul.f32 %v5514, %v5173
    %v5516 = vand.u32 2147483647, %v5173
    %vm5517 = vcmp.lt.f32.partialorder %v5516, 0.0004427343
    %v5518 = vsel %vm5517, %v5515, %v5512
    %v5519 = vadd.f32 %v5175, 1.0
    %v5520 = vlog2.pop %v5519
    %v5521 = vmul.f32 %v5520, 0.6931472
    %v5522 = vmul.f32 -0.5, %v5175
    %v5523 = vadd.f32 %v5522, 1.0
    %v5524 = vmul.f32 %v5523, %v5175
    %v5525 = vand.u32 2147483647, %v5175
    %vm5526 = vcmp.lt.f32.partialorder %v5525, 0.0004427343
    %v5527 = vsel %vm5526, %v5524, %v5521
    %v5528 = vadd.f32 %v5177, 1.0
    %v5529 = vlog2.pop %v5528
    %v5530 = vmul.f32 %v5529, 0.6931472
    %v5531 = vmul.f32 -0.5, %v5177
    %v5532 = vadd.f32 %v5531, 1.0
    %v5533 = vmul.f32 %v5532, %v5177
    %v5534 = vand.u32 2147483647, %v5177
    %vm5535 = vcmp.lt.f32.partialorder %v5534, 0.0004427343
    %v5536 = vsel %vm5535, %v5533, %v5530
    %v5537 = vadd.f32 %v5179, 1.0
    %v5538 = vlog2.pop %v5537
    %v5539 = vmul.f32 %v5538, 0.6931472
    %v5540 = vmul.f32 -0.5, %v5179
    %v5541 = vadd.f32 %v5540, 1.0
    %v5542 = vmul.f32 %v5541, %v5179
    %v5543 = vand.u32 2147483647, %v5179
    %vm5544 = vcmp.lt.f32.partialorder %v5543, 0.0004427343
    %v5545 = vsel %vm5544, %v5542, %v5539
    %v5546 = vadd.f32 %v5181, 1.0
    %v5547 = vlog2.pop %v5546
    %v5548 = vmul.f32 %v5547, 0.6931472
    %v5549 = vmul.f32 -0.5, %v5181
    %v5550 = vadd.f32 %v5549, 1.0
    %v5551 = vmul.f32 %v5550, %v5181
    %v5552 = vand.u32 2147483647, %v5181
    %vm5553 = vcmp.lt.f32.partialorder %v5552, 0.0004427343
    %v5554 = vsel %vm5553, %v5551, %v5548
    %v5555 = vadd.f32 %v5183, 1.0
    %v5556 = vlog2.pop %v5555
    %v5557 = vmul.f32 %v5556, 0.6931472
    %v5558 = vmul.f32 -0.5, %v5183
    %v5559 = vadd.f32 %v5558, 1.0
    %v5560 = vmul.f32 %v5559, %v5183
    %v5561 = vand.u32 2147483647, %v5183
    %vm5562 = vcmp.lt.f32.partialorder %v5561, 0.0004427343
    %v5563 = vsel %vm5562, %v5560, %v5557
    %v5564 = vadd.f32 %v5185, 1.0
    %v5565 = vlog2.pop %v5564
    %v5566 = vmul.f32 %v5565, 0.6931472
    %v5567 = vmul.f32 -0.5, %v5185
    %v5568 = vadd.f32 %v5567, 1.0
    %v5569 = vmul.f32 %v5568, %v5185
    %v5570 = vand.u32 2147483647, %v5185
    %vm5571 = vcmp.lt.f32.partialorder %v5570, 0.0004427343
    %v5572 = vsel %vm5571, %v5569, %v5566
    %v5573 = vadd.f32 %v5187, 1.0
    %v5574 = vlog2.pop %v5573
    %v5575 = vmul.f32 %v5574, 0.6931472
    %v5576 = vmul.f32 -0.5, %v5187
    %v5577 = vadd.f32 %v5576, 1.0
    %v5578 = vmul.f32 %v5577, %v5187
    %v5579 = vand.u32 2147483647, %v5187
    %vm5580 = vcmp.lt.f32.partialorder %v5579, 0.0004427343
    %v5581 = vsel %vm5580, %v5578, %v5575
    %v5582 = vadd.f32 %v5189, 1.0
    %v5583 = vlog2.pop %v5582
    %v5584 = vmul.f32 %v5583, 0.6931472
    %v5585 = vmul.f32 -0.5, %v5189
    %v5586 = vadd.f32 %v5585, 1.0
    %v5587 = vmul.f32 %v5586, %v5189
    %v5588 = vand.u32 2147483647, %v5189
    %vm5589 = vcmp.lt.f32.partialorder %v5588, 0.0004427343
    %v5590 = vsel %vm5589, %v5587, %v5584
    %v5591 = vadd.f32 %v5191, 1.0
    %v5592 = vlog2.pop %v5591
    %v5593 = vmul.f32 %v5592, 0.6931472
    %v5594 = vmul.f32 -0.5, %v5191
    %v5595 = vadd.f32 %v5594, 1.0
    %v5596 = vmul.f32 %v5595, %v5191
    %v5597 = vand.u32 2147483647, %v5191
    %vm5598 = vcmp.lt.f32.partialorder %v5597, 0.0004427343
    %v5599 = vsel %vm5598, %v5596, %v5593
    %v5600 = vadd.f32 %v5193, 1.0
    %v5601 = vlog2.pop %v5600
    %v5602 = vmul.f32 %v5601, 0.6931472
    %v5603 = vmul.f32 -0.5, %v5193
    %v5604 = vadd.f32 %v5603, 1.0
    %v5605 = vmul.f32 %v5604, %v5193
    %v5606 = vand.u32 2147483647, %v5193
    %vm5607 = vcmp.lt.f32.partialorder %v5606, 0.0004427343
    %v5608 = vsel %vm5607, %v5605, %v5602
    %v5609 = vadd.f32 %v5195, 1.0
    %v5610 = vlog2.pop %v5609
    %v5611 = vmul.f32 %v5610, 0.6931472
    %v5612 = vmul.f32 -0.5, %v5195
    %v5613 = vadd.f32 %v5612, 1.0
    %v5614 = vmul.f32 %v5613, %v5195
    %v5615 = vand.u32 2147483647, %v5195
    %vm5616 = vcmp.lt.f32.partialorder %v5615, 0.0004427343
    %v5617 = vsel %vm5616, %v5614, %v5611
    %v5618 = vadd.f32 %v5197, 1.0
    %v5619 = vlog2.pop %v5618
    %v5620 = vmul.f32 %v5619, 0.6931472
    %v5621 = vmul.f32 -0.5, %v5197
    %v5622 = vadd.f32 %v5621, 1.0
    %v5623 = vmul.f32 %v5622, %v5197
    %v5624 = vand.u32 2147483647, %v5197
    %vm5625 = vcmp.lt.f32.partialorder %v5624, 0.0004427343
    %v5626 = vsel %vm5625, %v5623, %v5620
    %v5627 = vadd.f32 %v5199, 1.0
    %v5628 = vlog2.pop %v5627
    %v5629 = vmul.f32 %v5628, 0.6931472
    %v5630 = vmul.f32 -0.5, %v5199
    %v5631 = vadd.f32 %v5630, 1.0
    %v5632 = vmul.f32 %v5631, %v5199
    %v5633 = vand.u32 2147483647, %v5199
    %vm5634 = vcmp.lt.f32.partialorder %v5633, 0.0004427343
    %v5635 = vsel %vm5634, %v5632, %v5629
    %v5636 = vadd.f32 %v5201, 1.0
    %v5637 = vlog2.pop %v5636
    %v5638 = vmul.f32 %v5637, 0.6931472
    %v5639 = vmul.f32 -0.5, %v5201
    %v5640 = vadd.f32 %v5639, 1.0
    %v5641 = vmul.f32 %v5640, %v5201
    %v5642 = vand.u32 2147483647, %v5201
    %vm5643 = vcmp.lt.f32.partialorder %v5642, 0.0004427343
    %v5644 = vsel %vm5643, %v5641, %v5638
    %v5645 = vadd.f32 %v5203, 1.0
    %v5646 = vlog2.pop %v5645
    %v5647 = vmul.f32 %v5646, 0.6931472
    %v5648 = vmul.f32 -0.5, %v5203
    %v5649 = vadd.f32 %v5648, 1.0
    %v5650 = vmul.f32 %v5649, %v5203
    %v5651 = vand.u32 2147483647, %v5203
    %vm5652 = vcmp.lt.f32.partialorder %v5651, 0.0004427343
    %v5653 = vsel %vm5652, %v5650, %v5647
    %v5654 = vadd.f32 %v5205, 1.0
    %v5655 = vlog2.pop %v5654
    %v5656 = vmul.f32 %v5655, 0.6931472
    %v5657 = vmul.f32 -0.5, %v5205
    %v5658 = vadd.f32 %v5657, 1.0
    %v5659 = vmul.f32 %v5658, %v5205
    %v5660 = vand.u32 2147483647, %v5205
    %vm5661 = vcmp.lt.f32.partialorder %v5660, 0.0004427343
    %v5662 = vsel %vm5661, %v5659, %v5656
    %v5663 = vadd.f32 %v5207, 1.0
    %v5664 = vlog2.pop %v5663
    %v5665 = vmul.f32 %v5664, 0.6931472
    %v5666 = vmul.f32 -0.5, %v5207
    %v5667 = vadd.f32 %v5666, 1.0
    %v5668 = vmul.f32 %v5667, %v5207
    %v5669 = vand.u32 2147483647, %v5207
    %vm5670 = vcmp.lt.f32.partialorder %v5669, 0.0004427343
    %v5671 = vsel %vm5670, %v5668, %v5665
    %v5672 = vadd.f32 %v5209, 1.0
    %v5673 = vlog2.pop %v5672
    %v5674 = vmul.f32 %v5673, 0.6931472
    %v5675 = vmul.f32 -0.5, %v5209
    %v5676 = vadd.f32 %v5675, 1.0
    %v5677 = vmul.f32 %v5676, %v5209
    %v5678 = vand.u32 2147483647, %v5209
    %vm5679 = vcmp.lt.f32.partialorder %v5678, 0.0004427343
    %v5680 = vsel %vm5679, %v5677, %v5674
    %v5681 = vadd.f32 %v5211, 1.0
    %v5682 = vlog2.pop %v5681
    %v5683 = vmul.f32 %v5682, 0.6931472
    %v5684 = vmul.f32 -0.5, %v5211
    %v5685 = vadd.f32 %v5684, 1.0
    %v5686 = vmul.f32 %v5685, %v5211
    %v5687 = vand.u32 2147483647, %v5211
    %vm5688 = vcmp.lt.f32.partialorder %v5687, 0.0004427343
    %v5689 = vsel %vm5688, %v5686, %v5683
    %v5690 = vadd.f32 %v5213, 1.0
    %v5691 = vlog2.pop %v5690
    %v5692 = vmul.f32 %v5691, 0.6931472
    %v5693 = vmul.f32 -0.5, %v5213
    %v5694 = vadd.f32 %v5693, 1.0
    %v5695 = vmul.f32 %v5694, %v5213
    %v5696 = vand.u32 2147483647, %v5213
    %vm5697 = vcmp.lt.f32.partialorder %v5696, 0.0004427343
    %v5698 = vsel %vm5697, %v5695, %v5692
    %v5699 = vadd.f32 %v5215, 1.0
    %v5700 = vlog2.pop %v5699
    %v5701 = vmul.f32 %v5700, 0.6931472
    %v5702 = vmul.f32 -0.5, %v5215
    %v5703 = vadd.f32 %v5702, 1.0
    %v5704 = vmul.f32 %v5703, %v5215
    %v5705 = vand.u32 2147483647, %v5215
    %vm5706 = vcmp.lt.f32.partialorder %v5705, 0.0004427343
    %v5707 = vsel %vm5706, %v5704, %v5701
    %v5708 = vadd.f32 %v5217, 1.0
    %v5709 = vlog2.pop %v5708
    %v5710 = vmul.f32 %v5709, 0.6931472
    %v5711 = vmul.f32 -0.5, %v5217
    %v5712 = vadd.f32 %v5711, 1.0
    %v5713 = vmul.f32 %v5712, %v5217
    %v5714 = vand.u32 2147483647, %v5217
    %vm5715 = vcmp.lt.f32.partialorder %v5714, 0.0004427343
    %v5716 = vsel %vm5715, %v5713, %v5710
    %v5717 = vadd.f32 %v5219, 1.0
    %v5718 = vlog2.pop %v5717
    %v5719 = vmul.f32 %v5718, 0.6931472
    %v5720 = vmul.f32 -0.5, %v5219
    %v5721 = vadd.f32 %v5720, 1.0
    %v5722 = vmul.f32 %v5721, %v5219
    %v5723 = vand.u32 2147483647, %v5219
    %vm5724 = vcmp.lt.f32.partialorder %v5723, 0.0004427343
    %v5725 = vsel %vm5724, %v5722, %v5719
    %v5726 = vadd.f32 %v5221, 1.0
    %v5727 = vlog2.pop %v5726
    %v5728 = vmul.f32 %v5727, 0.6931472
    %v5729 = vmul.f32 -0.5, %v5221
    %v5730 = vadd.f32 %v5729, 1.0
    %v5731 = vmul.f32 %v5730, %v5221
    %v5732 = vand.u32 2147483647, %v5221
    %vm5733 = vcmp.lt.f32.partialorder %v5732, 0.0004427343
    %v5734 = vsel %vm5733, %v5731, %v5728
    %v5735 = vadd.f32 %v5223, 1.0
    %v5736 = vlog2.pop %v5735
    %v5737 = vmul.f32 %v5736, 0.6931472
    %v5738 = vmul.f32 -0.5, %v5223
    %v5739 = vadd.f32 %v5738, 1.0
    %v5740 = vmul.f32 %v5739, %v5223
    %v5741 = vand.u32 2147483647, %v5223
    %vm5742 = vcmp.lt.f32.partialorder %v5741, 0.0004427343
    %v5743 = vsel %vm5742, %v5740, %v5737
    %v5744 = vadd.f32 %v5225, 1.0
    %v5745 = vlog2.pop %v5744
    %v5746 = vmul.f32 %v5745, 0.6931472
    %v5747 = vmul.f32 -0.5, %v5225
    %v5748 = vadd.f32 %v5747, 1.0
    %v5749 = vmul.f32 %v5748, %v5225
    %v5750 = vand.u32 2147483647, %v5225
    %vm5751 = vcmp.lt.f32.partialorder %v5750, 0.0004427343
    %v5752 = vsel %vm5751, %v5749, %v5746
    %v5753 = vadd.f32 %v5227, 1.0
    %v5754 = vlog2.pop %v5753
    %v5755 = vmul.f32 %v5754, 0.6931472
    %v5756 = vmul.f32 -0.5, %v5227
    %v5757 = vadd.f32 %v5756, 1.0
    %v5758 = vmul.f32 %v5757, %v5227
    %v5759 = vand.u32 2147483647, %v5227
    %vm5760 = vcmp.lt.f32.partialorder %v5759, 0.0004427343
    %v5761 = vsel %vm5760, %v5758, %v5755
    %v5762 = vadd.f32 %v5229, 1.0
    %v5763 = vlog2.pop %v5762
    %v5764 = vmul.f32 %v5763, 0.6931472
    %v5765 = vmul.f32 -0.5, %v5229
    %v5766 = vadd.f32 %v5765, 1.0
    %v5767 = vmul.f32 %v5766, %v5229
    %v5768 = vand.u32 2147483647, %v5229
    %vm5769 = vcmp.lt.f32.partialorder %v5768, 0.0004427343
    %v5770 = vsel %vm5769, %v5767, %v5764
    %v5771 = vadd.f32 %v5231, 1.0
    %v5772 = vlog2.pop %v5771
    %v5773 = vmul.f32 %v5772, 0.6931472
    %v5774 = vmul.f32 -0.5, %v5231
    %v5775 = vadd.f32 %v5774, 1.0
    %v5776 = vmul.f32 %v5775, %v5231
    %v5777 = vand.u32 2147483647, %v5231
    %vm5778 = vcmp.lt.f32.partialorder %v5777, 0.0004427343
    %v5779 = vsel %vm5778, %v5776, %v5773
    %v5780 = vadd.f32 %v5233, 1.0
    %v5781 = vlog2.pop %v5780
    %v5782 = vmul.f32 %v5781, 0.6931472
    %v5783 = vmul.f32 -0.5, %v5233
    %v5784 = vadd.f32 %v5783, 1.0
    %v5785 = vmul.f32 %v5784, %v5233
    %v5786 = vand.u32 2147483647, %v5233
    %vm5787 = vcmp.lt.f32.partialorder %v5786, 0.0004427343
    %v5788 = vsel %vm5787, %v5785, %v5782
    %v5789 = vadd.f32 %v5235, 1.0
    %v5790 = vlog2.pop %v5789
    %v5791 = vmul.f32 %v5790, 0.6931472
    %v5792 = vmul.f32 -0.5, %v5235
    %v5793 = vadd.f32 %v5792, 1.0
    %v5794 = vmul.f32 %v5793, %v5235
    %v5795 = vand.u32 2147483647, %v5235
    %vm5796 = vcmp.lt.f32.partialorder %v5795, 0.0004427343
    %v5797 = vsel %vm5796, %v5794, %v5791
    %v5798 = vadd.f32 %v5237, 1.0
    %v5799 = vlog2.pop %v5798
    %v5800 = vmul.f32 %v5799, 0.6931472
    %v5801 = vmul.f32 -0.5, %v5237
    %v5802 = vadd.f32 %v5801, 1.0
    %v5803 = vmul.f32 %v5802, %v5237
    %v5804 = vand.u32 2147483647, %v5237
    %vm5805 = vcmp.lt.f32.partialorder %v5804, 0.0004427343
    %v5806 = vsel %vm5805, %v5803, %v5800
    %v5807 = vadd.f32 %v5239, 1.0
    %v5808 = vlog2.pop %v5807
    %v5809 = vmul.f32 %v5808, 0.6931472
    %v5810 = vmul.f32 -0.5, %v5239
    %v5811 = vadd.f32 %v5810, 1.0
    %v5812 = vmul.f32 %v5811, %v5239
    %v5813 = vand.u32 2147483647, %v5239
    %vm5814 = vcmp.lt.f32.partialorder %v5813, 0.0004427343
    %v5815 = vsel %vm5814, %v5812, %v5809
    %v5816 = vsub.f32 %v4920, %v5248
    %v5817 = vsub.f32 %v4921, %v5257
    %v5818 = vsub.f32 %v4922, %v5266
    %v5819 = vsub.f32 %v4923, %v5275
    %v5820 = vsub.f32 %v4924, %v5284
    %v5821 = vsub.f32 %v4925, %v5293
    %v5822 = vsub.f32 %v4926, %v5302
    %v5823 = vsub.f32 %v4927, %v5311
    %v5824 = vsub.f32 %v4928, %v5320
    %v5825 = vsub.f32 %v4929, %v5329
    %v5826 = vsub.f32 %v4930, %v5338
    %v5827 = vsub.f32 %v4931, %v5347
    %v5828 = vsub.f32 %v4932, %v5356
    %v5829 = vsub.f32 %v4933, %v5365
    %v5830 = vsub.f32 %v4934, %v5374
    %v5831 = vsub.f32 %v4935, %v5383
    %v5832 = vsub.f32 %v4936, %v5392
    %v5833 = vsub.f32 %v4937, %v5401
    %v5834 = vsub.f32 %v4938, %v5410
    %v5835 = vsub.f32 %v4939, %v5419
    %v5836 = vsub.f32 %v4940, %v5428
    %v5837 = vsub.f32 %v4941, %v5437
    %v5838 = vsub.f32 %v4942, %v5446
    %v5839 = vsub.f32 %v4943, %v5455
    %v5840 = vsub.f32 %v4944, %v5464
    %v5841 = vsub.f32 %v4945, %v5473
    %v5842 = vsub.f32 %v4946, %v5482
    %v5843 = vsub.f32 %v4947, %v5491
    %v5844 = vsub.f32 %v4948, %v5500
    %v5845 = vsub.f32 %v4949, %v5509
    %v5846 = vsub.f32 %v4950, %v5518
    %v5847 = vsub.f32 %v4951, %v5527
    %v5848 = vsub.f32 %v4952, %v5536
    %v5849 = vsub.f32 %v4953, %v5545
    %v5850 = vsub.f32 %v4954, %v5554
    %v5851 = vsub.f32 %v4955, %v5563
    %v5852 = vsub.f32 %v4956, %v5572
    %v5853 = vsub.f32 %v4957, %v5581
    %v5854 = vsub.f32 %v4958, %v5590
    %v5855 = vsub.f32 %v4959, %v5599
    %v5856 = vsub.f32 %v4960, %v5608
    %v5857 = vsub.f32 %v4961, %v5617
    %v5858 = vsub.f32 %v4962, %v5626
    %v5859 = vsub.f32 %v4963, %v5635
    %v5860 = vsub.f32 %v4964, %v5644
    %v5861 = vsub.f32 %v4965, %v5653
    %v5862 = vsub.f32 %v4966, %v5662
    %v5863 = vsub.f32 %v4967, %v5671
    %v5864 = vsub.f32 %v4968, %v5680
    %v5865 = vsub.f32 %v4969, %v5689
    %v5866 = vsub.f32 %v4970, %v5698
    %v5867 = vsub.f32 %v4971, %v5707
    %v5868 = vsub.f32 %v4972, %v5716
    %v5869 = vsub.f32 %v4973, %v5725
    %v5870 = vsub.f32 %v4974, %v5734
    %v5871 = vsub.f32 %v4975, %v5743
    %v5872 = vsub.f32 %v4976, %v5752
    %v5873 = vsub.f32 %v4977, %v5761
    %v5874 = vsub.f32 %v4978, %v5770
    %v5875 = vsub.f32 %v4979, %v5779
    %v5876 = vsub.f32 %v4980, %v5788
    %v5877 = vsub.f32 %v4981, %v5797
    %v5878 = vsub.f32 %v4982, %v5806
    %v5879 = vsub.f32 %v4983, %v5815
    %s5880 = sld [smem:[#allocation2]]
    %v5881 = vlaneseq
    %v5882 = vshrl.u32 %v5881, 7
    %v5883 = vadd.s32 %v5882, 8
    %v5884 = vadd.s32 %v5882, 16
    %v5885 = vadd.s32 %v5882, 24
    %v5886 = vadd.s32 %v5882, 32
    %v5887 = vadd.s32 %v5882, 40
    %v5888 = vadd.s32 %v5882, 48
    %v5889 = vadd.s32 %v5882, 56
    %v5890 = vadd.s32 %v5882, 64
    %v5891 = vadd.s32 %v5882, 72
    %v5892 = vadd.s32 %v5882, 80
    %v5893 = vadd.s32 %v5882, 88
    %v5894 = vadd.s32 %v5882, 96
    %v5895 = vadd.s32 %v5882, 104
    %v5896 = vadd.s32 %v5882, 112
    %v5897 = vadd.s32 %v5882, 120
    %v5898 = vadd.s32 %v5882, 128
    %v5899 = vadd.s32 %v5882, 136
    %v5900 = vadd.s32 %v5882, 144
    %v5901 = vadd.s32 %v5882, 152
    %v5902 = vadd.s32 %v5882, 160
    %v5903 = vadd.s32 %v5882, 168
    %v5904 = vadd.s32 %v5882, 176
    %v5905 = vadd.s32 %v5882, 184
    %v5906 = vadd.s32 %v5882, 192
    %v5907 = vadd.s32 %v5882, 200
    %v5908 = vadd.s32 %v5882, 208
    %v5909 = vadd.s32 %v5882, 216
    %v5910 = vadd.s32 %v5882, 224
    %v5911 = vadd.s32 %v5882, 232
    %v5912 = vadd.s32 %v5882, 240
    %v5913 = vadd.s32 %v5882, 248
    %v5914 = vadd.s32 %v5882, 256
    %v5915 = vadd.s32 %v5882, 264
    %v5916 = vadd.s32 %v5882, 272
    %v5917 = vadd.s32 %v5882, 280
    %v5918 = vadd.s32 %v5882, 288
    %v5919 = vadd.s32 %v5882, 296
    %v5920 = vadd.s32 %v5882, 304
    %v5921 = vadd.s32 %v5882, 312
    %v5922 = vadd.s32 %v5882, 320
    %v5923 = vadd.s32 %v5882, 328
    %v5924 = vadd.s32 %v5882, 336
    %v5925 = vadd.s32 %v5882, 344
    %v5926 = vadd.s32 %v5882, 352
    %v5927 = vadd.s32 %v5882, 360
    %v5928 = vadd.s32 %v5882, 368
    %v5929 = vadd.s32 %v5882, 376
    %v5930 = vadd.s32 %v5882, 384
    %v5931 = vadd.s32 %v5882, 392
    %v5932 = vadd.s32 %v5882, 400
    %v5933 = vadd.s32 %v5882, 408
    %v5934 = vadd.s32 %v5882, 416
    %v5935 = vadd.s32 %v5882, 424
    %v5936 = vadd.s32 %v5882, 432
    %v5937 = vadd.s32 %v5882, 440
    %v5938 = vadd.s32 %v5882, 448
    %v5939 = vadd.s32 %v5882, 456
    %v5940 = vadd.s32 %v5882, 464
    %v5941 = vadd.s32 %v5882, 472
    %v5942 = vadd.s32 %v5882, 480
    %v5943 = vadd.s32 %v5882, 488
    %v5944 = vadd.s32 %v5882, 496
    %v5945 = vadd.s32 %v5882, 504
    %v5946 = vstv %s5880
    %vm5947 = vcmp.lt.s32.totalorder %v5882, %v5946
    %vm5948 = vcmp.lt.s32.totalorder %v5883, %v5946
    %vm5949 = vcmp.lt.s32.totalorder %v5884, %v5946
    %vm5950 = vcmp.lt.s32.totalorder %v5885, %v5946
    %vm5951 = vcmp.lt.s32.totalorder %v5886, %v5946
    %vm5952 = vcmp.lt.s32.totalorder %v5887, %v5946
    %vm5953 = vcmp.lt.s32.totalorder %v5888, %v5946
    %vm5954 = vcmp.lt.s32.totalorder %v5889, %v5946
    %vm5955 = vcmp.lt.s32.totalorder %v5890, %v5946
    %vm5956 = vcmp.lt.s32.totalorder %v5891, %v5946
    %vm5957 = vcmp.lt.s32.totalorder %v5892, %v5946
    %vm5958 = vcmp.lt.s32.totalorder %v5893, %v5946
    %vm5959 = vcmp.lt.s32.totalorder %v5894, %v5946
    %vm5960 = vcmp.lt.s32.totalorder %v5895, %v5946
    %vm5961 = vcmp.lt.s32.totalorder %v5896, %v5946
    %vm5962 = vcmp.lt.s32.totalorder %v5897, %v5946
    %vm5963 = vcmp.lt.s32.totalorder %v5898, %v5946
    %vm5964 = vcmp.lt.s32.totalorder %v5899, %v5946
    %vm5965 = vcmp.lt.s32.totalorder %v5900, %v5946
    %vm5966 = vcmp.lt.s32.totalorder %v5901, %v5946
    %vm5967 = vcmp.lt.s32.totalorder %v5902, %v5946
    %vm5968 = vcmp.lt.s32.totalorder %v5903, %v5946
    %vm5969 = vcmp.lt.s32.totalorder %v5904, %v5946
    %vm5970 = vcmp.lt.s32.totalorder %v5905, %v5946
    %vm5971 = vcmp.lt.s32.totalorder %v5906, %v5946
    %vm5972 = vcmp.lt.s32.totalorder %v5907, %v5946
    %vm5973 = vcmp.lt.s32.totalorder %v5908, %v5946
    %vm5974 = vcmp.lt.s32.totalorder %v5909, %v5946
    %vm5975 = vcmp.lt.s32.totalorder %v5910, %v5946
    %vm5976 = vcmp.lt.s32.totalorder %v5911, %v5946
    %vm5977 = vcmp.lt.s32.totalorder %v5912, %v5946
    %vm5978 = vcmp.lt.s32.totalorder %v5913, %v5946
    %vm5979 = vcmp.lt.s32.totalorder %v5914, %v5946
    %vm5980 = vcmp.lt.s32.totalorder %v5915, %v5946
    %vm5981 = vcmp.lt.s32.totalorder %v5916, %v5946
    %vm5982 = vcmp.lt.s32.totalorder %v5917, %v5946
    %vm5983 = vcmp.lt.s32.totalorder %v5918, %v5946
    %vm5984 = vcmp.lt.s32.totalorder %v5919, %v5946
    %vm5985 = vcmp.lt.s32.totalorder %v5920, %v5946
    %vm5986 = vcmp.lt.s32.totalorder %v5921, %v5946
    %vm5987 = vcmp.lt.s32.totalorder %v5922, %v5946
    %vm5988 = vcmp.lt.s32.totalorder %v5923, %v5946
    %vm5989 = vcmp.lt.s32.totalorder %v5924, %v5946
    %vm5990 = vcmp.lt.s32.totalorder %v5925, %v5946
    %vm5991 = vcmp.lt.s32.totalorder %v5926, %v5946
    %vm5992 = vcmp.lt.s32.totalorder %v5927, %v5946
    %vm5993 = vcmp.lt.s32.totalorder %v5928, %v5946
    %vm5994 = vcmp.lt.s32.totalorder %v5929, %v5946
    %vm5995 = vcmp.lt.s32.totalorder %v5930, %v5946
    %vm5996 = vcmp.lt.s32.totalorder %v5931, %v5946
    %vm5997 = vcmp.lt.s32.totalorder %v5932, %v5946
    %vm5998 = vcmp.lt.s32.totalorder %v5933, %v5946
    %vm5999 = vcmp.lt.s32.totalorder %v5934, %v5946
    %vm6000 = vcmp.lt.s32.totalorder %v5935, %v5946
    %vm6001 = vcmp.lt.s32.totalorder %v5936, %v5946
    %vm6002 = vcmp.lt.s32.totalorder %v5937, %v5946
    %vm6003 = vcmp.lt.s32.totalorder %v5938, %v5946
    %vm6004 = vcmp.lt.s32.totalorder %v5939, %v5946
    %vm6005 = vcmp.lt.s32.totalorder %v5940, %v5946
    %vm6006 = vcmp.lt.s32.totalorder %v5941, %v5946
    %vm6007 = vcmp.lt.s32.totalorder %v5942, %v5946
    %vm6008 = vcmp.lt.s32.totalorder %v5943, %v5946
    %vm6009 = vcmp.lt.s32.totalorder %v5944, %v5946
    %vm6010 = vcmp.lt.s32.totalorder %v5945, %v5946
    %v6011 = vsel %vm5947, 1, 0
    %v6012 = vsel %vm5948, 1, 0
    %v6013 = vsel %vm5949, 1, 0
    %v6014 = vsel %vm5950, 1, 0
    %v6015 = vsel %vm5951, 1, 0
    %v6016 = vsel %vm5952, 1, 0
    %v6017 = vsel %vm5953, 1, 0
    %v6018 = vsel %vm5954, 1, 0
    %v6019 = vsel %vm5955, 1, 0
    %v6020 = vsel %vm5956, 1, 0
    %v6021 = vsel %vm5957, 1, 0
    %v6022 = vsel %vm5958, 1, 0
    %v6023 = vsel %vm5959, 1, 0
    %v6024 = vsel %vm5960, 1, 0
    %v6025 = vsel %vm5961, 1, 0
    %v6026 = vsel %vm5962, 1, 0
    %v6027 = vsel %vm5963, 1, 0
    %v6028 = vsel %vm5964, 1, 0
    %v6029 = vsel %vm5965, 1, 0
    %v6030 = vsel %vm5966, 1, 0
    %v6031 = vsel %vm5967, 1, 0
    %v6032 = vsel %vm5968, 1, 0
    %v6033 = vsel %vm5969, 1, 0
    %v6034 = vsel %vm5970, 1, 0
    %v6035 = vsel %vm5971, 1, 0
    %v6036 = vsel %vm5972, 1, 0
    %v6037 = vsel %vm5973, 1, 0
    %v6038 = vsel %vm5974, 1, 0
    %v6039 = vsel %vm5975, 1, 0
    %v6040 = vsel %vm5976, 1, 0
    %v6041 = vsel %vm5977, 1, 0
    %v6042 = vsel %vm5978, 1, 0
    %v6043 = vsel %vm5979, 1, 0
    %v6044 = vsel %vm5980, 1, 0
    %v6045 = vsel %vm5981, 1, 0
    %v6046 = vsel %vm5982, 1, 0
    %v6047 = vsel %vm5983, 1, 0
    %v6048 = vsel %vm5984, 1, 0
    %v6049 = vsel %vm5985, 1, 0
    %v6050 = vsel %vm5986, 1, 0
    %v6051 = vsel %vm5987, 1, 0
    %v6052 = vsel %vm5988, 1, 0
    %v6053 = vsel %vm5989, 1, 0
    %v6054 = vsel %vm5990, 1, 0
    %v6055 = vsel %vm5991, 1, 0
    %v6056 = vsel %vm5992, 1, 0
    %v6057 = vsel %vm5993, 1, 0
    %v6058 = vsel %vm5994, 1, 0
    %v6059 = vsel %vm5995, 1, 0
    %v6060 = vsel %vm5996, 1, 0
    %v6061 = vsel %vm5997, 1, 0
    %v6062 = vsel %vm5998, 1, 0
    %v6063 = vsel %vm5999, 1, 0
    %v6064 = vsel %vm6000, 1, 0
    %v6065 = vsel %vm6001, 1, 0
    %v6066 = vsel %vm6002, 1, 0
    %v6067 = vsel %vm6003, 1, 0
    %v6068 = vsel %vm6004, 1, 0
    %v6069 = vsel %vm6005, 1, 0
    %v6070 = vsel %vm6006, 1, 0
    %v6071 = vsel %vm6007, 1, 0
    %v6072 = vsel %vm6008, 1, 0
    %v6073 = vsel %vm6009, 1, 0
    %v6074 = vsel %vm6010, 1, 0
    %v6075 = vcvt.s32.f32 %v6011
    %v6076 = vcvt.s32.f32 %v6012
    %v6077 = vcvt.s32.f32 %v6013
    %v6078 = vcvt.s32.f32 %v6014
    %v6079 = vcvt.s32.f32 %v6015
    %v6080 = vcvt.s32.f32 %v6016
    %v6081 = vcvt.s32.f32 %v6017
    %v6082 = vcvt.s32.f32 %v6018
    %v6083 = vcvt.s32.f32 %v6019
    %v6084 = vcvt.s32.f32 %v6020
    %v6085 = vcvt.s32.f32 %v6021
    %v6086 = vcvt.s32.f32 %v6022
    %v6087 = vcvt.s32.f32 %v6023
    %v6088 = vcvt.s32.f32 %v6024
    %v6089 = vcvt.s32.f32 %v6025
    %v6090 = vcvt.s32.f32 %v6026
    %v6091 = vcvt.s32.f32 %v6027
    %v6092 = vcvt.s32.f32 %v6028
    %v6093 = vcvt.s32.f32 %v6029
    %v6094 = vcvt.s32.f32 %v6030
    %v6095 = vcvt.s32.f32 %v6031
    %v6096 = vcvt.s32.f32 %v6032
    %v6097 = vcvt.s32.f32 %v6033
    %v6098 = vcvt.s32.f32 %v6034
    %v6099 = vcvt.s32.f32 %v6035
    %v6100 = vcvt.s32.f32 %v6036
    %v6101 = vcvt.s32.f32 %v6037
    %v6102 = vcvt.s32.f32 %v6038
    %v6103 = vcvt.s32.f32 %v6039
    %v6104 = vcvt.s32.f32 %v6040
    %v6105 = vcvt.s32.f32 %v6041
    %v6106 = vcvt.s32.f32 %v6042
    %v6107 = vcvt.s32.f32 %v6043
    %v6108 = vcvt.s32.f32 %v6044
    %v6109 = vcvt.s32.f32 %v6045
    %v6110 = vcvt.s32.f32 %v6046
    %v6111 = vcvt.s32.f32 %v6047
    %v6112 = vcvt.s32.f32 %v6048
    %v6113 = vcvt.s32.f32 %v6049
    %v6114 = vcvt.s32.f32 %v6050
    %v6115 = vcvt.s32.f32 %v6051
    %v6116 = vcvt.s32.f32 %v6052
    %v6117 = vcvt.s32.f32 %v6053
    %v6118 = vcvt.s32.f32 %v6054
    %v6119 = vcvt.s32.f32 %v6055
    %v6120 = vcvt.s32.f32 %v6056
    %v6121 = vcvt.s32.f32 %v6057
    %v6122 = vcvt.s32.f32 %v6058
    %v6123 = vcvt.s32.f32 %v6059
    %v6124 = vcvt.s32.f32 %v6060
    %v6125 = vcvt.s32.f32 %v6061
    %v6126 = vcvt.s32.f32 %v6062
    %v6127 = vcvt.s32.f32 %v6063
    %v6128 = vcvt.s32.f32 %v6064
    %v6129 = vcvt.s32.f32 %v6065
    %v6130 = vcvt.s32.f32 %v6066
    %v6131 = vcvt.s32.f32 %v6067
    %v6132 = vcvt.s32.f32 %v6068
    %v6133 = vcvt.s32.f32 %v6069
    %v6134 = vcvt.s32.f32 %v6070
    %v6135 = vcvt.s32.f32 %v6071
    %v6136 = vcvt.s32.f32 %v6072
    %v6137 = vcvt.s32.f32 %v6073
    %v6138 = vcvt.s32.f32 %v6074
    %v6139 = vmul.f32 %v5816, %v6075
    %v6140 = vmul.f32 %v5817, %v6076
    %v6141 = vmul.f32 %v5818, %v6077
    %v6142 = vmul.f32 %v5819, %v6078
    %v6143 = vmul.f32 %v5820, %v6079
    %v6144 = vmul.f32 %v5821, %v6080
    %v6145 = vmul.f32 %v5822, %v6081
    %v6146 = vmul.f32 %v5823, %v6082
    %v6147 = vmul.f32 %v5824, %v6083
    %v6148 = vmul.f32 %v5825, %v6084
    %v6149 = vmul.f32 %v5826, %v6085
    %v6150 = vmul.f32 %v5827, %v6086
    %v6151 = vmul.f32 %v5828, %v6087
    %v6152 = vmul.f32 %v5829, %v6088
    %v6153 = vmul.f32 %v5830, %v6089
    %v6154 = vmul.f32 %v5831, %v6090
    %v6155 = vmul.f32 %v5832, %v6091
    %v6156 = vmul.f32 %v5833, %v6092
    %v6157 = vmul.f32 %v5834, %v6093
    %v6158 = vmul.f32 %v5835, %v6094
    %v6159 = vmul.f32 %v5836, %v6095
    %v6160 = vmul.f32 %v5837, %v6096
    %v6161 = vmul.f32 %v5838, %v6097
    %v6162 = vmul.f32 %v5839, %v6098
    %v6163 = vmul.f32 %v5840, %v6099
    %v6164 = vmul.f32 %v5841, %v6100
    %v6165 = vmul.f32 %v5842, %v6101
    %v6166 = vmul.f32 %v5843, %v6102
    %v6167 = vmul.f32 %v5844, %v6103
    %v6168 = vmul.f32 %v5845, %v6104
    %v6169 = vmul.f32 %v5846, %v6105
    %v6170 = vmul.f32 %v5847, %v6106
    %v6171 = vmul.f32 %v5848, %v6107
    %v6172 = vmul.f32 %v5849, %v6108
    %v6173 = vmul.f32 %v5850, %v6109
    %v6174 = vmul.f32 %v5851, %v6110
    %v6175 = vmul.f32 %v5852, %v6111
    %v6176 = vmul.f32 %v5853, %v6112
    %v6177 = vmul.f32 %v5854, %v6113
    %v6178 = vmul.f32 %v5855, %v6114
    %v6179 = vmul.f32 %v5856, %v6115
    %v6180 = vmul.f32 %v5857, %v6116
    %v6181 = vmul.f32 %v5858, %v6117
    %v6182 = vmul.f32 %v5859, %v6118
    %v6183 = vmul.f32 %v5860, %v6119
    %v6184 = vmul.f32 %v5861, %v6120
    %v6185 = vmul.f32 %v5862, %v6121
    %v6186 = vmul.f32 %v5863, %v6122
    %v6187 = vmul.f32 %v5864, %v6123
    %v6188 = vmul.f32 %v5865, %v6124
    %v6189 = vmul.f32 %v5866, %v6125
    %v6190 = vmul.f32 %v5867, %v6126
    %v6191 = vmul.f32 %v5868, %v6127
    %v6192 = vmul.f32 %v5869, %v6128
    %v6193 = vmul.f32 %v5870, %v6129
    %v6194 = vmul.f32 %v5871, %v6130
    %v6195 = vmul.f32 %v5872, %v6131
    %v6196 = vmul.f32 %v5873, %v6132
    %v6197 = vmul.f32 %v5874, %v6133
    %v6198 = vmul.f32 %v5875, %v6134
    %v6199 = vmul.f32 %v5876, %v6135
    %v6200 = vmul.f32 %v5877, %v6136
    %v6201 = vmul.f32 %v5878, %v6137
    %v6202 = vmul.f32 %v5879, %v6138
    %v6203 = vadd.f32 %v6139, %v6140
    %v6204 = vadd.f32 %v6203, %v6141
    %v6205 = vadd.f32 %v6204, %v6142
    %v6206 = vadd.f32 %v6205, %v6143
    %v6207 = vadd.f32 %v6206, %v6144
    %v6208 = vadd.f32 %v6207, %v6145
    %v6209 = vadd.f32 %v6208, %v6146
    %v6210 = vadd.f32 %v6209, %v6147
    %v6211 = vadd.f32 %v6210, %v6148
    %v6212 = vadd.f32 %v6211, %v6149
    %v6213 = vadd.f32 %v6212, %v6150
    %v6214 = vadd.f32 %v6213, %v6151
    %v6215 = vadd.f32 %v6214, %v6152
    %v6216 = vadd.f32 %v6215, %v6153
    %v6217 = vadd.f32 %v6216, %v6154
    %v6218 = vadd.f32 %v6217, %v6155
    %v6219 = vadd.f32 %v6218, %v6156
    %v6220 = vadd.f32 %v6219, %v6157
    %v6221 = vadd.f32 %v6220, %v6158
    %v6222 = vadd.f32 %v6221, %v6159
    %v6223 = vadd.f32 %v6222, %v6160
    %v6224 = vadd.f32 %v6223, %v6161
    %v6225 = vadd.f32 %v6224, %v6162
    %v6226 = vadd.f32 %v6225, %v6163
    %v6227 = vadd.f32 %v6226, %v6164
    %v6228 = vadd.f32 %v6227, %v6165
    %v6229 = vadd.f32 %v6228, %v6166
    %v6230 = vadd.f32 %v6229, %v6167
    %v6231 = vadd.f32 %v6230, %v6168
    %v6232 = vadd.f32 %v6231, %v6169
    %v6233 = vadd.f32 %v6232, %v6170
    %v6234 = vadd.f32 %v6233, %v6171
    %v6235 = vadd.f32 %v6234, %v6172
    %v6236 = vadd.f32 %v6235, %v6173
    %v6237 = vadd.f32 %v6236, %v6174
    %v6238 = vadd.f32 %v6237, %v6175
    %v6239 = vadd.f32 %v6238, %v6176
    %v6240 = vadd.f32 %v6239, %v6177
    %v6241 = vadd.f32 %v6240, %v6178
    %v6242 = vadd.f32 %v6241, %v6179
    %v6243 = vadd.f32 %v6242, %v6180
    %v6244 = vadd.f32 %v6243, %v6181
    %v6245 = vadd.f32 %v6244, %v6182
    %v6246 = vadd.f32 %v6245, %v6183
    %v6247 = vadd.f32 %v6246, %v6184
    %v6248 = vadd.f32 %v6247, %v6185
    %v6249 = vadd.f32 %v6248, %v6186
    %v6250 = vadd.f32 %v6249, %v6187
    %v6251 = vadd.f32 %v6250, %v6188
    %v6252 = vadd.f32 %v6251, %v6189
    %v6253 = vadd.f32 %v6252, %v6190
    %v6254 = vadd.f32 %v6253, %v6191
    %v6255 = vadd.f32 %v6254, %v6192
    %v6256 = vadd.f32 %v6255, %v6193
    %v6257 = vadd.f32 %v6256, %v6194
    %v6258 = vadd.f32 %v6257, %v6195
    %v6259 = vadd.f32 %v6258, %v6196
    %v6260 = vadd.f32 %v6259, %v6197
    %v6261 = vadd.f32 %v6260, %v6198
    %v6262 = vadd.f32 %v6261, %v6199
    %v6263 = vadd.f32 %v6262, %v6200
    %v6264 = vadd.f32 %v6263, %v6201
    %v6265 = vadd.f32 %v6264, %v6202
    %v6266 = vrot.slane %v6265, 4
    %v6267 = vadd.f32 %v6265, %v6266
    %v6268 = vrot.slane %v6267, 2
    %v6269 = vadd.f32 %v6267, %v6268
    %v6270 = vrot.slane %v6269, 1
    %v6271 = vadd.f32 %v6269, %v6270
    %v6272 = vcvt.s32.f32 %v5946
    %v6273 = vrcp.pop %v6272
    %v6274 = vmul.f32 %v6272, %v6273
    %v6275 = vsub.f32 1.0, %v6274
    %v6276 = vmul.f32 %v6273, %v6275
    %v6277 = vadd.f32 %v6273, %v6276
    %vm6278 = vweird.f32 %v6272
    %vm6279 = vweird.f32 %v6273
    %vm6280 = vmor %vm6278, %vm6279
    %v6281 = vsel %vm6280, %v6273, %v6277
    %v6282 = vand.u32 2147483647, %v6272
    %vm6283 = vcmp.eq.f32.partialorder %v6282, 8.507059e+37
    %v6284 = vand.u32 %v6272, 2147483648
    %v6285 = vor.u32 1.1754944e-38, %v6284
    %v6286 = vsel %vm6283, %v6285, %v6281
    %v6287 = vmul.f32 %v6271, %v6286
    %v6288 = vsub.f32 0.0, %v6287
    %s6289 = vtos %v6288
    %s6290 = scalar_lea.smem [#allocation3], 0
    %6291 = sst [smem:[%s6290]] %s6289
    // Predicated region
    $region18: #{dygraph_device.1} parent=1 // pred_check
      _
    $region19: #{dygraph_device.1} parent=1 // pred_check_branch
      %6293 = sbr.rel (0) target = $region21
    $region20: #{dygraph_device.1} parent=1 // pred_region
      %6295 = vsyncadd [#allocation4], 0
      %s6297 = sshll.u32 %s4, 4
      %s6298 = int_to_ptr.hbm [resolvable:$true] %s6297
      %6300 = dma.smem_to_hbm [#allocation3], 16, %s6298, [#allocation4]
    $region21: #{dygraph_device.1} parent=1 // pred_fallthru
      _
    // Predicated region
    $region22: #{dygraph_device.1} parent=1 // pred_check
      _
    $region23: #{dygraph_device.1} parent=1 // pred_check_branch
      %6302 = sbr.rel (0) target = $region25
    $region24: #{dygraph_device.1} parent=1 // pred_region
      %6304 = dma.done [#allocation4], 16
    $region25: #{dygraph_device.1} parent=1 // pred_fallthru
      _
    %6305 = sfence
    %6306 = vsyncpa [#allocation4], 1

</llo_original>
